<compile_context>
chip_gen: v7x
topology: tpu7x:2x2x1
jax: 0.10.0
libtpu: 0.0.40
codegen_flags: <defaults>
</compile_context>

<pallas_src>
import functools
from math import log

import jax
import jax.numpy as jnp
from jax.experimental import pallas as pl
from jax.experimental.pallas import tpu as pltpu


def _round_up(x, m):
    return ((x + m - 1) // m) * m


def _pick_batch_block(n, slab_rows, target_rows=512):
    """Samples per grid step: amortize per-step overhead, keep an even number of blocks."""
    divs = [d for d in range(1, n + 1) if n % d == 0]
    cap = max(1, target_rows // slab_rows)
    cand = [d for d in divs if d <= cap] or [1]
    even = [d for d in cand if (n // d) % 2 == 0]
    return max(even or cand)


# ------------------ fused FlowStep (ActNorm+InvConv+coupling) + Gaussianize ------------------ #

def _glow_fused_kernel(x_ref, wf_ref, bfv_ref, pml_ref, pmr_ref, mint_ref, sel_ref,
                       w1_ref, b1_ref, w2_ref, b2_ref, w3_ref, b3_ref,
                       gm_ref, gis_ref, z_ref, ld_ref,
                       *, B, P, Ws, ch, hidden, SEP, G):
    c = 2 * ch
    SLAB = P + SEP                      # per-sample rows: P data rows + SEP zero separator rows
    M = B * SLAB                        # rows the coupling net is evaluated on

    # ---- fused ActNorm + invertible 1x1 conv (affine folded into the matmul) ----
    x2 = x_ref[...].reshape(B * P, c)
    y = jnp.dot(x2, wf_ref[...], preferred_element_type=jnp.float32) + bfv_ref[...]

    # ---- separator-padded core: per sample [P data rows | SEP zero rows] ----
    core = jnp.concatenate(
        [y.reshape(B, P, c), jnp.zeros((B, SEP, c), jnp.float32)], axis=1
    ).reshape(M, c)

    # ---- conv1 (3x3, ch -> hidden): 9 shifted matmuls on the guarded bf16 x_a slab ----
    gz1 = jnp.zeros((G, ch), jnp.bfloat16)
    xa = jnp.concatenate([gz1, core[:, :ch].astype(jnp.bfloat16), gz1], axis=0)  # (M+2G, ch)
    pml = pml_ref[...]                  # zero where a kw=-1 tap would wrap across the row edge
    pmr = pmr_ref[...]                  # zero where a kw=+1 tap would wrap across the row edge
    src1 = (xa * pml, xa, xa * pmr)     # pre-masked variants shared by 3 taps each

    acc1 = None
    for kh in range(3):
        for kw in range(3):
            off = G + (kh - 1) * Ws + (kw - 1)
            tap = src1[kw][off:off + M, :]
            d = jnp.dot(tap, w1_ref[kh * 3 + kw], preferred_element_type=jnp.float32)
            acc1 = d if acc1 is None else acc1 + d
    h1 = jnp.maximum(acc1 + b1_ref[...], 0.0)

    # ---- conv2 (1x1, hidden -> hidden) ----
    h2 = jnp.dot(h1.astype(jnp.bfloat16), w2_ref[...],
                 preferred_element_type=jnp.float32) + b2_ref[...]
    h2 = jnp.maximum(h2, 0.0)

    # ---- conv3 (3x3, hidden -> 2*ch); the data-row mask supplies conv3's zero padding ----
    gz2 = jnp.zeros((G, hidden), jnp.bfloat16)
    h2b = jnp.concatenate([gz2, (h2 * mint_ref[...]).astype(jnp.bfloat16), gz2], axis=0)
    src3 = (h2b * pml, h2b, h2b * pmr)
    acc3 = None
    for kh in range(3):
        for kw in range(3):
            off = G + (kh - 1) * Ws + (kw - 1)
            tap = src3[kw][off:off + M, :]
            d = jnp.dot(tap, w3_ref[kh * 3 + kw], preferred_element_type=jnp.float32)
            acc3 = d if acc3 is None else acc3 + d
    h3 = acc3 + b3_ref[...]

    # ---- affine coupling + analytic Gaussianize epilogue ----
    log_s = h3[:, :ch] + 2.0
    t = h3[:, ch:]
    # log(sigmoid(x)) = min(x, 0) - log(1 + exp(-|x|)); reuse the exp chain for s
    log_sig = jnp.minimum(log_s, 0.0) - jnp.log(1.0 + jnp.exp(-jnp.abs(log_s)))
    s = jnp.exp(log_sig)

    gm = gm_ref[...]
    gis = gis_ref[...]
    za = (core[:, :ch] - gm[:, :ch]) * gis[:, :ch]
    zb = ((core[:, ch:] + t) * s - gm[:, ch:]) * gis[:, ch:]

    for b in range(B):                  # data rows are contiguous per sample -> direct writes
        r0 = b * SLAB
        z_ref[b, :, :ch] = za[r0:r0 + P, :]
        z_ref[b, :, ch:] = zb[r0:r0 + P, :]

    # per-sample coupling logdet: selector matmul over the data rows only
    rs = jnp.sum(log_sig, axis=1, keepdims=True)                       # (M, 1)
    ld_ref[...] = jnp.dot(sel_ref[...], rs,
                          preferred_element_type=jnp.float32).reshape(B, 1, 1)


def pallas_glow_flowstep(x_pm, params, N, Hs, Ws, c, hidden):
    """x_pm: (N, P, c) pixel-major squeezed activation. Returns z (N,P,c), per-sample coupling
    logdet (N,), and the data-independent logdet constant (actnorm + invconv + gaussianize)."""
    ch = c // 2
    P = Hs * Ws
    SEP = _round_up(Ws + 1, 8)          # separator / guard rows (>= Ws+1, sublane aligned)
    G = SEP
    SLAB = P + SEP
    B_blk = _pick_batch_block(N, SLAB)
    M = B_blk * SLAB
    Mpp = M + 2 * G

    # folded ActNorm + invertible 1x1 conv: y = x @ Wf + bf
    w_lu = build_lu_weight(params)
    scale = params["an_scale"].astype(jnp.float32)
    loc = params["an_loc"].astype(jnp.float32)
    wf = (scale[:, None] * w_lu.T).astype(jnp.float32)
    bfv = ((loc * scale)[None, :] @ w_lu.T).astype(jnp.float32)

    # masks for the shifted-matmul 3x3 convs (see kernel) -- all tiny, resident in VMEM
    row = jnp.arange(M)
    in_data = (row % SLAB) < P
    col = (row % SLAB) % Ws
    mint = in_data.astype(jnp.float32).reshape(M, 1)
    ones_g = jnp.ones((G,), jnp.float32)
    pml = jnp.concatenate([ones_g, jnp.where(in_data & (col == Ws - 1), 0.0, 1.0), ones_g])
    pmr = jnp.concatenate([ones_g, jnp.where(in_data & (col == 0), 0.0, 1.0), ones_g])
    pml = pml.reshape(Mpp, 1).astype(jnp.bfloat16)
    pmr = pmr.reshape(Mpp, 1).astype(jnp.bfloat16)
    sel = (((row[None, :] // SLAB) == jnp.arange(B_blk)[:, None]) & in_data[None, :])
    sel = sel.astype(jnp.float32)

    # coupling-net weights: per-tap (Cin, Cout) matrices, bf16 MXU operands, f32 biases
    w1 = jnp.transpose(params["cw1"], (2, 3, 1, 0)).reshape(9, ch, hidden).astype(jnp.bfloat16)
    b1 = params["cb1"].reshape(1, hidden).astype(jnp.float32)
    w2 = params["cw2"].T.astype(jnp.bfloat16)
    b2 = params["cb2"].reshape(1, hidden).astype(jnp.float32)
    w3 = jnp.transpose(params["cw3"], (2, 3, 1, 0)).reshape(9, hidden, c).astype(jnp.bfloat16)
    b3 = params["cb3"].reshape(1, c).astype(jnp.float32)

    # Gaussianize is called as forward(zeros_like(x), x): (m, logs) = conv3x3(zeros) = bias
    gb = params["gb"].astype(jnp.float32)
    gm = gb[:c].reshape(1, c)
    g_logs = gb[c:]
    gis = jnp.exp(-g_logs).reshape(1, c)

    kern = functools.partial(_glow_fused_kernel, B=B_blk, P=P, Ws=Ws,
                             ch=ch, hidden=hidden, SEP=SEP, G=G)

    z, ld = pl.pallas_call(
        kern,
        out_shape=(jax.ShapeDtypeStruct((N, P, c), jnp.float32),
                   jax.ShapeDtypeStruct((N, 1, 1), jnp.float32)),
        grid=(N // B_blk,),
        in_specs=[
            pl.BlockSpec((B_blk, P, c), lambda i: (i, 0, 0)),        # activation block (pipelined)
            pl.BlockSpec((c, c), lambda i: (0, 0)),                  # folded actnorm+invconv W
            pl.BlockSpec((1, c), lambda i: (0, 0)),                  # folded bias
            pl.BlockSpec((Mpp, 1), lambda i: (0, 0)),                # kw=-1 column mask
            pl.BlockSpec((Mpp, 1), lambda i: (0, 0)),                # kw=+1 column mask
            pl.BlockSpec((M, 1), lambda i: (0, 0)),                  # data-row mask
            pl.BlockSpec((B_blk, M), lambda i: (0, 0)),              # per-sample logdet selector
            pl.BlockSpec((9, ch, hidden), lambda i: (0, 0, 0)),      # conv1 weights
            pl.BlockSpec((1, hidden), lambda i: (0, 0)),
            pl.BlockSpec((hidden, hidden), lambda i: (0, 0)),        # conv2 (1x1) weights
            pl.BlockSpec((1, hidden), lambda i: (0, 0)),
            pl.BlockSpec((9, hidden, c), lambda i: (0, 0, 0)),       # conv3 weights
            pl.BlockSpec((1, c), lambda i: (0, 0)),
            pl.BlockSpec((1, c), lambda i: (0, 0)),                  # gaussianize mean
            pl.BlockSpec((1, c), lambda i: (0, 0)),                  # gaussianize inv-std
        ],
        out_specs=(pl.BlockSpec((B_blk, P, c), lambda i: (i, 0, 0)),
                   pl.BlockSpec((B_blk, 1, 1), lambda i: (i, 0, 0))),
        compiler_params=pltpu.CompilerParams(
            dimension_semantics=("parallel",),
            # comfortably fits v7x's 64 MiB VMEM; raise toward ~100 MiB on v5e/v6e if B_blk /
            # resolution is increased.
            vmem_limit_bytes=48 * 1024 * 1024),
    )(x_pm, wf, bfv, pml, pmr, mint, sel, w1, b1, w2, b2, w3, b3, gm, gis)

    ld_couple = ld[:, 0, 0]
    ld_const = (Hs * Ws * (jnp.sum(jnp.log(jnp.abs(scale))) + jnp.sum(params["lu_log_s"]))
                - float(Hs * Ws) * jnp.sum(g_logs))
    return z, ld_couple, ld_const


# ------------------------------------- JAX glue ------------------------------------- #

def build_lu_weight(params):
    c = params["lu_log_s"].shape[0]
    L = jnp.tril(params["lu_l"], -1) + jnp.eye(c, dtype=jnp.float32)
    U = jnp.triu(params["lu_u"], 1) + jnp.diag(params["lu_sign"] * jnp.exp(params["lu_log_s"]))
    return params["lu_p"] @ L @ U          # (c, c), out_pixel = W @ x_pixel


def glow_forward(x_nchw, params, hidden=32):
    """Replicates Glow.forward for levels=1, nblocks=1, affine=True, lu=True."""
    N, C, H, W = x_nchw.shape
    n_pixels = C * H * W

    # Squeeze: (N,C,H,W) -> (N,4C,H/2,W/2) (layout glue)
    x = x_nchw.reshape(N, C, H // 2, 2, W // 2, 2)
    x = jnp.transpose(x, (0, 1, 3, 5, 2, 4)).reshape(N, C * 4, H // 2, W // 2)
    c = C * 4
    Hs, Ws = H // 2, W // 2
    P = Hs * Ws
    x_pm = jnp.transpose(x, (0, 2, 3, 1)).reshape(N, P, c).astype(jnp.float32)

    z_flat, ld_couple, ld_const = pallas_glow_flowstep(x_pm, params, N, Hs, Ws, c, hidden)

    log_det = (-log(256.0) * n_pixels) + ld_const + ld_couple
    z_nchw = jnp.transpose(z_flat.reshape(N, Hs, Ws, c), (0, 3, 1, 2))
    Z = [z_nchw]
    shapes = [tuple(z_nchw.shape)]
    return Z, log_det, shapes


def init_params(key, c_in, hidden=32):
    c = c_in * 4
    ch = c // 2
    ks = jax.random.split(key, 12)

    def nrm(k, shape, scale=0.05):
        return scale * jax.random.normal(k, shape, jnp.float32)

    perm = jnp.eye(c, dtype=jnp.float32)[::-1]     # fixed permutation (|det| = 1)
    return dict(
        an_loc=nrm(ks[0], (c,), 0.1),
        an_scale=jnp.exp(nrm(ks[1], (c,), 0.1)),
        lu_p=perm,
        lu_l=nrm(ks[2], (c, c)),
        lu_u=nrm(ks[3], (c, c)),
        lu_log_s=nrm(ks[4], (c,), 0.1),
        lu_sign=jnp.where(jnp.arange(c) % 2 == 0, 1.0, -1.0).astype(jnp.float32),
        cw1=nrm(ks[5], (hidden, ch, 3, 3)),
        cb1=jnp.zeros((hidden,), jnp.float32),
        cw2=nrm(ks[6], (hidden, hidden)),
        cb2=jnp.zeros((hidden,), jnp.float32),
        cw3=nrm(ks[7], (c, hidden, 3, 3)),
        cb3=jnp.zeros((c,), jnp.float32),
        gw=nrm(ks[8], (2 * c, c, 3, 3)),   # unused at runtime (conv on zeros short-circuits)
        gb=nrm(ks[9], (2 * c,), 0.1),
    )


# ------------------------ pure-JAX f32 reference (tolerance check) ------------------------ #

def glow_forward_ref(x_nchw, params, hidden=32):
    N, C, H, W = x_nchw.shape
    n_pixels = C * H * W
    x = x_nchw.reshape(N, C, H // 2, 2, W // 2, 2)
    x = jnp.transpose(x, (0, 1, 3, 5, 2, 4)).reshape(N, C * 4, H // 2, W // 2)
    c = C * 4
    ch = c // 2
    Hs, Ws = H // 2, W // 2
    xh = jnp.transpose(x, (0, 2, 3, 1)).astype(jnp.float32)        # NHWC

    scale, loc = params["an_scale"], params["an_loc"]
    w_lu = build_lu_weight(params)
    y = (xh + loc) * scale
    y = jnp.einsum("nhwc,dc->nhwd", y, w_lu)
    ld = Hs * Ws * (jnp.sum(jnp.log(jnp.abs(scale))) + jnp.sum(params["lu_log_s"]))

    def conv3x3(v, w_oihw, b):
        w = jnp.transpose(w_oihw, (2, 3, 1, 0))                    # OIHW -> HWIO
        out = jax.lax.conv_general_dilated(v, w, (1, 1), "SAME",
                                           dimension_numbers=("NHWC", "HWIO", "NHWC"))
        return out + b.reshape(1, 1, 1, -1)

    xa, xb = y[..., :ch], y[..., ch:]
    h1 = jax.nn.relu(conv3x3(xa, params["cw1"], params["cb1"]))
    h2 = jax.nn.relu(jnp.einsum("nhwk,ok->nhwo", h1, params["cw2"]) + params["cb2"])
    h3 = conv3x3(h2, params["cw3"], params["cb3"])
    s = jax.nn.sigmoid(h3[..., :ch] + 2.0)
    yb = (xb + h3[..., ch:]) * s
    ld = ld + jnp.sum(jnp.log(s), axis=(1, 2, 3))
    xo = jnp.concatenate([xa, yb], axis=-1)

    gb = params["gb"]
    z = (xo - gb[:c]) * jnp.exp(-gb[c:])
    ld = ld - Hs * Ws * jnp.sum(gb[c:])
    log_det = -log(256.0) * n_pixels + ld
    return jnp.transpose(z, (0, 3, 1, 2)), log_det


if __name__ == "__main__":
    key = jax.random.PRNGKey(0)
    k_x, k_p = jax.random.split(key)
    x = jax.random.uniform(k_x, (2, 4, 16, 16), dtype=jnp.float32)   # NCHW like PyTorch
    params = init_params(k_p, c_in=4, hidden=32)

    Z, log_det, shapes = glow_forward(x, params, hidden=32)
    z = jax.block_until_ready(Z[0])
    log_det = jax.block_until_ready(log_det)

    assert z.shape == (2, 16, 8, 8) and log_det.shape == (2,)
    assert bool(jnp.all(jnp.isfinite(z))) and bool(jnp.all(jnp.isfinite(log_det)))

    # f32 reference path (bf16 coupling-net operands in the kernel -> loose tolerance)
    z_ref, ld_ref = glow_forward_ref(x, params, hidden=32)
    assert bool(jnp.allclose(z, z_ref, rtol=5e-2, atol=5e-2)), float(jnp.max(jnp.abs(z - z_ref)))
    assert bool(jnp.allclose(log_det, ld_ref, rtol=1e-3, atol=1.0))

    print("KERNEL_OK")
</pallas_src>

<mosaic_0001>
module attributes {stable_mosaic.version = 11 : i64} {
  func.func @_glow_fused_kernel(%arg0: i32, %arg1: memref<1x64x16xf32, #tpu.memory_space<vmem>>, %arg2: memref<16x16xf32, #tpu.memory_space<vmem>>, %arg3: memref<1x16xf32, #tpu.memory_space<vmem>>, %arg4: memref<112x1xbf16, #tpu.memory_space<vmem>>, %arg5: memref<112x1xbf16, #tpu.memory_space<vmem>>, %arg6: memref<80x1xf32, #tpu.memory_space<vmem>>, %arg7: memref<1x80xf32, #tpu.memory_space<vmem>>, %arg8: memref<9x8x32xbf16, #tpu.memory_space<vmem>>, %arg9: memref<1x32xf32, #tpu.memory_space<vmem>>, %arg10: memref<32x32xbf16, #tpu.memory_space<vmem>>, %arg11: memref<1x32xf32, #tpu.memory_space<vmem>>, %arg12: memref<9x32x16xbf16, #tpu.memory_space<vmem>>, %arg13: memref<1x16xf32, #tpu.memory_space<vmem>>, %arg14: memref<1x16xf32, #tpu.memory_space<vmem>>, %arg15: memref<1x16xf32, #tpu.memory_space<vmem>>, %arg16: memref<1x64x16xf32, #tpu.memory_space<vmem>>, %arg17: memref<1x1x1xf32, #tpu.memory_space<vmem>>) attributes {dimension_semantics = [#tpu.dimension_semantics<parallel>], iteration_bounds = array<i64: 2>, scalar_prefetch = 0 : i64, scratch_operands = 0 : i64, tpu.core_type = #tpu.core_type<tc>, window_params = [{transform_indices = @transform_0, window_bounds = array<i64: 1, 64, 16>}, {pipeline_mode = #tpu.pipeline_mode<synchronous>, transform_indices = @transform_1, window_bounds = array<i64: 16, 16>}, {pipeline_mode = #tpu.pipeline_mode<synchronous>, transform_indices = @transform_2, window_bounds = array<i64: 1, 16>}, {pipeline_mode = #tpu.pipeline_mode<synchronous>, transform_indices = @transform_3, window_bounds = array<i64: 112, 1>}, {pipeline_mode = #tpu.pipeline_mode<synchronous>, transform_indices = @transform_4, window_bounds = array<i64: 112, 1>}, {pipeline_mode = #tpu.pipeline_mode<synchronous>, transform_indices = @transform_5, window_bounds = array<i64: 80, 1>}, {pipeline_mode = #tpu.pipeline_mode<synchronous>, transform_indices = @transform_6, window_bounds = array<i64: 1, 80>}, {pipeline_mode = #tpu.pipeline_mode<synchronous>, transform_indices = @transform_7, window_bounds = array<i64: 9, 8, 32>}, {pipeline_mode = #tpu.pipeline_mode<synchronous>, transform_indices = @transform_8, window_bounds = array<i64: 1, 32>}, {pipeline_mode = #tpu.pipeline_mode<synchronous>, transform_indices = @transform_9, window_bounds = array<i64: 32, 32>}, {pipeline_mode = #tpu.pipeline_mode<synchronous>, transform_indices = @transform_10, window_bounds = array<i64: 1, 32>}, {pipeline_mode = #tpu.pipeline_mode<synchronous>, transform_indices = @transform_11, window_bounds = array<i64: 9, 32, 16>}, {pipeline_mode = #tpu.pipeline_mode<synchronous>, transform_indices = @transform_12, window_bounds = array<i64: 1, 16>}, {pipeline_mode = #tpu.pipeline_mode<synchronous>, transform_indices = @transform_13, window_bounds = array<i64: 1, 16>}, {pipeline_mode = #tpu.pipeline_mode<synchronous>, transform_indices = @transform_14, window_bounds = array<i64: 1, 16>}, {transform_indices = @transform_15, window_bounds = array<i64: 1, 64, 16>}, {transform_indices = @transform_16, window_bounds = array<i64: 1, 1, 1>}]} {
    %c0 = arith.constant 0 : index
    %c0_0 = arith.constant 0 : index
    %c0_1 = arith.constant 0 : index
    %0 = vector.load %arg1[%c0, %c0_0, %c0_1] : memref<1x64x16xf32, #tpu.memory_space<vmem>>, vector<1x64x16xf32>
    %1 = vector.shape_cast %0 : vector<1x64x16xf32> to vector<64x16xf32>
    %c0_2 = arith.constant 0 : index
    %c0_3 = arith.constant 0 : index
    %2 = vector.load %arg2[%c0_2, %c0_3] : memref<16x16xf32, #tpu.memory_space<vmem>>, vector<16x16xf32>
    %cst = arith.constant dense<0.000000e+00> : vector<64x16xf32>
    %3 = tpu.matmul %1, %2, %cst {dimension_numbers = #tpu.dot_dimension_numbers<[1], [0], [0], [1], [0, 0, 1, 1], [], []>} : vector<64x16xf32>, vector<16x16xf32>, vector<64x16xf32> -> vector<64x16xf32>
    %c0_4 = arith.constant 0 : index
    %c0_5 = arith.constant 0 : index
    %4 = vector.load %arg3[%c0_4, %c0_5] : memref<1x16xf32, #tpu.memory_space<vmem>>, vector<1x16xf32>
    %5 = vector.broadcast %4 : vector<1x16xf32> to vector<64x16xf32>
    %6 = arith.addf %3, %5 : vector<64x16xf32>
    %7 = vector.shape_cast %6 : vector<64x16xf32> to vector<1x64x16xf32>
    %cst_6 = arith.constant 0.000000e+00 : f32
    %8 = vector.broadcast %cst_6 : f32 to vector<1x16x16xf32>
    %9 = tpu.concatenate %7, %8 in 1 : vector<1x64x16xf32>, vector<1x16x16xf32> -> vector<1x80x16xf32>
    %10 = vector.shape_cast %9 : vector<1x80x16xf32> to vector<80x16xf32>
    %cst_7 = arith.constant 0.000000e+00 : bf16
    %11 = vector.broadcast %cst_7 : bf16 to vector<16x8xbf16>
    %12 = vector.extract_strided_slice %10 {offsets = [0, 0], sizes = [80, 8], strides = [1, 1]} : vector<80x16xf32> to vector<80x8xf32>
    %13 = arith.truncf %12 : vector<80x8xf32> to vector<80x8xbf16>
    %14 = tpu.concatenate %11, %13, %11 in 0 : vector<16x8xbf16>, vector<80x8xbf16>, vector<16x8xbf16> -> vector<112x8xbf16>
    %c0_8 = arith.constant 0 : index
    %c0_9 = arith.constant 0 : index
    %15 = vector.load %arg4[%c0_8, %c0_9] : memref<112x1xbf16, #tpu.memory_space<vmem>>, vector<112x1xbf16>
    %c0_10 = arith.constant 0 : index
    %c0_11 = arith.constant 0 : index
    %16 = vector.load %arg5[%c0_10, %c0_11] : memref<112x1xbf16, #tpu.memory_space<vmem>>, vector<112x1xbf16>
    %17 = vector.broadcast %15 : vector<112x1xbf16> to vector<112x8xbf16>
    %18 = arith.mulf %14, %17 : vector<112x8xbf16>
    %19 = vector.broadcast %16 : vector<112x1xbf16> to vector<112x8xbf16>
    %20 = arith.mulf %14, %19 : vector<112x8xbf16>
    %21 = vector.extract_strided_slice %18 {offsets = [7, 0], sizes = [80, 8], strides = [1, 1]} : vector<112x8xbf16> to vector<80x8xbf16>
    %c0_12 = arith.constant 0 : index
    %c0_13 = arith.constant 0 : index
    %c0_14 = arith.constant 0 : index
    %22 = vector.load %arg8[%c0_12, %c0_13, %c0_14] : memref<9x8x32xbf16, #tpu.memory_space<vmem>>, vector<1x8x32xbf16>
    %23 = vector.shape_cast %22 : vector<1x8x32xbf16> to vector<8x32xbf16>
    %cst_15 = arith.constant dense<0.000000e+00> : vector<80x32xf32>
    %24 = tpu.matmul %21, %23, %cst_15 {dimension_numbers = #tpu.dot_dimension_numbers<[1], [0], [0], [1], [0, 0, 1, 1], [], []>} : vector<80x8xbf16>, vector<8x32xbf16>, vector<80x32xf32> -> vector<80x32xf32>
    %25 = vector.extract_strided_slice %14 {offsets = [8, 0], sizes = [80, 8], strides = [1, 1]} : vector<112x8xbf16> to vector<80x8xbf16>
    %c1 = arith.constant 1 : index
    %c0_16 = arith.constant 0 : index
    %c0_17 = arith.constant 0 : index
    %26 = vector.load %arg8[%c1, %c0_16, %c0_17] : memref<9x8x32xbf16, #tpu.memory_space<vmem>>, vector<1x8x32xbf16>
    %27 = vector.shape_cast %26 : vector<1x8x32xbf16> to vector<8x32xbf16>
    %cst_18 = arith.constant dense<0.000000e+00> : vector<80x32xf32>
    %28 = tpu.matmul %25, %27, %cst_18 {dimension_numbers = #tpu.dot_dimension_numbers<[1], [0], [0], [1], [0, 0, 1, 1], [], []>} : vector<80x8xbf16>, vector<8x32xbf16>, vector<80x32xf32> -> vector<80x32xf32>
    %29 = arith.addf %24, %28 : vector<80x32xf32>
    %30 = vector.extract_strided_slice %20 {offsets = [9, 0], sizes = [80, 8], strides = [1, 1]} : vector<112x8xbf16> to vector<80x8xbf16>
    %c2 = arith.constant 2 : index
    %c0_19 = arith.constant 0 : index
    %c0_20 = arith.constant 0 : index
    %31 = vector.load %arg8[%c2, %c0_19, %c0_20] : memref<9x8x32xbf16, #tpu.memory_space<vmem>>, vector<1x8x32xbf16>
    %32 = vector.shape_cast %31 : vector<1x8x32xbf16> to vector<8x32xbf16>
    %cst_21 = arith.constant dense<0.000000e+00> : vector<80x32xf32>
    %33 = tpu.matmul %30, %32, %cst_21 {dimension_numbers = #tpu.dot_dimension_numbers<[1], [0], [0], [1], [0, 0, 1, 1], [], []>} : vector<80x8xbf16>, vector<8x32xbf16>, vector<80x32xf32> -> vector<80x32xf32>
    %34 = arith.addf %29, %33 : vector<80x32xf32>
    %35 = vector.extract_strided_slice %18 {offsets = [15, 0], sizes = [80, 8], strides = [1, 1]} : vector<112x8xbf16> to vector<80x8xbf16>
    %c3 = arith.constant 3 : index
    %c0_22 = arith.constant 0 : index
    %c0_23 = arith.constant 0 : index
    %36 = vector.load %arg8[%c3, %c0_22, %c0_23] : memref<9x8x32xbf16, #tpu.memory_space<vmem>>, vector<1x8x32xbf16>
    %37 = vector.shape_cast %36 : vector<1x8x32xbf16> to vector<8x32xbf16>
    %cst_24 = arith.constant dense<0.000000e+00> : vector<80x32xf32>
    %38 = tpu.matmul %35, %37, %cst_24 {dimension_numbers = #tpu.dot_dimension_numbers<[1], [0], [0], [1], [0, 0, 1, 1], [], []>} : vector<80x8xbf16>, vector<8x32xbf16>, vector<80x32xf32> -> vector<80x32xf32>
    %39 = arith.addf %34, %38 : vector<80x32xf32>
    %40 = vector.extract_strided_slice %14 {offsets = [16, 0], sizes = [80, 8], strides = [1, 1]} : vector<112x8xbf16> to vector<80x8xbf16>
    %c4 = arith.constant 4 : index
    %c0_25 = arith.constant 0 : index
    %c0_26 = arith.constant 0 : index
    %41 = vector.load %arg8[%c4, %c0_25, %c0_26] : memref<9x8x32xbf16, #tpu.memory_space<vmem>>, vector<1x8x32xbf16>
    %42 = vector.shape_cast %41 : vector<1x8x32xbf16> to vector<8x32xbf16>
    %cst_27 = arith.constant dense<0.000000e+00> : vector<80x32xf32>
    %43 = tpu.matmul %40, %42, %cst_27 {dimension_numbers = #tpu.dot_dimension_numbers<[1], [0], [0], [1], [0, 0, 1, 1], [], []>} : vector<80x8xbf16>, vector<8x32xbf16>, vector<80x32xf32> -> vector<80x32xf32>
    %44 = arith.addf %39, %43 : vector<80x32xf32>
    %45 = vector.extract_strided_slice %20 {offsets = [17, 0], sizes = [80, 8], strides = [1, 1]} : vector<112x8xbf16> to vector<80x8xbf16>
    %c5 = arith.constant 5 : index
    %c0_28 = arith.constant 0 : index
    %c0_29 = arith.constant 0 : index
    %46 = vector.load %arg8[%c5, %c0_28, %c0_29] : memref<9x8x32xbf16, #tpu.memory_space<vmem>>, vector<1x8x32xbf16>
    %47 = vector.shape_cast %46 : vector<1x8x32xbf16> to vector<8x32xbf16>
    %cst_30 = arith.constant dense<0.000000e+00> : vector<80x32xf32>
    %48 = tpu.matmul %45, %47, %cst_30 {dimension_numbers = #tpu.dot_dimension_numbers<[1], [0], [0], [1], [0, 0, 1, 1], [], []>} : vector<80x8xbf16>, vector<8x32xbf16>, vector<80x32xf32> -> vector<80x32xf32>
    %49 = arith.addf %44, %48 : vector<80x32xf32>
    %50 = vector.extract_strided_slice %18 {offsets = [23, 0], sizes = [80, 8], strides = [1, 1]} : vector<112x8xbf16> to vector<80x8xbf16>
    %c6 = arith.constant 6 : index
    %c0_31 = arith.constant 0 : index
    %c0_32 = arith.constant 0 : index
    %51 = vector.load %arg8[%c6, %c0_31, %c0_32] : memref<9x8x32xbf16, #tpu.memory_space<vmem>>, vector<1x8x32xbf16>
    %52 = vector.shape_cast %51 : vector<1x8x32xbf16> to vector<8x32xbf16>
    %cst_33 = arith.constant dense<0.000000e+00> : vector<80x32xf32>
    %53 = tpu.matmul %50, %52, %cst_33 {dimension_numbers = #tpu.dot_dimension_numbers<[1], [0], [0], [1], [0, 0, 1, 1], [], []>} : vector<80x8xbf16>, vector<8x32xbf16>, vector<80x32xf32> -> vector<80x32xf32>
    %54 = arith.addf %49, %53 : vector<80x32xf32>
    %55 = vector.extract_strided_slice %14 {offsets = [24, 0], sizes = [80, 8], strides = [1, 1]} : vector<112x8xbf16> to vector<80x8xbf16>
    %c7 = arith.constant 7 : index
    %c0_34 = arith.constant 0 : index
    %c0_35 = arith.constant 0 : index
    %56 = vector.load %arg8[%c7, %c0_34, %c0_35] : memref<9x8x32xbf16, #tpu.memory_space<vmem>>, vector<1x8x32xbf16>
    %57 = vector.shape_cast %56 : vector<1x8x32xbf16> to vector<8x32xbf16>
    %cst_36 = arith.constant dense<0.000000e+00> : vector<80x32xf32>
    %58 = tpu.matmul %55, %57, %cst_36 {dimension_numbers = #tpu.dot_dimension_numbers<[1], [0], [0], [1], [0, 0, 1, 1], [], []>} : vector<80x8xbf16>, vector<8x32xbf16>, vector<80x32xf32> -> vector<80x32xf32>
    %59 = arith.addf %54, %58 : vector<80x32xf32>
    %60 = vector.extract_strided_slice %20 {offsets = [25, 0], sizes = [80, 8], strides = [1, 1]} : vector<112x8xbf16> to vector<80x8xbf16>
    %c8 = arith.constant 8 : index
    %c0_37 = arith.constant 0 : index
    %c0_38 = arith.constant 0 : index
    %61 = vector.load %arg8[%c8, %c0_37, %c0_38] : memref<9x8x32xbf16, #tpu.memory_space<vmem>>, vector<1x8x32xbf16>
    %62 = vector.shape_cast %61 : vector<1x8x32xbf16> to vector<8x32xbf16>
    %cst_39 = arith.constant dense<0.000000e+00> : vector<80x32xf32>
    %63 = tpu.matmul %60, %62, %cst_39 {dimension_numbers = #tpu.dot_dimension_numbers<[1], [0], [0], [1], [0, 0, 1, 1], [], []>} : vector<80x8xbf16>, vector<8x32xbf16>, vector<80x32xf32> -> vector<80x32xf32>
    %64 = arith.addf %59, %63 : vector<80x32xf32>
    %c0_40 = arith.constant 0 : index
    %c0_41 = arith.constant 0 : index
    %65 = vector.load %arg9[%c0_40, %c0_41] : memref<1x32xf32, #tpu.memory_space<vmem>>, vector<1x32xf32>
    %66 = vector.broadcast %65 : vector<1x32xf32> to vector<80x32xf32>
    %67 = arith.addf %64, %66 : vector<80x32xf32>
    %cst_42 = arith.constant 0.000000e+00 : f32
    %68 = vector.broadcast %cst_42 : f32 to vector<80x32xf32>
    %69 = arith.maximumf %67, %68 : vector<80x32xf32>
    %70 = arith.truncf %69 : vector<80x32xf32> to vector<80x32xbf16>
    %c0_43 = arith.constant 0 : index
    %c0_44 = arith.constant 0 : index
    %71 = vector.load %arg10[%c0_43, %c0_44] : memref<32x32xbf16, #tpu.memory_space<vmem>>, vector<32x32xbf16>
    %cst_45 = arith.constant dense<0.000000e+00> : vector<80x32xf32>
    %72 = tpu.matmul %70, %71, %cst_45 {dimension_numbers = #tpu.dot_dimension_numbers<[1], [0], [0], [1], [0, 0, 1, 1], [], []>} : vector<80x32xbf16>, vector<32x32xbf16>, vector<80x32xf32> -> vector<80x32xf32>
    %c0_46 = arith.constant 0 : index
    %c0_47 = arith.constant 0 : index
    %73 = vector.load %arg11[%c0_46, %c0_47] : memref<1x32xf32, #tpu.memory_space<vmem>>, vector<1x32xf32>
    %74 = vector.broadcast %73 : vector<1x32xf32> to vector<80x32xf32>
    %75 = arith.addf %72, %74 : vector<80x32xf32>
    %cst_48 = arith.constant 0.000000e+00 : f32
    %76 = vector.broadcast %cst_48 : f32 to vector<80x32xf32>
    %77 = arith.maximumf %75, %76 : vector<80x32xf32>
    %cst_49 = arith.constant 0.000000e+00 : bf16
    %78 = vector.broadcast %cst_49 : bf16 to vector<16x32xbf16>
    %c0_50 = arith.constant 0 : index
    %c0_51 = arith.constant 0 : index
    %79 = vector.load %arg6[%c0_50, %c0_51] : memref<80x1xf32, #tpu.memory_space<vmem>>, vector<80x1xf32>
    %80 = vector.broadcast %79 : vector<80x1xf32> to vector<80x32xf32>
    %81 = arith.mulf %77, %80 : vector<80x32xf32>
    %82 = arith.truncf %81 : vector<80x32xf32> to vector<80x32xbf16>
    %83 = tpu.concatenate %78, %82, %78 in 0 : vector<16x32xbf16>, vector<80x32xbf16>, vector<16x32xbf16> -> vector<112x32xbf16>
    %84 = vector.broadcast %15 : vector<112x1xbf16> to vector<112x32xbf16>
    %85 = arith.mulf %83, %84 : vector<112x32xbf16>
    %86 = vector.broadcast %16 : vector<112x1xbf16> to vector<112x32xbf16>
    %87 = arith.mulf %83, %86 : vector<112x32xbf16>
    %88 = vector.extract_strided_slice %85 {offsets = [7, 0], sizes = [80, 32], strides = [1, 1]} : vector<112x32xbf16> to vector<80x32xbf16>
    %c0_52 = arith.constant 0 : index
    %c0_53 = arith.constant 0 : index
    %c0_54 = arith.constant 0 : index
    %89 = vector.load %arg12[%c0_52, %c0_53, %c0_54] : memref<9x32x16xbf16, #tpu.memory_space<vmem>>, vector<1x32x16xbf16>
    %90 = vector.shape_cast %89 : vector<1x32x16xbf16> to vector<32x16xbf16>
    %cst_55 = arith.constant dense<0.000000e+00> : vector<80x16xf32>
    %91 = tpu.matmul %88, %90, %cst_55 {dimension_numbers = #tpu.dot_dimension_numbers<[1], [0], [0], [1], [0, 0, 1, 1], [], []>} : vector<80x32xbf16>, vector<32x16xbf16>, vector<80x16xf32> -> vector<80x16xf32>
    %92 = vector.extract_strided_slice %83 {offsets = [8, 0], sizes = [80, 32], strides = [1, 1]} : vector<112x32xbf16> to vector<80x32xbf16>
    %c1_56 = arith.constant 1 : index
    %c0_57 = arith.constant 0 : index
    %c0_58 = arith.constant 0 : index
    %93 = vector.load %arg12[%c1_56, %c0_57, %c0_58] : memref<9x32x16xbf16, #tpu.memory_space<vmem>>, vector<1x32x16xbf16>
    %94 = vector.shape_cast %93 : vector<1x32x16xbf16> to vector<32x16xbf16>
    %cst_59 = arith.constant dense<0.000000e+00> : vector<80x16xf32>
    %95 = tpu.matmul %92, %94, %cst_59 {dimension_numbers = #tpu.dot_dimension_numbers<[1], [0], [0], [1], [0, 0, 1, 1], [], []>} : vector<80x32xbf16>, vector<32x16xbf16>, vector<80x16xf32> -> vector<80x16xf32>
    %96 = arith.addf %91, %95 : vector<80x16xf32>
    %97 = vector.extract_strided_slice %87 {offsets = [9, 0], sizes = [80, 32], strides = [1, 1]} : vector<112x32xbf16> to vector<80x32xbf16>
    %c2_60 = arith.constant 2 : index
    %c0_61 = arith.constant 0 : index
    %c0_62 = arith.constant 0 : index
    %98 = vector.load %arg12[%c2_60, %c0_61, %c0_62] : memref<9x32x16xbf16, #tpu.memory_space<vmem>>, vector<1x32x16xbf16>
    %99 = vector.shape_cast %98 : vector<1x32x16xbf16> to vector<32x16xbf16>
    %cst_63 = arith.constant dense<0.000000e+00> : vector<80x16xf32>
    %100 = tpu.matmul %97, %99, %cst_63 {dimension_numbers = #tpu.dot_dimension_numbers<[1], [0], [0], [1], [0, 0, 1, 1], [], []>} : vector<80x32xbf16>, vector<32x16xbf16>, vector<80x16xf32> -> vector<80x16xf32>
    %101 = arith.addf %96, %100 : vector<80x16xf32>
    %102 = vector.extract_strided_slice %85 {offsets = [15, 0], sizes = [80, 32], strides = [1, 1]} : vector<112x32xbf16> to vector<80x32xbf16>
    %c3_64 = arith.constant 3 : index
    %c0_65 = arith.constant 0 : index
    %c0_66 = arith.constant 0 : index
    %103 = vector.load %arg12[%c3_64, %c0_65, %c0_66] : memref<9x32x16xbf16, #tpu.memory_space<vmem>>, vector<1x32x16xbf16>
    %104 = vector.shape_cast %103 : vector<1x32x16xbf16> to vector<32x16xbf16>
    %cst_67 = arith.constant dense<0.000000e+00> : vector<80x16xf32>
    %105 = tpu.matmul %102, %104, %cst_67 {dimension_numbers = #tpu.dot_dimension_numbers<[1], [0], [0], [1], [0, 0, 1, 1], [], []>} : vector<80x32xbf16>, vector<32x16xbf16>, vector<80x16xf32> -> vector<80x16xf32>
    %106 = arith.addf %101, %105 : vector<80x16xf32>
    %107 = vector.extract_strided_slice %83 {offsets = [16, 0], sizes = [80, 32], strides = [1, 1]} : vector<112x32xbf16> to vector<80x32xbf16>
    %c4_68 = arith.constant 4 : index
    %c0_69 = arith.constant 0 : index
    %c0_70 = arith.constant 0 : index
    %108 = vector.load %arg12[%c4_68, %c0_69, %c0_70] : memref<9x32x16xbf16, #tpu.memory_space<vmem>>, vector<1x32x16xbf16>
    %109 = vector.shape_cast %108 : vector<1x32x16xbf16> to vector<32x16xbf16>
    %cst_71 = arith.constant dense<0.000000e+00> : vector<80x16xf32>
    %110 = tpu.matmul %107, %109, %cst_71 {dimension_numbers = #tpu.dot_dimension_numbers<[1], [0], [0], [1], [0, 0, 1, 1], [], []>} : vector<80x32xbf16>, vector<32x16xbf16>, vector<80x16xf32> -> vector<80x16xf32>
    %111 = arith.addf %106, %110 : vector<80x16xf32>
    %112 = vector.extract_strided_slice %87 {offsets = [17, 0], sizes = [80, 32], strides = [1, 1]} : vector<112x32xbf16> to vector<80x32xbf16>
    %c5_72 = arith.constant 5 : index
    %c0_73 = arith.constant 0 : index
    %c0_74 = arith.constant 0 : index
    %113 = vector.load %arg12[%c5_72, %c0_73, %c0_74] : memref<9x32x16xbf16, #tpu.memory_space<vmem>>, vector<1x32x16xbf16>
    %114 = vector.shape_cast %113 : vector<1x32x16xbf16> to vector<32x16xbf16>
    %cst_75 = arith.constant dense<0.000000e+00> : vector<80x16xf32>
    %115 = tpu.matmul %112, %114, %cst_75 {dimension_numbers = #tpu.dot_dimension_numbers<[1], [0], [0], [1], [0, 0, 1, 1], [], []>} : vector<80x32xbf16>, vector<32x16xbf16>, vector<80x16xf32> -> vector<80x16xf32>
    %116 = arith.addf %111, %115 : vector<80x16xf32>
    %117 = vector.extract_strided_slice %85 {offsets = [23, 0], sizes = [80, 32], strides = [1, 1]} : vector<112x32xbf16> to vector<80x32xbf16>
    %c6_76 = arith.constant 6 : index
    %c0_77 = arith.constant 0 : index
    %c0_78 = arith.constant 0 : index
    %118 = vector.load %arg12[%c6_76, %c0_77, %c0_78] : memref<9x32x16xbf16, #tpu.memory_space<vmem>>, vector<1x32x16xbf16>
    %119 = vector.shape_cast %118 : vector<1x32x16xbf16> to vector<32x16xbf16>
    %cst_79 = arith.constant dense<0.000000e+00> : vector<80x16xf32>
    %120 = tpu.matmul %117, %119, %cst_79 {dimension_numbers = #tpu.dot_dimension_numbers<[1], [0], [0], [1], [0, 0, 1, 1], [], []>} : vector<80x32xbf16>, vector<32x16xbf16>, vector<80x16xf32> -> vector<80x16xf32>
    %121 = arith.addf %116, %120 : vector<80x16xf32>
    %122 = vector.extract_strided_slice %83 {offsets = [24, 0], sizes = [80, 32], strides = [1, 1]} : vector<112x32xbf16> to vector<80x32xbf16>
    %c7_80 = arith.constant 7 : index
    %c0_81 = arith.constant 0 : index
    %c0_82 = arith.constant 0 : index
    %123 = vector.load %arg12[%c7_80, %c0_81, %c0_82] : memref<9x32x16xbf16, #tpu.memory_space<vmem>>, vector<1x32x16xbf16>
    %124 = vector.shape_cast %123 : vector<1x32x16xbf16> to vector<32x16xbf16>
    %cst_83 = arith.constant dense<0.000000e+00> : vector<80x16xf32>
    %125 = tpu.matmul %122, %124, %cst_83 {dimension_numbers = #tpu.dot_dimension_numbers<[1], [0], [0], [1], [0, 0, 1, 1], [], []>} : vector<80x32xbf16>, vector<32x16xbf16>, vector<80x16xf32> -> vector<80x16xf32>
    %126 = arith.addf %121, %125 : vector<80x16xf32>
    %127 = vector.extract_strided_slice %87 {offsets = [25, 0], sizes = [80, 32], strides = [1, 1]} : vector<112x32xbf16> to vector<80x32xbf16>
    %c8_84 = arith.constant 8 : index
    %c0_85 = arith.constant 0 : index
    %c0_86 = arith.constant 0 : index
    %128 = vector.load %arg12[%c8_84, %c0_85, %c0_86] : memref<9x32x16xbf16, #tpu.memory_space<vmem>>, vector<1x32x16xbf16>
    %129 = vector.shape_cast %128 : vector<1x32x16xbf16> to vector<32x16xbf16>
    %cst_87 = arith.constant dense<0.000000e+00> : vector<80x16xf32>
    %130 = tpu.matmul %127, %129, %cst_87 {dimension_numbers = #tpu.dot_dimension_numbers<[1], [0], [0], [1], [0, 0, 1, 1], [], []>} : vector<80x32xbf16>, vector<32x16xbf16>, vector<80x16xf32> -> vector<80x16xf32>
    %131 = arith.addf %126, %130 : vector<80x16xf32>
    %c0_88 = arith.constant 0 : index
    %c0_89 = arith.constant 0 : index
    %132 = vector.load %arg13[%c0_88, %c0_89] : memref<1x16xf32, #tpu.memory_space<vmem>>, vector<1x16xf32>
    %133 = vector.broadcast %132 : vector<1x16xf32> to vector<80x16xf32>
    %134 = arith.addf %131, %133 : vector<80x16xf32>
    %135 = vector.extract_strided_slice %134 {offsets = [0, 0], sizes = [80, 8], strides = [1, 1]} : vector<80x16xf32> to vector<80x8xf32>
    %cst_90 = arith.constant 2.000000e+00 : f32
    %136 = vector.broadcast %cst_90 : f32 to vector<80x8xf32>
    %137 = arith.addf %135, %136 : vector<80x8xf32>
    %138 = vector.extract_strided_slice %134 {offsets = [0, 8], sizes = [80, 8], strides = [1, 1]} : vector<80x16xf32> to vector<80x8xf32>
    %cst_91 = arith.constant 0.000000e+00 : f32
    %139 = vector.broadcast %cst_91 : f32 to vector<80x8xf32>
    %140 = arith.minimumf %137, %139 : vector<80x8xf32>
    %141 = math.absf %137 : vector<80x8xf32>
    %cst_92 = arith.constant 0.000000e+00 : f32
    %142 = vector.broadcast %cst_92 : f32 to vector<80x8xf32>
    %143 = arith.subf %142, %141 : vector<80x8xf32>
    %144 = math.exp %143 : vector<80x8xf32>
    %cst_93 = arith.constant 1.000000e+00 : f32
    %145 = vector.broadcast %cst_93 : f32 to vector<80x8xf32>
    %146 = arith.addf %145, %144 : vector<80x8xf32>
    %147 = math.log %146 : vector<80x8xf32>
    %148 = arith.subf %140, %147 : vector<80x8xf32>
    %149 = math.exp %148 : vector<80x8xf32>
    %c0_94 = arith.constant 0 : index
    %c0_95 = arith.constant 0 : index
    %150 = vector.load %arg14[%c0_94, %c0_95] : memref<1x16xf32, #tpu.memory_space<vmem>>, vector<1x16xf32>
    %c0_96 = arith.constant 0 : index
    %c0_97 = arith.constant 0 : index
    %151 = vector.load %arg15[%c0_96, %c0_97] : memref<1x16xf32, #tpu.memory_space<vmem>>, vector<1x16xf32>
    %152 = vector.extract_strided_slice %10 {offsets = [0, 0], sizes = [80, 8], strides = [1, 1]} : vector<80x16xf32> to vector<80x8xf32>
    %153 = vector.extract_strided_slice %150 {offsets = [0, 0], sizes = [1, 8], strides = [1, 1]} : vector<1x16xf32> to vector<1x8xf32>
    %154 = vector.broadcast %153 : vector<1x8xf32> to vector<80x8xf32>
    %155 = arith.subf %152, %154 : vector<80x8xf32>
    %156 = vector.extract_strided_slice %151 {offsets = [0, 0], sizes = [1, 8], strides = [1, 1]} : vector<1x16xf32> to vector<1x8xf32>
    %157 = vector.broadcast %156 : vector<1x8xf32> to vector<80x8xf32>
    %158 = arith.mulf %155, %157 : vector<80x8xf32>
    %159 = vector.extract_strided_slice %10 {offsets = [0, 8], sizes = [80, 8], strides = [1, 1]} : vector<80x16xf32> to vector<80x8xf32>
    %160 = arith.addf %159, %138 : vector<80x8xf32>
    %161 = arith.mulf %160, %149 : vector<80x8xf32>
    %162 = vector.extract_strided_slice %150 {offsets = [0, 8], sizes = [1, 8], strides = [1, 1]} : vector<1x16xf32> to vector<1x8xf32>
    %163 = vector.broadcast %162 : vector<1x8xf32> to vector<80x8xf32>
    %164 = arith.subf %161, %163 : vector<80x8xf32>
    %165 = vector.extract_strided_slice %151 {offsets = [0, 8], sizes = [1, 8], strides = [1, 1]} : vector<1x16xf32> to vector<1x8xf32>
    %166 = vector.broadcast %165 : vector<1x8xf32> to vector<80x8xf32>
    %167 = arith.mulf %164, %166 : vector<80x8xf32>
    %168 = vector.extract_strided_slice %158 {offsets = [0, 0], sizes = [64, 8], strides = [1, 1]} : vector<80x8xf32> to vector<64x8xf32>
    %c0_98 = arith.constant 0 : index
    %c0_99 = arith.constant 0 : index
    %c0_100 = arith.constant 0 : index
    %169 = vector.load %arg16[%c0_98, %c0_99, %c0_100] : memref<1x64x16xf32, #tpu.memory_space<vmem>>, vector<1x64x8xf32>
    %170 = vector.shape_cast %169 : vector<1x64x8xf32> to vector<64x8xf32>
    %171 = vector.shape_cast %168 : vector<64x8xf32> to vector<1x64x8xf32>
    tpu.vector_store %arg16[%c0_98, %c0_99, %c0_100], %171 {strides = array<i32>} : memref<1x64x16xf32, #tpu.memory_space<vmem>>, vector<1x64x8xf32>,
    %172 = vector.extract_strided_slice %167 {offsets = [0, 0], sizes = [64, 8], strides = [1, 1]} : vector<80x8xf32> to vector<64x8xf32>
    %c0_101 = arith.constant 0 : index
    %c0_102 = arith.constant 0 : index
    %c8_103 = arith.constant 8 : index
    %173 = vector.load %arg16[%c0_101, %c0_102, %c8_103] : memref<1x64x16xf32, #tpu.memory_space<vmem>>, vector<1x64x8xf32>
    %174 = vector.shape_cast %173 : vector<1x64x8xf32> to vector<64x8xf32>
    %175 = vector.shape_cast %172 : vector<64x8xf32> to vector<1x64x8xf32>
    tpu.vector_store %arg16[%c0_101, %c0_102, %c8_103], %175 {strides = array<i32>} : memref<1x64x16xf32, #tpu.memory_space<vmem>>, vector<1x64x8xf32>,
    %cst_104 = arith.constant dense<0.000000e+00> : vector<80xf32>
    %176 = vector.multi_reduction <add>, %148, %cst_104 [1] : vector<80x8xf32> to vector<80xf32>
    %177 = vector.shape_cast %176 : vector<80xf32> to vector<80x1xf32>
    %c0_105 = arith.constant 0 : index
    %c0_106 = arith.constant 0 : index
    %178 = vector.load %arg7[%c0_105, %c0_106] : memref<1x80xf32, #tpu.memory_space<vmem>>, vector<1x80xf32>
    %cst_107 = arith.constant dense<0.000000e+00> : vector<1x1xf32>
    %179 = tpu.matmul %178, %177, %cst_107 {dimension_numbers = #tpu.dot_dimension_numbers<[1], [0], [0], [1], [0, 0, 1, 1], [], []>} : vector<1x80xf32>, vector<80x1xf32>, vector<1x1xf32> -> vector<1x1xf32>
    %180 = vector.shape_cast %179 : vector<1x1xf32> to vector<1x1x1xf32>
    %c0_108 = arith.constant 0 : index
    %c0_109 = arith.constant 0 : index
    %c0_110 = arith.constant 0 : index
    %181 = vector.load %arg17[%c0_108, %c0_109, %c0_110] : memref<1x1x1xf32, #tpu.memory_space<vmem>>, vector<1x1x1xf32>
    tpu.vector_store %arg17[%c0_108, %c0_109, %c0_110], %180 {strides = array<i32>} : memref<1x1x1xf32, #tpu.memory_space<vmem>>, vector<1x1x1xf32>,
    return
  }
  func.func @transform_0(%arg0: i32) -> (i32, i32, i32) {
    %c0_i32 = arith.constant 0 : i32
    %c0_i32_0 = arith.constant 0 : i32
    %c0_i32_1 = arith.constant 0 : i32
    return %arg0, %c0_i32, %c0_i32_0 : i32, i32, i32
  }
  func.func @transform_1(%arg0: i32) -> (i32, i32) {
    %c0_i32 = arith.constant 0 : i32
    %c0_i32_0 = arith.constant 0 : i32
    %c0_i32_1 = arith.constant 0 : i32
    return %c0_i32, %c0_i32_0 : i32, i32
  }
  func.func @transform_2(%arg0: i32) -> (i32, i32) {
    %c0_i32 = arith.constant 0 : i32
    %c0_i32_0 = arith.constant 0 : i32
    %c0_i32_1 = arith.constant 0 : i32
    return %c0_i32, %c0_i32_0 : i32, i32
  }
  func.func @transform_3(%arg0: i32) -> (i32, i32) {
    %c0_i32 = arith.constant 0 : i32
    %c0_i32_0 = arith.constant 0 : i32
    %c0_i32_1 = arith.constant 0 : i32
    return %c0_i32, %c0_i32_0 : i32, i32
  }
  func.func @transform_4(%arg0: i32) -> (i32, i32) {
    %c0_i32 = arith.constant 0 : i32
    %c0_i32_0 = arith.constant 0 : i32
    %c0_i32_1 = arith.constant 0 : i32
    return %c0_i32, %c0_i32_0 : i32, i32
  }
  func.func @transform_5(%arg0: i32) -> (i32, i32) {
    %c0_i32 = arith.constant 0 : i32
    %c0_i32_0 = arith.constant 0 : i32
    %c0_i32_1 = arith.constant 0 : i32
    return %c0_i32, %c0_i32_0 : i32, i32
  }
  func.func @transform_6(%arg0: i32) -> (i32, i32) {
    %c0_i32 = arith.constant 0 : i32
    %c0_i32_0 = arith.constant 0 : i32
    %c0_i32_1 = arith.constant 0 : i32
    return %c0_i32, %c0_i32_0 : i32, i32
  }
  func.func @transform_7(%arg0: i32) -> (i32, i32, i32) {
    %c0_i32 = arith.constant 0 : i32
    %c0_i32_0 = arith.constant 0 : i32
    %c0_i32_1 = arith.constant 0 : i32
    %c0_i32_2 = arith.constant 0 : i32
    return %c0_i32, %c0_i32_0, %c0_i32_1 : i32, i32, i32
  }
  func.func @transform_8(%arg0: i32) -> (i32, i32) {
    %c0_i32 = arith.constant 0 : i32
    %c0_i32_0 = arith.constant 0 : i32
    %c0_i32_1 = arith.constant 0 : i32
    return %c0_i32, %c0_i32_0 : i32, i32
  }
  func.func @transform_9(%arg0: i32) -> (i32, i32) {
    %c0_i32 = arith.constant 0 : i32
    %c0_i32_0 = arith.constant 0 : i32
    %c0_i32_1 = arith.constant 0 : i32
    return %c0_i32, %c0_i32_0 : i32, i32
  }
  func.func @transform_10(%arg0: i32) -> (i32, i32) {
    %c0_i32 = arith.constant 0 : i32
    %c0_i32_0 = arith.constant 0 : i32
    %c0_i32_1 = arith.constant 0 : i32
    return %c0_i32, %c0_i32_0 : i32, i32
  }
  func.func @transform_11(%arg0: i32) -> (i32, i32, i32) {
    %c0_i32 = arith.constant 0 : i32
    %c0_i32_0 = arith.constant 0 : i32
    %c0_i32_1 = arith.constant 0 : i32
    %c0_i32_2 = arith.constant 0 : i32
    return %c0_i32, %c0_i32_0, %c0_i32_1 : i32, i32, i32
  }
  func.func @transform_12(%arg0: i32) -> (i32, i32) {
    %c0_i32 = arith.constant 0 : i32
    %c0_i32_0 = arith.constant 0 : i32
    %c0_i32_1 = arith.constant 0 : i32
    return %c0_i32, %c0_i32_0 : i32, i32
  }
  func.func @transform_13(%arg0: i32) -> (i32, i32) {
    %c0_i32 = arith.constant 0 : i32
    %c0_i32_0 = arith.constant 0 : i32
    %c0_i32_1 = arith.constant 0 : i32
    return %c0_i32, %c0_i32_0 : i32, i32
  }
  func.func @transform_14(%arg0: i32) -> (i32, i32) {
    %c0_i32 = arith.constant 0 : i32
    %c0_i32_0 = arith.constant 0 : i32
    %c0_i32_1 = arith.constant 0 : i32
    return %c0_i32, %c0_i32_0 : i32, i32
  }
  func.func @transform_15(%arg0: i32) -> (i32, i32, i32) {
    %c0_i32 = arith.constant 0 : i32
    %c0_i32_0 = arith.constant 0 : i32
    %c0_i32_1 = arith.constant 0 : i32
    return %arg0, %c0_i32, %c0_i32_0 : i32, i32, i32
  }
  func.func @transform_16(%arg0: i32) -> (i32, i32, i32) {
    %c0_i32 = arith.constant 0 : i32
    %c0_i32_0 = arith.constant 0 : i32
    %c0_i32_1 = arith.constant 0 : i32
    return %arg0, %c0_i32, %c0_i32_0 : i32, i32, i32
  }
}

</mosaic_0001>

<llo_original>
// kernel: tpu_custom_call.1
$region0: #{tpu_custom_call.1}
  #allocation0 [shape = 'u32[]', space=smem, size = 0x4, offset = 0x4, fixed_abs, tag = 'smem constant byte address 0x4 - core index']
  #allocation1 [shape = 'u32[144,128]{1,0:T(1,128)}', space=vmem, size = 0x12000, scoped, tag = 'internal scratch']
  %s0 = inlined_call_operand.vmem [shape: f32[2,64,16], index: 0, kind: input, shape index: {}]
  %s1 = inlined_call_operand.vmem [shape: f32[16,16], index: 1, kind: input, shape index: {}]
  %s2 = inlined_call_operand.vmem [shape: f32[1,16], index: 2, kind: input, shape index: {}]
  %s3 = inlined_call_operand.vmem [shape: bf16[112,1], index: 3, kind: input, shape index: {}]
  %s4 = inlined_call_operand.vmem [shape: bf16[112,1], index: 4, kind: input, shape index: {}]
  %s5 = inlined_call_operand.vmem [shape: f32[80,1], index: 5, kind: input, shape index: {}]
  %s6 = inlined_call_operand.vmem [shape: f32[1,80], index: 6, kind: input, shape index: {}]
  %s7 = inlined_call_operand.vmem [shape: bf16[9,8,32], index: 7, kind: input, shape index: {}]
  %s8 = inlined_call_operand.vmem [shape: f32[1,32], index: 8, kind: input, shape index: {}]
  %s9 = inlined_call_operand.vmem [shape: bf16[32,32], index: 9, kind: input, shape index: {}]
  %s10 = inlined_call_operand.vmem [shape: f32[1,32], index: 10, kind: input, shape index: {}]
  %s11 = inlined_call_operand.vmem [shape: bf16[9,32,16], index: 11, kind: input, shape index: {}]
  %s12 = inlined_call_operand.vmem [shape: f32[1,16], index: 12, kind: input, shape index: {}]
  %s13 = inlined_call_operand.vmem [shape: f32[1,16], index: 13, kind: input, shape index: {}]
  %s14 = inlined_call_operand.vmem [shape: f32[1,16], index: 14, kind: input, shape index: {}]
  %s15 = inlined_call_operand.vmem [shape: f32[2,64,16], index: 15, kind: output, shape index: {0}]
  %s16 = inlined_call_operand.vmem [shape: f32[2,1,1], index: 16, kind: output, shape index: {1}]
  %17 = xla_tuple %s15, %s16
  %s18 = sld [smem:[#allocation0]]
  $region101: #{tpu_custom_call.1} parent=0
    _
  %s20 = ssub.s32 1, %s18
  %s21 = scalar_select 0, %s20, %s18
  loop: start=0, step=1, limit=4
  $region2: #{tpu_custom_call.1} parent=0 // loop_pre_header
    _
  $region3: #{tpu_custom_call.1} parent=0 // loop_header
    %s23 = sphi 0, %s27
    %p24 = scmp.ge.s32.totalorder %s23, 4
    %s33 = sphi 0, %s35
    %s36 = sphi 0, %s33
    %s37 = sphi 0, %s36
    %s53 = sphi 0, %s37
    %s57 = sphi 0, %s57
    %s59 = sphi 0, %s57
    %s60 = sphi 0, %s59
    %s74 = sphi 0, %s60
    %s78 = sphi 0, %s78
    %s80 = sphi 0, %s78
    %s81 = sphi 0, %s80
    %s95 = sphi 0, %s81
    %s99 = sphi 0, %s99
    %s101 = sphi 0, %s99
    %s102 = sphi 0, %s101
    %s116 = sphi 0, %s102
    %s120 = sphi 0, %s120
    %s122 = sphi 0, %s120
    %s123 = sphi 0, %s122
    %s137 = sphi 0, %s123
    %s141 = sphi 0, %s141
    %s143 = sphi 0, %s141
    %s144 = sphi 0, %s143
    %s158 = sphi 0, %s144
    %s162 = sphi 0, %s162
    %s164 = sphi 0, %s162
    %s165 = sphi 0, %s164
    %s179 = sphi 0, %s165
    %s183 = sphi 0, %s183
    %s185 = sphi 0, %s183
    %s186 = sphi 0, %s185
    %s200 = sphi 0, %s186
    %s204 = sphi 0, %s204
    %s206 = sphi 0, %s204
    %s207 = sphi 0, %s206
    %s221 = sphi 0, %s207
    %s225 = sphi 0, %s225
    %s227 = sphi 0, %s225
    %s228 = sphi 0, %s227
    %s242 = sphi 0, %s228
    %s246 = sphi 0, %s246
    %s248 = sphi 0, %s246
    %s249 = sphi 0, %s248
    %s263 = sphi 0, %s249
    %s267 = sphi 0, %s267
    %s269 = sphi 0, %s267
    %s270 = sphi 0, %s269
    %s284 = sphi 0, %s270
    %s288 = sphi 0, %s288
    %s290 = sphi 0, %s288
    %s291 = sphi 0, %s290
    %s305 = sphi 0, %s291
    %s309 = sphi 0, %s309
    %s311 = sphi 0, %s309
    %s312 = sphi 0, %s311
    %s326 = sphi 0, %s312
    %s330 = sphi 0, %s330
    %s332 = sphi 0, %s330
    %s333 = sphi 0, %s332
    %s347 = sphi 0, %s333
    %s353 = sphi 0, %s355
    %s356 = sphi 0, %s353
    %s357 = sphi 0, %s356
    %s373 = sphi 0, %s357
    %s379 = sphi 0, %s381
    %s382 = sphi 0, %s379
    %s383 = sphi 0, %s382
    %s399 = sphi 0, %s383
  $region4: #{tpu_custom_call.1} parent=0 // loop_header_branch
    %26 = sbr.rel (%p24) target = $region8
  $region5: #{tpu_custom_call.1} parent=0 // loop_body
    %s28 = ssub.s32 %s23, 1
    %s29 = ssub.s32 %s23, 2
    %s30 = sadd.s32 %s23, 1
    %s31 = ssub.s32 %s23, %s30
    %p32 = scmp.eq.s32.totalorder %s31, 0
    %s34 = sadd.s32 %s33, 1
    %s35 = scalar_select %p32, %s33, %s34
    %p38 = pneg %p32
    %p39 = scmp.eq.s32.totalorder %s23, 1
    %p40 = por %p38, %p39
    %p41 = scmp.ne.s32.totalorder %s33, %s36
    %p42 = scmp.eq.s32.totalorder %s23, 0
    %p43 = por %p41, %p42
    %p44 = scmp.ne.s32.totalorder %s33, %s36
    %p45 = scmp.eq.s32.totalorder %s28, 1
    %p46 = por %p44, %p45
    %p47 = scmp.ne.s32.totalorder %s36, %s37
    %p48 = scmp.eq.s32.totalorder %s28, 0
    %p49 = por %p47, %p48
    %p50 = scmp.ne.s32.totalorder %s36, %s37
    %p51 = scmp.eq.s32.totalorder %s29, 1
    %p52 = por %p50, %p51
    %p54 = scmp.ne.s32.totalorder %s37, %s53
    %p55 = scmp.eq.s32.totalorder %s29, 0
    %p56 = por %p54, %p55
    %s58 = sadd.s32 %s57, 1
    %p61 = scmp.eq.s32.totalorder %s23, 1
    %p62 = scmp.ne.s32.totalorder %s57, %s59
    %p63 = scmp.eq.s32.totalorder %s23, 0
    %p64 = por %p62, %p63
    %p65 = scmp.ne.s32.totalorder %s57, %s59
    %p66 = scmp.eq.s32.totalorder %s28, 1
    %p67 = por %p65, %p66
    %p68 = scmp.ne.s32.totalorder %s59, %s60
    %p69 = scmp.eq.s32.totalorder %s28, 0
    %p70 = por %p68, %p69
    %p71 = scmp.ne.s32.totalorder %s59, %s60
    %p72 = scmp.eq.s32.totalorder %s29, 1
    %p73 = por %p71, %p72
    %p75 = scmp.ne.s32.totalorder %s60, %s74
    %p76 = scmp.eq.s32.totalorder %s29, 0
    %p77 = por %p75, %p76
    %s79 = sadd.s32 %s78, 1
    %p82 = scmp.eq.s32.totalorder %s23, 1
    %p83 = scmp.ne.s32.totalorder %s78, %s80
    %p84 = scmp.eq.s32.totalorder %s23, 0
    %p85 = por %p83, %p84
    %p86 = scmp.ne.s32.totalorder %s78, %s80
    %p87 = scmp.eq.s32.totalorder %s28, 1
    %p88 = por %p86, %p87
    %p89 = scmp.ne.s32.totalorder %s80, %s81
    %p90 = scmp.eq.s32.totalorder %s28, 0
    %p91 = por %p89, %p90
    %p92 = scmp.ne.s32.totalorder %s80, %s81
    %p93 = scmp.eq.s32.totalorder %s29, 1
    %p94 = por %p92, %p93
    %p96 = scmp.ne.s32.totalorder %s81, %s95
    %p97 = scmp.eq.s32.totalorder %s29, 0
    %p98 = por %p96, %p97
    %s100 = sadd.s32 %s99, 1
    %p103 = scmp.eq.s32.totalorder %s23, 1
    %p104 = scmp.ne.s32.totalorder %s99, %s101
    %p105 = scmp.eq.s32.totalorder %s23, 0
    %p106 = por %p104, %p105
    %p107 = scmp.ne.s32.totalorder %s99, %s101
    %p108 = scmp.eq.s32.totalorder %s28, 1
    %p109 = por %p107, %p108
    %p110 = scmp.ne.s32.totalorder %s101, %s102
    %p111 = scmp.eq.s32.totalorder %s28, 0
    %p112 = por %p110, %p111
    %p113 = scmp.ne.s32.totalorder %s101, %s102
    %p114 = scmp.eq.s32.totalorder %s29, 1
    %p115 = por %p113, %p114
    %p117 = scmp.ne.s32.totalorder %s102, %s116
    %p118 = scmp.eq.s32.totalorder %s29, 0
    %p119 = por %p117, %p118
    %s121 = sadd.s32 %s120, 1
    %p124 = scmp.eq.s32.totalorder %s23, 1
    %p125 = scmp.ne.s32.totalorder %s120, %s122
    %p126 = scmp.eq.s32.totalorder %s23, 0
    %p127 = por %p125, %p126
    %p128 = scmp.ne.s32.totalorder %s120, %s122
    %p129 = scmp.eq.s32.totalorder %s28, 1
    %p130 = por %p128, %p129
    %p131 = scmp.ne.s32.totalorder %s122, %s123
    %p132 = scmp.eq.s32.totalorder %s28, 0
    %p133 = por %p131, %p132
    %p134 = scmp.ne.s32.totalorder %s122, %s123
    %p135 = scmp.eq.s32.totalorder %s29, 1
    %p136 = por %p134, %p135
    %p138 = scmp.ne.s32.totalorder %s123, %s137
    %p139 = scmp.eq.s32.totalorder %s29, 0
    %p140 = por %p138, %p139
    %s142 = sadd.s32 %s141, 1
    %p145 = scmp.eq.s32.totalorder %s23, 1
    %p146 = scmp.ne.s32.totalorder %s141, %s143
    %p147 = scmp.eq.s32.totalorder %s23, 0
    %p148 = por %p146, %p147
    %p149 = scmp.ne.s32.totalorder %s141, %s143
    %p150 = scmp.eq.s32.totalorder %s28, 1
    %p151 = por %p149, %p150
    %p152 = scmp.ne.s32.totalorder %s143, %s144
    %p153 = scmp.eq.s32.totalorder %s28, 0
    %p154 = por %p152, %p153
    %p155 = scmp.ne.s32.totalorder %s143, %s144
    %p156 = scmp.eq.s32.totalorder %s29, 1
    %p157 = por %p155, %p156
    %p159 = scmp.ne.s32.totalorder %s144, %s158
    %p160 = scmp.eq.s32.totalorder %s29, 0
    %p161 = por %p159, %p160
    %s163 = sadd.s32 %s162, 1
    %p166 = scmp.eq.s32.totalorder %s23, 1
    %p167 = scmp.ne.s32.totalorder %s162, %s164
    %p168 = scmp.eq.s32.totalorder %s23, 0
    %p169 = por %p167, %p168
    %p170 = scmp.ne.s32.totalorder %s162, %s164
    %p171 = scmp.eq.s32.totalorder %s28, 1
    %p172 = por %p170, %p171
    %p173 = scmp.ne.s32.totalorder %s164, %s165
    %p174 = scmp.eq.s32.totalorder %s28, 0
    %p175 = por %p173, %p174
    %p176 = scmp.ne.s32.totalorder %s164, %s165
    %p177 = scmp.eq.s32.totalorder %s29, 1
    %p178 = por %p176, %p177
    %p180 = scmp.ne.s32.totalorder %s165, %s179
    %p181 = scmp.eq.s32.totalorder %s29, 0
    %p182 = por %p180, %p181
    %s184 = sadd.s32 %s183, 1
    %p187 = scmp.eq.s32.totalorder %s23, 1
    %p188 = scmp.ne.s32.totalorder %s183, %s185
    %p189 = scmp.eq.s32.totalorder %s23, 0
    %p190 = por %p188, %p189
    %p191 = scmp.ne.s32.totalorder %s183, %s185
    %p192 = scmp.eq.s32.totalorder %s28, 1
    %p193 = por %p191, %p192
    %p194 = scmp.ne.s32.totalorder %s185, %s186
    %p195 = scmp.eq.s32.totalorder %s28, 0
    %p196 = por %p194, %p195
    %p197 = scmp.ne.s32.totalorder %s185, %s186
    %p198 = scmp.eq.s32.totalorder %s29, 1
    %p199 = por %p197, %p198
    %p201 = scmp.ne.s32.totalorder %s186, %s200
    %p202 = scmp.eq.s32.totalorder %s29, 0
    %p203 = por %p201, %p202
    %s205 = sadd.s32 %s204, 1
    %p208 = scmp.eq.s32.totalorder %s23, 1
    %p209 = scmp.ne.s32.totalorder %s204, %s206
    %p210 = scmp.eq.s32.totalorder %s23, 0
    %p211 = por %p209, %p210
    %p212 = scmp.ne.s32.totalorder %s204, %s206
    %p213 = scmp.eq.s32.totalorder %s28, 1
    %p214 = por %p212, %p213
    %p215 = scmp.ne.s32.totalorder %s206, %s207
    %p216 = scmp.eq.s32.totalorder %s28, 0
    %p217 = por %p215, %p216
    %p218 = scmp.ne.s32.totalorder %s206, %s207
    %p219 = scmp.eq.s32.totalorder %s29, 1
    %p220 = por %p218, %p219
    %p222 = scmp.ne.s32.totalorder %s207, %s221
    %p223 = scmp.eq.s32.totalorder %s29, 0
    %p224 = por %p222, %p223
    %s226 = sadd.s32 %s225, 1
    %p229 = scmp.eq.s32.totalorder %s23, 1
    %p230 = scmp.ne.s32.totalorder %s225, %s227
    %p231 = scmp.eq.s32.totalorder %s23, 0
    %p232 = por %p230, %p231
    %p233 = scmp.ne.s32.totalorder %s225, %s227
    %p234 = scmp.eq.s32.totalorder %s28, 1
    %p235 = por %p233, %p234
    %p236 = scmp.ne.s32.totalorder %s227, %s228
    %p237 = scmp.eq.s32.totalorder %s28, 0
    %p238 = por %p236, %p237
    %p239 = scmp.ne.s32.totalorder %s227, %s228
    %p240 = scmp.eq.s32.totalorder %s29, 1
    %p241 = por %p239, %p240
    %p243 = scmp.ne.s32.totalorder %s228, %s242
    %p244 = scmp.eq.s32.totalorder %s29, 0
    %p245 = por %p243, %p244
    %s247 = sadd.s32 %s246, 1
    %p250 = scmp.eq.s32.totalorder %s23, 1
    %p251 = scmp.ne.s32.totalorder %s246, %s248
    %p252 = scmp.eq.s32.totalorder %s23, 0
    %p253 = por %p251, %p252
    %p254 = scmp.ne.s32.totalorder %s246, %s248
    %p255 = scmp.eq.s32.totalorder %s28, 1
    %p256 = por %p254, %p255
    %p257 = scmp.ne.s32.totalorder %s248, %s249
    %p258 = scmp.eq.s32.totalorder %s28, 0
    %p259 = por %p257, %p258
    %p260 = scmp.ne.s32.totalorder %s248, %s249
    %p261 = scmp.eq.s32.totalorder %s29, 1
    %p262 = por %p260, %p261
    %p264 = scmp.ne.s32.totalorder %s249, %s263
    %p265 = scmp.eq.s32.totalorder %s29, 0
    %p266 = por %p264, %p265
    %s268 = sadd.s32 %s267, 1
    %p271 = scmp.eq.s32.totalorder %s23, 1
    %p272 = scmp.ne.s32.totalorder %s267, %s269
    %p273 = scmp.eq.s32.totalorder %s23, 0
    %p274 = por %p272, %p273
    %p275 = scmp.ne.s32.totalorder %s267, %s269
    %p276 = scmp.eq.s32.totalorder %s28, 1
    %p277 = por %p275, %p276
    %p278 = scmp.ne.s32.totalorder %s269, %s270
    %p279 = scmp.eq.s32.totalorder %s28, 0
    %p280 = por %p278, %p279
    %p281 = scmp.ne.s32.totalorder %s269, %s270
    %p282 = scmp.eq.s32.totalorder %s29, 1
    %p283 = por %p281, %p282
    %p285 = scmp.ne.s32.totalorder %s270, %s284
    %p286 = scmp.eq.s32.totalorder %s29, 0
    %p287 = por %p285, %p286
    %s289 = sadd.s32 %s288, 1
    %p292 = scmp.eq.s32.totalorder %s23, 1
    %p293 = scmp.ne.s32.totalorder %s288, %s290
    %p294 = scmp.eq.s32.totalorder %s23, 0
    %p295 = por %p293, %p294
    %p296 = scmp.ne.s32.totalorder %s288, %s290
    %p297 = scmp.eq.s32.totalorder %s28, 1
    %p298 = por %p296, %p297
    %p299 = scmp.ne.s32.totalorder %s290, %s291
    %p300 = scmp.eq.s32.totalorder %s28, 0
    %p301 = por %p299, %p300
    %p302 = scmp.ne.s32.totalorder %s290, %s291
    %p303 = scmp.eq.s32.totalorder %s29, 1
    %p304 = por %p302, %p303
    %p306 = scmp.ne.s32.totalorder %s291, %s305
    %p307 = scmp.eq.s32.totalorder %s29, 0
    %p308 = por %p306, %p307
    %s310 = sadd.s32 %s309, 1
    %p313 = scmp.eq.s32.totalorder %s23, 1
    %p314 = scmp.ne.s32.totalorder %s309, %s311
    %p315 = scmp.eq.s32.totalorder %s23, 0
    %p316 = por %p314, %p315
    %p317 = scmp.ne.s32.totalorder %s309, %s311
    %p318 = scmp.eq.s32.totalorder %s28, 1
    %p319 = por %p317, %p318
    %p320 = scmp.ne.s32.totalorder %s311, %s312
    %p321 = scmp.eq.s32.totalorder %s28, 0
    %p322 = por %p320, %p321
    %p323 = scmp.ne.s32.totalorder %s311, %s312
    %p324 = scmp.eq.s32.totalorder %s29, 1
    %p325 = por %p323, %p324
    %p327 = scmp.ne.s32.totalorder %s312, %s326
    %p328 = scmp.eq.s32.totalorder %s29, 0
    %p329 = por %p327, %p328
    %s331 = sadd.s32 %s330, 1
    %p334 = scmp.eq.s32.totalorder %s23, 1
    %p335 = scmp.ne.s32.totalorder %s330, %s332
    %p336 = scmp.eq.s32.totalorder %s23, 0
    %p337 = por %p335, %p336
    %p338 = scmp.ne.s32.totalorder %s330, %s332
    %p339 = scmp.eq.s32.totalorder %s28, 1
    %p340 = por %p338, %p339
    %p341 = scmp.ne.s32.totalorder %s332, %s333
    %p342 = scmp.eq.s32.totalorder %s28, 0
    %p343 = por %p341, %p342
    %p344 = scmp.ne.s32.totalorder %s332, %s333
    %p345 = scmp.eq.s32.totalorder %s29, 1
    %p346 = por %p344, %p345
    %p348 = scmp.ne.s32.totalorder %s333, %s347
    %p349 = scmp.eq.s32.totalorder %s29, 0
    %p350 = por %p348, %p349
    %s351 = ssub.s32 %s23, %s30
    %p352 = scmp.eq.s32.totalorder %s351, 0
    %s354 = sadd.s32 %s353, 1
    %s355 = scalar_select %p352, %s353, %s354
    %p358 = pneg %p352
    %p359 = scmp.eq.s32.totalorder %s23, 1
    %p360 = por %p358, %p359
    %p361 = scmp.ne.s32.totalorder %s353, %s356
    %p362 = scmp.eq.s32.totalorder %s23, 0
    %p363 = por %p361, %p362
    %p364 = scmp.ne.s32.totalorder %s353, %s356
    %p365 = scmp.eq.s32.totalorder %s28, 1
    %p366 = por %p364, %p365
    %p367 = scmp.ne.s32.totalorder %s356, %s357
    %p368 = scmp.eq.s32.totalorder %s28, 0
    %p369 = por %p367, %p368
    %p370 = scmp.ne.s32.totalorder %s356, %s357
    %p371 = scmp.eq.s32.totalorder %s29, 1
    %p372 = por %p370, %p371
    %p374 = scmp.ne.s32.totalorder %s357, %s373
    %p375 = scmp.eq.s32.totalorder %s29, 0
    %p376 = por %p374, %p375
    %s377 = ssub.s32 %s23, %s30
    %p378 = scmp.eq.s32.totalorder %s377, 0
    %s380 = sadd.s32 %s379, 1
    %s381 = scalar_select %p378, %s379, %s380
    %p384 = pneg %p378
    %p385 = scmp.eq.s32.totalorder %s23, 1
    %p386 = por %p384, %p385
    %p387 = scmp.ne.s32.totalorder %s379, %s382
    %p388 = scmp.eq.s32.totalorder %s23, 0
    %p389 = por %p387, %p388
    %p390 = scmp.ne.s32.totalorder %s379, %s382
    %p391 = scmp.eq.s32.totalorder %s28, 1
    %p392 = por %p390, %p391
    %p393 = scmp.ne.s32.totalorder %s382, %s383
    %p394 = scmp.eq.s32.totalorder %s28, 0
    %p395 = por %p393, %p394
    %p396 = scmp.ne.s32.totalorder %s382, %s383
    %p397 = scmp.eq.s32.totalorder %s29, 1
    %p398 = por %p396, %p397
    %p400 = scmp.ne.s32.totalorder %s383, %s399
    %p401 = scmp.eq.s32.totalorder %s29, 0
    %p402 = por %p400, %p401
    %p403 = scmp.le.s32.totalorder 1, %s23
    %p404 = scmp.lt.s32.totalorder %s23, 3
    %p405 = pnand %p403, %p404
    %p406 = pneg %p405
    // Predicated region
    $region9: #{tpu_custom_call.1} parent=5 // pred_check
      _
    $region10: #{tpu_custom_call.1} parent=5 // pred_check_branch
      %408 = sbr.rel (%p405) target = $region12
    $region11: #{tpu_custom_call.1} parent=5 // pred_region
      %s409 = ssub.s32 %s23, 1
      // Predicated region
      $region13: #{tpu_custom_call.1} parent=11 // pred_check
        %p410 = pneg %p70
      $region14: #{tpu_custom_call.1} parent=11 // pred_check_branch
        %412 = sbr.rel (%p410) target = $region16
      $region15: #{tpu_custom_call.1} parent=11 // pred_region
        _
      $region16: #{tpu_custom_call.1} parent=11 // pred_fallthru
        _
      // Predicated region
      $region17: #{tpu_custom_call.1} parent=11 // pred_check
        %p413 = pneg %p91
      $region18: #{tpu_custom_call.1} parent=11 // pred_check_branch
        %415 = sbr.rel (%p413) target = $region20
      $region19: #{tpu_custom_call.1} parent=11 // pred_region
        _
      $region20: #{tpu_custom_call.1} parent=11 // pred_fallthru
        _
      // Predicated region
      $region21: #{tpu_custom_call.1} parent=11 // pred_check
        %p416 = pneg %p112
      $region22: #{tpu_custom_call.1} parent=11 // pred_check_branch
        %418 = sbr.rel (%p416) target = $region24
      $region23: #{tpu_custom_call.1} parent=11 // pred_region
        _
      $region24: #{tpu_custom_call.1} parent=11 // pred_fallthru
        _
      // Predicated region
      $region25: #{tpu_custom_call.1} parent=11 // pred_check
        %p419 = pneg %p133
      $region26: #{tpu_custom_call.1} parent=11 // pred_check_branch
        %421 = sbr.rel (%p419) target = $region28
      $region27: #{tpu_custom_call.1} parent=11 // pred_region
        _
      $region28: #{tpu_custom_call.1} parent=11 // pred_fallthru
        _
      // Predicated region
      $region29: #{tpu_custom_call.1} parent=11 // pred_check
        %p422 = pneg %p154
      $region30: #{tpu_custom_call.1} parent=11 // pred_check_branch
        %424 = sbr.rel (%p422) target = $region32
      $region31: #{tpu_custom_call.1} parent=11 // pred_region
        _
      $region32: #{tpu_custom_call.1} parent=11 // pred_fallthru
        _
      // Predicated region
      $region33: #{tpu_custom_call.1} parent=11 // pred_check
        %p425 = pneg %p175
      $region34: #{tpu_custom_call.1} parent=11 // pred_check_branch
        %427 = sbr.rel (%p425) target = $region36
      $region35: #{tpu_custom_call.1} parent=11 // pred_region
        _
      $region36: #{tpu_custom_call.1} parent=11 // pred_fallthru
        _
      // Predicated region
      $region37: #{tpu_custom_call.1} parent=11 // pred_check
        %p428 = pneg %p196
      $region38: #{tpu_custom_call.1} parent=11 // pred_check_branch
        %430 = sbr.rel (%p428) target = $region40
      $region39: #{tpu_custom_call.1} parent=11 // pred_region
        _
      $region40: #{tpu_custom_call.1} parent=11 // pred_fallthru
        _
      // Predicated region
      $region41: #{tpu_custom_call.1} parent=11 // pred_check
        %p431 = pneg %p217
      $region42: #{tpu_custom_call.1} parent=11 // pred_check_branch
        %433 = sbr.rel (%p431) target = $region44
      $region43: #{tpu_custom_call.1} parent=11 // pred_region
        _
      $region44: #{tpu_custom_call.1} parent=11 // pred_fallthru
        _
      // Predicated region
      $region45: #{tpu_custom_call.1} parent=11 // pred_check
        %p434 = pneg %p238
      $region46: #{tpu_custom_call.1} parent=11 // pred_check_branch
        %436 = sbr.rel (%p434) target = $region48
      $region47: #{tpu_custom_call.1} parent=11 // pred_region
        _
      $region48: #{tpu_custom_call.1} parent=11 // pred_fallthru
        _
      // Predicated region
      $region49: #{tpu_custom_call.1} parent=11 // pred_check
        %p437 = pneg %p259
      $region50: #{tpu_custom_call.1} parent=11 // pred_check_branch
        %439 = sbr.rel (%p437) target = $region52
      $region51: #{tpu_custom_call.1} parent=11 // pred_region
        _
      $region52: #{tpu_custom_call.1} parent=11 // pred_fallthru
        _
      // Predicated region
      $region53: #{tpu_custom_call.1} parent=11 // pred_check
        %p440 = pneg %p280
      $region54: #{tpu_custom_call.1} parent=11 // pred_check_branch
        %442 = sbr.rel (%p440) target = $region56
      $region55: #{tpu_custom_call.1} parent=11 // pred_region
        _
      $region56: #{tpu_custom_call.1} parent=11 // pred_fallthru
        _
      // Predicated region
      $region57: #{tpu_custom_call.1} parent=11 // pred_check
        %p443 = pneg %p301
      $region58: #{tpu_custom_call.1} parent=11 // pred_check_branch
        %445 = sbr.rel (%p443) target = $region60
      $region59: #{tpu_custom_call.1} parent=11 // pred_region
        _
      $region60: #{tpu_custom_call.1} parent=11 // pred_fallthru
        _
      // Predicated region
      $region61: #{tpu_custom_call.1} parent=11 // pred_check
        %p446 = pneg %p322
      $region62: #{tpu_custom_call.1} parent=11 // pred_check_branch
        %448 = sbr.rel (%p446) target = $region64
      $region63: #{tpu_custom_call.1} parent=11 // pred_region
        _
      $region64: #{tpu_custom_call.1} parent=11 // pred_fallthru
        _
      // Predicated region
      $region65: #{tpu_custom_call.1} parent=11 // pred_check
        %p449 = pneg %p343
      $region66: #{tpu_custom_call.1} parent=11 // pred_check_branch
        %451 = sbr.rel (%p449) target = $region68
      $region67: #{tpu_custom_call.1} parent=11 // pred_region
        _
      $region68: #{tpu_custom_call.1} parent=11 // pred_fallthru
        _
    $region12: #{tpu_custom_call.1} parent=5 // pred_fallthru
      _
    %p452 = scmp.lt.s32.totalorder %s23, 2
    // Predicated region
    $region69: #{tpu_custom_call.1} parent=5 // pred_check
      %p453 = pneg %p452
    $region70: #{tpu_custom_call.1} parent=5 // pred_check_branch
      %455 = sbr.rel (%p453) target = $region72
    $region71: #{tpu_custom_call.1} parent=5 // pred_region
      // Predicated region
      $region73: #{tpu_custom_call.1} parent=71 // pred_check
        %p456 = pneg %p43
      $region74: #{tpu_custom_call.1} parent=71 // pred_check_branch
        %458 = sbr.rel (%p456) target = $region76
      $region75: #{tpu_custom_call.1} parent=71 // pred_region
        %p459 = scmp.lt.s32.totalorder %s23, 1
        %s460 = scalar_select %p459, %s23, 1
        %s461 = smul.addr %s460, 8
        %s462 = smul.addr %s461, 8
        %s463 = scalar_lea.vmem %s0, %s462
      $region76: #{tpu_custom_call.1} parent=71 // pred_fallthru
        _
    $region72: #{tpu_custom_call.1} parent=5 // pred_fallthru
      _
    %p464 = scmp.le.s32.totalorder 1, %s23
    %p465 = scmp.lt.s32.totalorder %s23, 3
    %p466 = pnand %p464, %p465
    %p467 = pneg %p466
    // Predicated region
    $region77: #{tpu_custom_call.1} parent=5 // pred_check
      _
    $region78: #{tpu_custom_call.1} parent=5 // pred_check_branch
      %469 = sbr.rel (%p466) target = $region80
    $region79: #{tpu_custom_call.1} parent=5 // pred_region
      %s470 = ssub.s32 %s23, 1
      %p471 = scmp.lt.s32.totalorder %s28, 1
      %s472 = scalar_select %p471, %s28, 1
      %s473 = smul.addr %s472, 8
      %s474 = smul.addr %s473, 8
      %s475 = scalar_lea.vmem %s0, %s474
      %p476 = pneg %p49
      %p477 = pneg %p46
      %p478 = pneg %p70
      %p479 = pneg %p67
      %p480 = pneg %p91
      %p481 = pneg %p88
      %p482 = pneg %p112
      %p483 = pneg %p109
      %p484 = pneg %p133
      %p485 = pneg %p130
      %p486 = pneg %p154
      %p487 = pneg %p151
      %p488 = pneg %p175
      %p489 = pneg %p172
      %p490 = pneg %p196
      %p491 = pneg %p193
      %p492 = pneg %p217
      %p493 = pneg %p214
      %p494 = pneg %p238
      %p495 = pneg %p235
      %p496 = pneg %p259
      %p497 = pneg %p256
      %p498 = pneg %p280
      %p499 = pneg %p277
      %p500 = pneg %p301
      %p501 = pneg %p298
      %p502 = pneg %p322
      %p503 = pneg %p319
      %p504 = pneg %p343
      %p505 = pneg %p340
      %p506 = pneg %p369
      %p507 = pneg %p366
      %p508 = scmp.lt.s32.totalorder %s28, 1
      %s509 = scalar_select %p508, %s28, 1
      %s510 = smul.addr %s509, 8
      %s511 = smul.addr %s510, 8
      %s512 = scalar_lea.vmem %s15, %s511
      %p513 = pneg %p395
      %p514 = pneg %p392
      %p515 = scmp.lt.s32.totalorder %s28, 1
      %s516 = scalar_select %p515, %s28, 1
      %s517 = scalar_lea.vmem %s16, %s516
      %p518 = scmp.lt.s32.totalorder %s28, 1
      %s519 = scalar_select %p518, %s28, 1
      %s520 = smul.addr %s519, 8
      %s521 = smul.addr %s520, 8
      %s522 = scalar_lea.vmem %s0, %s521
      %p523 = scmp.lt.s32.totalorder %s28, 1
      %s524 = scalar_select %p523, %s28, 1
      %s525 = smul.addr %s524, 8
      %s526 = smul.addr %s525, 8
      %s527 = scalar_lea.vmem %s15, %s526
      %p528 = scmp.lt.s32.totalorder %s28, 1
      %s529 = scalar_select %p528, %s28, 1
      %s530 = scalar_lea.vmem %s16, %s529
      %v532 = vld [vmem:[%s522] sm:$0xff]
      %v533 = vld [vmem:[%s522 + $0x8] sm:$0xff]
      %v534 = vld [vmem:[%s522 + $0x10] sm:$0xff]
      %v535 = vld [vmem:[%s522 + $0x18] sm:$0xff]
      %v536 = vld [vmem:[%s522 + $0x20] sm:$0xff]
      %v537 = vld [vmem:[%s522 + $0x28] sm:$0xff]
      %v538 = vld [vmem:[%s522 + $0x30] sm:$0xff]
      %v539 = vld [vmem:[%s522 + $0x38] sm:$0xff]
      %v540 = vld [vmem:[%s1] sm:$0xff]
      %v541 = vld [vmem:[%s1 + $0x8] sm:$0xff]
      %v542 = vld [vmem:[%s2] sm:$0x1]
      %v544 = vlaneseq
      %v545 = vshrl.u32 %v544, 7
      %v546 = vsub.s32 0, %v545
      %v547 = vrot.slane %v542, %v546
      %vm549 = vcmask 130048
      %v551 = vsel %vm549, %v532, 0
      %v554 = vsel %vm549, %v533, 0
      %v557 = vsel %vm549, %v534, 0
      %v560 = vsel %vm549, %v535, 0
      %v563 = vsel %vm549, %v536, 0
      %v566 = vsel %vm549, %v537, 0
      %v569 = vsel %vm549, %v538, 0
      %v572 = vsel %vm549, %v539, 0
      %574 = vmatprep.subr.mxu0 0.0
      %575 = vmatpush1.msra.mxu0 %v540
      %576 = vmatprep.subr.mxu0 0.0
      %577 = vmatpush1.msra.mxu0 %v541
      %578 = vmatprep.subr.mxu0 0.0
      %579 = vmatpush1.msra.mxu0 0.0
      %580 = vmatprep.subr.mxu0 0.0
      %581 = vmatpush1.msra.mxu0 0.0
      %582 = vmatprep.subr.mxu0 0.0
      %583 = vmatpush1.msra.mxu0 0.0
      %584 = vmatprep.subr.mxu0 0.0
      %585 = vmatpush1.msra.mxu0 0.0
      %586 = vmatprep.subr.mxu0 0.0
      %587 = vmatpush1.msra.mxu0 0.0
      %588 = vmatprep.subr.mxu0 0.0
      %589 = vmatpush1.msra.mxu0 0.0
      %590 = vmatprep.subr.mxu0 0.0
      %591 = vmatpush1.msra.mxu0 0.0
      %592 = vmatprep.subr.mxu0 0.0
      %593 = vmatpush1.msra.mxu0 0.0
      %594 = vmatprep.subr.mxu0 0.0
      %595 = vmatpush1.msra.mxu0 0.0
      %596 = vmatprep.subr.mxu0 0.0
      %597 = vmatpush1.msra.mxu0 0.0
      %598 = vmatprep.subr.mxu0 0.0
      %599 = vmatpush1.msra.mxu0 0.0
      %600 = vmatprep.subr.mxu0 0.0
      %601 = vmatpush1.msra.mxu0 0.0
      %602 = vmatprep.subr.mxu0 0.0
      %603 = vmatpush1.msra.mxu0 0.0
      %604 = vmatprep.subr.mxu0 0.0
      %605 = vmatpush1.msra.mxu0 0.0
      %606 = vmatprep.subr.mxu0 0.0
      %607 = vmatpush1.msra.mxu0 0.0
      %608 = vmatprep.subr.mxu0 0.0
      %609 = vmatpush1.msra.mxu0 0.0
      %610 = vmatprep.subr.mxu0 0.0
      %611 = vmatpush1.msra.mxu0 0.0
      %612 = vmatprep.subr.mxu0 0.0
      %613 = vmatpush1.msra.mxu0 0.0
      %614 = vmatprep.subr.mxu0 0.0
      %615 = vmatpush1.msra.mxu0 0.0
      %616 = vmatprep.subr.mxu0 0.0
      %617 = vmatpush1.msra.mxu0 0.0
      %618 = vmatprep.subr.mxu0 0.0
      %619 = vmatpush1.msra.mxu0 0.0
      %620 = vmatprep.subr.mxu0 0.0
      %621 = vmatpush1.msra.mxu0 0.0
      %622 = vmatprep.subr.mxu0 0.0
      %623 = vmatpush1.msra.mxu0 0.0
      %624 = vmatprep.subr.mxu0 0.0
      %625 = vmatpush1.msra.mxu0 0.0
      %626 = vmatprep.subr.mxu0 0.0
      %627 = vmatpush1.msra.mxu0 0.0
      %628 = vmatprep.subr.mxu0 0.0
      %629 = vmatpush1.msra.mxu0 0.0
      %630 = vmatprep.subr.mxu0 0.0
      %631 = vmatpush1.msra.mxu0 0.0
      %632 = vmatprep.subr.mxu0 0.0
      %633 = vmatpush1.msra.mxu0 0.0
      %634 = vmatprep.subr.mxu0 0.0
      %635 = vmatpush1.msra.mxu0 0.0
      %636 = vmatprep.subr.mxu0 0.0
      %637 = vmatpush1.msra.mxu0 0.0
      %638 = vmatprep.mubr.f32.mxu0 0.0
      %639 = vmatmul.mubr.f32.gmra.mrb[0].mxu0 %v551
      %v640 = vpop.f32.mrb[0].mxu0
      %v641 = vadd.f32 %v547, %v640
      %v642 = vpop.f32.mrb[0].mxu0
      %643 = vmatprep.mubr.f32.mxu0 0.0
      %644 = vmatmul.mubr.f32.gmra.mrb[0].mxu0 %v554
      %v645 = vpop.f32.mrb[0].mxu0
      %v646 = vadd.f32 %v547, %v645
      %v647 = vpop.f32.mrb[0].mxu0
      %648 = vmatprep.mubr.f32.mxu0 0.0
      %649 = vmatmul.mubr.f32.gmra.mrb[0].mxu0 %v557
      %v650 = vpop.f32.mrb[0].mxu0
      %v651 = vadd.f32 %v547, %v650
      %v652 = vpop.f32.mrb[0].mxu0
      %653 = vmatprep.mubr.f32.mxu0 0.0
      %654 = vmatmul.mubr.f32.gmra.mrb[0].mxu0 %v560
      %v655 = vpop.f32.mrb[0].mxu0
      %v656 = vadd.f32 %v547, %v655
      %v657 = vpop.f32.mrb[0].mxu0
      %658 = vmatprep.mubr.f32.mxu0 0.0
      %659 = vmatmul.mubr.f32.gmra.mrb[0].mxu0 %v563
      %v660 = vpop.f32.mrb[0].mxu0
      %v661 = vadd.f32 %v547, %v660
      %v662 = vpop.f32.mrb[0].mxu0
      %663 = vmatprep.mubr.f32.mxu0 0.0
      %664 = vmatmul.mubr.f32.gmra.mrb[0].mxu0 %v566
      %v665 = vpop.f32.mrb[0].mxu0
      %v666 = vadd.f32 %v547, %v665
      %v667 = vpop.f32.mrb[0].mxu0
      %668 = vmatprep.mubr.f32.mxu0 0.0
      %669 = vmatmul.mubr.f32.gmra.mrb[0].mxu0 %v569
      %v670 = vpop.f32.mrb[0].mxu0
      %v671 = vadd.f32 %v547, %v670
      %v672 = vpop.f32.mrb[0].mxu0
      %673 = vmatprep.mubr.f32.mxu0 0.0
      %674 = vmatmul.mubr.f32.gmra.mrb[0].mxu0 %v572
      %v675 = vpop.f32.mrb[0].mxu0
      %v676 = vadd.f32 %v547, %v675
      %v677 = vpop.f32.mrb[0].mxu0
      %678 = vdwg.mxu0
      %v679 = vpack.c.bf16 %v646, %v641
      %v680 = vpack.c.bf16 %v656, %v651
      %v681 = vpack.c.bf16 %v666, %v661
      %v682 = vpack.c.bf16 %v676, %v671
      %v683 = vpack.c.bf16 0.0, 0.0
      %v684 = vld [vmem:[%s3] sm:$0xf]
      %v685 = vld [vmem:[%s3 + $0x4] sm:$0xf]
      %v686 = vld [vmem:[%s3 + $0x8] sm:$0xf]
      %v687 = vld [vmem:[%s3 + $0xc] sm:$0xf]
      %v688 = vld [vmem:[%s3 + $0x10] sm:$0xf]
      %v689 = vld [vmem:[%s3 + $0x14] sm:$0xf]
      %v690 = vld [vmem:[%s3 + $0x18] sm:$0xf]
      %v691 = vld [vmem:[%s3 + $0x1c] sm:$0xf]
      %v692 = vld [vmem:[%s3 + $0x20] sm:$0xf]
      %v693 = vld [vmem:[%s3 + $0x24] sm:$0xf]
      %v694 = vld [vmem:[%s3 + $0x28] sm:$0xf]
      %v695 = vld [vmem:[%s3 + $0x2c] sm:$0xf]
      %v696 = vld [vmem:[%s3 + $0x30] sm:$0xf]
      %v697 = vld [vmem:[%s3 + $0x34] sm:$0xf]
      %v698 = vld [vmem:[%s4] sm:$0xf]
      %v699 = vld [vmem:[%s4 + $0x4] sm:$0xf]
      %v700 = vld [vmem:[%s4 + $0x8] sm:$0xf]
      %v701 = vld [vmem:[%s4 + $0xc] sm:$0xf]
      %v702 = vld [vmem:[%s4 + $0x10] sm:$0xf]
      %v703 = vld [vmem:[%s4 + $0x14] sm:$0xf]
      %v704 = vld [vmem:[%s4 + $0x18] sm:$0xf]
      %v705 = vld [vmem:[%s4 + $0x1c] sm:$0xf]
      %v706 = vld [vmem:[%s4 + $0x20] sm:$0xf]
      %v707 = vld [vmem:[%s4 + $0x24] sm:$0xf]
      %v708 = vld [vmem:[%s4 + $0x28] sm:$0xf]
      %v709 = vld [vmem:[%s4 + $0x2c] sm:$0xf]
      %v710 = vld [vmem:[%s4 + $0x30] sm:$0xf]
      %v711 = vld [vmem:[%s4 + $0x34] sm:$0xf]
      %713 = vset.pattern.permute.xlu0 0
      %714 = vperm.xlu0 %713, %v684
      %v715 = vpop.permute.xlu0 %714
      %v718 = vunpack.c.l.s4 839922192
      %v719 = vunpack.c.0.s8 %v718
      %v720 = vlaneseq
      %v721 = vshrl.u32 %v720, 7
      %v722 = vsub.s32 %v719, %v721
      %v723 = vrot.slane %v715, %v722
      %725 = vset.pattern.permute.xlu0 0
      %726 = vperm.xlu0 %725, %v685
      %v727 = vpop.permute.xlu0 %726
      %v730 = vunpack.c.l.s4 839922192
      %v731 = vunpack.c.0.s8 %v730
      %v732 = vlaneseq
      %v733 = vshrl.u32 %v732, 7
      %v734 = vsub.s32 %v731, %v733
      %v735 = vrot.slane %v727, %v734
      %737 = vset.pattern.permute.xlu0 0
      %738 = vperm.xlu0 %737, %v686
      %v739 = vpop.permute.xlu0 %738
      %v742 = vunpack.c.l.s4 839922192
      %v743 = vunpack.c.0.s8 %v742
      %v744 = vlaneseq
      %v745 = vshrl.u32 %v744, 7
      %v746 = vsub.s32 %v743, %v745
      %v747 = vrot.slane %v739, %v746
      %749 = vset.pattern.permute.xlu0 0
      %750 = vperm.xlu0 %749, %v687
      %v751 = vpop.permute.xlu0 %750
      %v754 = vunpack.c.l.s4 839922192
      %v755 = vunpack.c.0.s8 %v754
      %v756 = vlaneseq
      %v757 = vshrl.u32 %v756, 7
      %v758 = vsub.s32 %v755, %v757
      %v759 = vrot.slane %v751, %v758
      %761 = vset.pattern.permute.xlu0 0
      %762 = vperm.xlu0 %761, %v688
      %v763 = vpop.permute.xlu0 %762
      %v766 = vunpack.c.l.s4 839922192
      %v767 = vunpack.c.0.s8 %v766
      %v768 = vlaneseq
      %v769 = vshrl.u32 %v768, 7
      %v770 = vsub.s32 %v767, %v769
      %v771 = vrot.slane %v763, %v770
      %773 = vset.pattern.permute.xlu0 0
      %774 = vperm.xlu0 %773, %v689
      %v775 = vpop.permute.xlu0 %774
      %v778 = vunpack.c.l.s4 839922192
      %v779 = vunpack.c.0.s8 %v778
      %v780 = vlaneseq
      %v781 = vshrl.u32 %v780, 7
      %v782 = vsub.s32 %v779, %v781
      %v783 = vrot.slane %v775, %v782
      %785 = vset.pattern.permute.xlu0 0
      %786 = vperm.xlu0 %785, %v690
      %v787 = vpop.permute.xlu0 %786
      %v790 = vunpack.c.l.s4 839922192
      %v791 = vunpack.c.0.s8 %v790
      %v792 = vlaneseq
      %v793 = vshrl.u32 %v792, 7
      %v794 = vsub.s32 %v791, %v793
      %v795 = vrot.slane %v787, %v794
      %797 = vset.pattern.permute.xlu0 0
      %798 = vperm.xlu0 %797, %v691
      %v799 = vpop.permute.xlu0 %798
      %v802 = vunpack.c.l.s4 839922192
      %v803 = vunpack.c.0.s8 %v802
      %v804 = vlaneseq
      %v805 = vshrl.u32 %v804, 7
      %v806 = vsub.s32 %v803, %v805
      %v807 = vrot.slane %v799, %v806
      %809 = vset.pattern.permute.xlu0 0
      %810 = vperm.xlu0 %809, %v692
      %v811 = vpop.permute.xlu0 %810
      %v814 = vunpack.c.l.s4 839922192
      %v815 = vunpack.c.0.s8 %v814
      %v816 = vlaneseq
      %v817 = vshrl.u32 %v816, 7
      %v818 = vsub.s32 %v815, %v817
      %v819 = vrot.slane %v811, %v818
      %821 = vset.pattern.permute.xlu0 0
      %822 = vperm.xlu0 %821, %v693
      %v823 = vpop.permute.xlu0 %822
      %v826 = vunpack.c.l.s4 839922192
      %v827 = vunpack.c.0.s8 %v826
      %v828 = vlaneseq
      %v829 = vshrl.u32 %v828, 7
      %v830 = vsub.s32 %v827, %v829
      %v831 = vrot.slane %v823, %v830
      %833 = vset.pattern.permute.xlu0 0
      %834 = vperm.xlu0 %833, %v694
      %v835 = vpop.permute.xlu0 %834
      %v838 = vunpack.c.l.s4 839922192
      %v839 = vunpack.c.0.s8 %v838
      %v840 = vlaneseq
      %v841 = vshrl.u32 %v840, 7
      %v842 = vsub.s32 %v839, %v841
      %v843 = vrot.slane %v835, %v842
      %845 = vset.pattern.permute.xlu0 0
      %846 = vperm.xlu0 %845, %v695
      %v847 = vpop.permute.xlu0 %846
      %v850 = vunpack.c.l.s4 839922192
      %v851 = vunpack.c.0.s8 %v850
      %v852 = vlaneseq
      %v853 = vshrl.u32 %v852, 7
      %v854 = vsub.s32 %v851, %v853
      %v855 = vrot.slane %v847, %v854
      %857 = vset.pattern.permute.xlu0 0
      %858 = vperm.xlu0 %857, %v696
      %v859 = vpop.permute.xlu0 %858
      %v862 = vunpack.c.l.s4 839922192
      %v863 = vunpack.c.0.s8 %v862
      %v864 = vlaneseq
      %v865 = vshrl.u32 %v864, 7
      %v866 = vsub.s32 %v863, %v865
      %v867 = vrot.slane %v859, %v866
      %869 = vset.pattern.permute.xlu0 0
      %870 = vperm.xlu0 %869, %v697
      %v871 = vpop.permute.xlu0 %870
      %v874 = vunpack.c.l.s4 839922192
      %v875 = vunpack.c.0.s8 %v874
      %v876 = vlaneseq
      %v877 = vshrl.u32 %v876, 7
      %v878 = vsub.s32 %v875, %v877
      %v879 = vrot.slane %v871, %v878
      %v894 = vunpack.c.l.b16 %v723
      %v895 = vunpack.c.l.b16 %v735
      %v896 = vunpack.c.l.b16 %v747
      %v897 = vunpack.c.l.b16 %v759
      %v898 = vunpack.c.l.b16 %v771
      %v899 = vunpack.c.l.b16 %v783
      %v900 = vunpack.c.l.b16 %v795
      %v901 = vunpack.c.l.b16 %v807
      %v902 = vunpack.c.l.b16 %v819
      %v903 = vunpack.c.l.b16 %v831
      %v904 = vunpack.c.l.b16 %v843
      %v905 = vunpack.c.l.b16 %v855
      %v906 = vunpack.c.l.b16 %v867
      %v907 = vunpack.c.l.b16 %v879
      %v908 = vpack.c.b16 %v895, %v894
      %v909 = vpack.c.b16 %v897, %v896
      %v910 = vpack.c.b16 %v899, %v898
      %v911 = vpack.c.b16 %v901, %v900
      %v912 = vpack.c.b16 %v903, %v902
      %v913 = vpack.c.b16 %v905, %v904
      %v914 = vpack.c.b16 %v907, %v906
      %v922 = vmul.bf16 %v908, 0
      %v923 = vmul.bf16 %v679, %v909
      %v924 = vmul.bf16 %v680, %v910
      %v925 = vmul.bf16 %v681, %v911
      %v926 = vmul.bf16 %v682, %v912
      %v927 = vmul.bf16 %v683, %v913
      %v928 = vmul.bf16 %v914, 0
      %930 = vset.pattern.permute.xlu0 0
      %931 = vperm.xlu0 %930, %v698
      %v932 = vpop.permute.xlu0 %931
      %v935 = vunpack.c.l.s4 839922192
      %v936 = vunpack.c.0.s8 %v935
      %v937 = vlaneseq
      %v938 = vshrl.u32 %v937, 7
      %v939 = vsub.s32 %v936, %v938
      %v940 = vrot.slane %v932, %v939
      %942 = vset.pattern.permute.xlu0 0
      %943 = vperm.xlu0 %942, %v699
      %v944 = vpop.permute.xlu0 %943
      %v947 = vunpack.c.l.s4 839922192
      %v948 = vunpack.c.0.s8 %v947
      %v949 = vlaneseq
      %v950 = vshrl.u32 %v949, 7
      %v951 = vsub.s32 %v948, %v950
      %v952 = vrot.slane %v944, %v951
      %954 = vset.pattern.permute.xlu0 0
      %955 = vperm.xlu0 %954, %v700
      %v956 = vpop.permute.xlu0 %955
      %v959 = vunpack.c.l.s4 839922192
      %v960 = vunpack.c.0.s8 %v959
      %v961 = vlaneseq
      %v962 = vshrl.u32 %v961, 7
      %v963 = vsub.s32 %v960, %v962
      %v964 = vrot.slane %v956, %v963
      %966 = vset.pattern.permute.xlu0 0
      %967 = vperm.xlu0 %966, %v701
      %v968 = vpop.permute.xlu0 %967
      %v971 = vunpack.c.l.s4 839922192
      %v972 = vunpack.c.0.s8 %v971
      %v973 = vlaneseq
      %v974 = vshrl.u32 %v973, 7
      %v975 = vsub.s32 %v972, %v974
      %v976 = vrot.slane %v968, %v975
      %978 = vset.pattern.permute.xlu0 0
      %979 = vperm.xlu0 %978, %v702
      %v980 = vpop.permute.xlu0 %979
      %v983 = vunpack.c.l.s4 839922192
      %v984 = vunpack.c.0.s8 %v983
      %v985 = vlaneseq
      %v986 = vshrl.u32 %v985, 7
      %v987 = vsub.s32 %v984, %v986
      %v988 = vrot.slane %v980, %v987
      %990 = vset.pattern.permute.xlu0 0
      %991 = vperm.xlu0 %990, %v703
      %v992 = vpop.permute.xlu0 %991
      %v995 = vunpack.c.l.s4 839922192
      %v996 = vunpack.c.0.s8 %v995
      %v997 = vlaneseq
      %v998 = vshrl.u32 %v997, 7
      %v999 = vsub.s32 %v996, %v998
      %v1000 = vrot.slane %v992, %v999
      %1002 = vset.pattern.permute.xlu0 0
      %1003 = vperm.xlu0 %1002, %v704
      %v1004 = vpop.permute.xlu0 %1003
      %v1007 = vunpack.c.l.s4 839922192
      %v1008 = vunpack.c.0.s8 %v1007
      %v1009 = vlaneseq
      %v1010 = vshrl.u32 %v1009, 7
      %v1011 = vsub.s32 %v1008, %v1010
      %v1012 = vrot.slane %v1004, %v1011
      %1014 = vset.pattern.permute.xlu0 0
      %1015 = vperm.xlu0 %1014, %v705
      %v1016 = vpop.permute.xlu0 %1015
      %v1019 = vunpack.c.l.s4 839922192
      %v1020 = vunpack.c.0.s8 %v1019
      %v1021 = vlaneseq
      %v1022 = vshrl.u32 %v1021, 7
      %v1023 = vsub.s32 %v1020, %v1022
      %v1024 = vrot.slane %v1016, %v1023
      %1026 = vset.pattern.permute.xlu0 0
      %1027 = vperm.xlu0 %1026, %v706
      %v1028 = vpop.permute.xlu0 %1027
      %v1031 = vunpack.c.l.s4 839922192
      %v1032 = vunpack.c.0.s8 %v1031
      %v1033 = vlaneseq
      %v1034 = vshrl.u32 %v1033, 7
      %v1035 = vsub.s32 %v1032, %v1034
      %v1036 = vrot.slane %v1028, %v1035
      %1038 = vset.pattern.permute.xlu0 0
      %1039 = vperm.xlu0 %1038, %v707
      %v1040 = vpop.permute.xlu0 %1039
      %v1043 = vunpack.c.l.s4 839922192
      %v1044 = vunpack.c.0.s8 %v1043
      %v1045 = vlaneseq
      %v1046 = vshrl.u32 %v1045, 7
      %v1047 = vsub.s32 %v1044, %v1046
      %v1048 = vrot.slane %v1040, %v1047
      %1050 = vset.pattern.permute.xlu0 0
      %1051 = vperm.xlu0 %1050, %v708
      %v1052 = vpop.permute.xlu0 %1051
      %v1055 = vunpack.c.l.s4 839922192
      %v1056 = vunpack.c.0.s8 %v1055
      %v1057 = vlaneseq
      %v1058 = vshrl.u32 %v1057, 7
      %v1059 = vsub.s32 %v1056, %v1058
      %v1060 = vrot.slane %v1052, %v1059
      %1062 = vset.pattern.permute.xlu0 0
      %1063 = vperm.xlu0 %1062, %v709
      %v1064 = vpop.permute.xlu0 %1063
      %v1067 = vunpack.c.l.s4 839922192
      %v1068 = vunpack.c.0.s8 %v1067
      %v1069 = vlaneseq
      %v1070 = vshrl.u32 %v1069, 7
      %v1071 = vsub.s32 %v1068, %v1070
      %v1072 = vrot.slane %v1064, %v1071
      %1074 = vset.pattern.permute.xlu0 0
      %1075 = vperm.xlu0 %1074, %v710
      %v1076 = vpop.permute.xlu0 %1075
      %v1079 = vunpack.c.l.s4 839922192
      %v1080 = vunpack.c.0.s8 %v1079
      %v1081 = vlaneseq
      %v1082 = vshrl.u32 %v1081, 7
      %v1083 = vsub.s32 %v1080, %v1082
      %v1084 = vrot.slane %v1076, %v1083
      %1086 = vset.pattern.permute.xlu0 0
      %1087 = vperm.xlu0 %1086, %v711
      %v1088 = vpop.permute.xlu0 %1087
      %v1091 = vunpack.c.l.s4 839922192
      %v1092 = vunpack.c.0.s8 %v1091
      %v1093 = vlaneseq
      %v1094 = vshrl.u32 %v1093, 7
      %v1095 = vsub.s32 %v1092, %v1094
      %v1096 = vrot.slane %v1088, %v1095
      %v1111 = vunpack.c.l.b16 %v940
      %v1112 = vunpack.c.l.b16 %v952
      %v1113 = vunpack.c.l.b16 %v964
      %v1114 = vunpack.c.l.b16 %v976
      %v1115 = vunpack.c.l.b16 %v988
      %v1116 = vunpack.c.l.b16 %v1000
      %v1117 = vunpack.c.l.b16 %v1012
      %v1118 = vunpack.c.l.b16 %v1024
      %v1119 = vunpack.c.l.b16 %v1036
      %v1120 = vunpack.c.l.b16 %v1048
      %v1121 = vunpack.c.l.b16 %v1060
      %v1122 = vunpack.c.l.b16 %v1072
      %v1123 = vunpack.c.l.b16 %v1084
      %v1124 = vunpack.c.l.b16 %v1096
      %v1125 = vpack.c.b16 %v1112, %v1111
      %v1126 = vpack.c.b16 %v1114, %v1113
      %v1127 = vpack.c.b16 %v1116, %v1115
      %v1128 = vpack.c.b16 %v1118, %v1117
      %v1129 = vpack.c.b16 %v1120, %v1119
      %v1130 = vpack.c.b16 %v1122, %v1121
      %v1131 = vpack.c.b16 %v1124, %v1123
      %v1139 = vmul.bf16 %v1125, 0
      %v1140 = vmul.bf16 %v679, %v1126
      %v1141 = vmul.bf16 %v680, %v1127
      %v1142 = vmul.bf16 %v681, %v1128
      %v1143 = vmul.bf16 %v682, %v1129
      %v1144 = vmul.bf16 %v683, %v1130
      %v1145 = vmul.bf16 %v1131, 0
      %v1146 = vld [vmem:[%s7] sm:$0xf]
      %s1147 = scalar_lea.vmem %s7, 4
      %v1148 = vld [vmem:[%s1147] sm:$0xf]
      %vm1155 = vcmask 1043456
      %v1156 = vrot.slane 0, 4
      %v1157 = vrot.slane %v679, 4
      %v1158 = vsel %vm1155, %v1156, %v1157
      %v1159 = vrot.slane %v680, 4
      %v1160 = vsel %vm1155, %v1157, %v1159
      %v1161 = vrot.slane %v681, 4
      %v1162 = vsel %vm1155, %v1159, %v1161
      %v1163 = vrot.slane %v682, 4
      %v1164 = vsel %vm1155, %v1161, %v1163
      %v1165 = vrot.slane %v683, 4
      %v1166 = vsel %vm1155, %v1163, %v1165
      %vm1167 = vcmask 64512
      %v1169 = vsel %vm1167, %v1158, 0
      %v1172 = vsel %vm1167, %v1160, 0
      %v1175 = vsel %vm1167, %v1162, 0
      %v1178 = vsel %vm1167, %v1164, 0
      %v1181 = vsel %vm1167, %v1166, 0
      %vm1183 = vcmask 1043456
      %v1185 = vsel %vm1183, %v1148, 0
      %1187 = vmatprep.subr.bf16.mxu0 0
      %1188 = vmatpush1.bf16.msra.mxu0 %v1185
      %1189 = vmatprep.subr.bf16.mxu0 0
      %1190 = vmatpush1.bf16.msra.mxu0 0
      %1191 = vmatprep.subr.bf16.mxu0 0
      %1192 = vmatpush1.bf16.msra.mxu0 0
      %1193 = vmatprep.subr.bf16.mxu0 0
      %1194 = vmatpush1.bf16.msra.mxu0 0
      %1195 = vmatprep.subr.bf16.mxu0 0
      %1196 = vmatpush1.bf16.msra.mxu0 0
      %1197 = vmatprep.subr.bf16.mxu0 0
      %1198 = vmatpush1.bf16.msra.mxu0 0
      %1199 = vmatprep.subr.bf16.mxu0 0
      %1200 = vmatpush1.bf16.msra.mxu0 0
      %1201 = vmatprep.subr.bf16.mxu0 0
      %1202 = vmatpush1.bf16.msra.mxu0 0
      %1203 = vmatprep.subr.bf16.mxu0 0
      %1204 = vmatpush1.bf16.msra.mxu0 0
      %1205 = vmatprep.subr.bf16.mxu0 0
      %1206 = vmatpush1.bf16.msra.mxu0 0
      %1207 = vmatprep.subr.bf16.mxu0 0
      %1208 = vmatpush1.bf16.msra.mxu0 0
      %1209 = vmatprep.subr.bf16.mxu0 0
      %1210 = vmatpush1.bf16.msra.mxu0 0
      %1211 = vmatprep.subr.bf16.mxu0 0
      %1212 = vmatpush1.bf16.msra.mxu0 0
      %1213 = vmatprep.subr.bf16.mxu0 0
      %1214 = vmatpush1.bf16.msra.mxu0 0
      %1215 = vmatprep.subr.bf16.mxu0 0
      %1216 = vmatpush1.bf16.msra.mxu0 0
      %1217 = vmatprep.subr.bf16.mxu0 0
      %1218 = vmatpush1.bf16.msra.mxu0 0
      %1219 = vmatprep.mubr.bf16.mxu0 0
      %1220 = vmatmul.mubr.bf16.gmra.mrb[0].mxu0 %v1169
      %v1221 = vpop.f32.mrb[0].mxu0
      %v1222 = vadd.f32 0.0, %v1221
      %v1223 = vpop.f32.mrb[0].mxu0
      %v1224 = vpop.f32.mrb[0].mxu0
      %v1225 = vadd.f32 0.0, %v1224
      %v1226 = vpop.f32.mrb[0].mxu0
      %1227 = vmatprep.mubr.bf16.mxu0 0
      %1228 = vmatmul.mubr.bf16.gmra.mrb[0].mxu0 %v1172
      %v1229 = vpop.f32.mrb[0].mxu0
      %v1230 = vadd.f32 0.0, %v1229
      %v1231 = vpop.f32.mrb[0].mxu0
      %v1232 = vpop.f32.mrb[0].mxu0
      %v1233 = vadd.f32 0.0, %v1232
      %v1234 = vpop.f32.mrb[0].mxu0
      %1235 = vmatprep.mubr.bf16.mxu0 0
      %1236 = vmatmul.mubr.bf16.gmra.mrb[0].mxu0 %v1175
      %v1237 = vpop.f32.mrb[0].mxu0
      %v1238 = vadd.f32 0.0, %v1237
      %v1239 = vpop.f32.mrb[0].mxu0
      %v1240 = vpop.f32.mrb[0].mxu0
      %v1241 = vadd.f32 0.0, %v1240
      %v1242 = vpop.f32.mrb[0].mxu0
      %1243 = vmatprep.mubr.bf16.mxu0 0
      %1244 = vmatmul.mubr.bf16.gmra.mrb[0].mxu0 %v1178
      %v1245 = vpop.f32.mrb[0].mxu0
      %v1246 = vadd.f32 0.0, %v1245
      %v1247 = vpop.f32.mrb[0].mxu0
      %v1248 = vpop.f32.mrb[0].mxu0
      %v1249 = vadd.f32 0.0, %v1248
      %v1250 = vpop.f32.mrb[0].mxu0
      %1251 = vmatprep.mubr.bf16.mxu0 0
      %1252 = vmatmul.mubr.bf16.gmra.mrb[0].mxu0 %v1181
      %v1253 = vpop.f32.mrb[0].mxu0
      %v1254 = vadd.f32 0.0, %v1253
      %v1255 = vpop.f32.mrb[0].mxu0
      %v1256 = vpop.f32.mrb[0].mxu0
      %v1257 = vadd.f32 0.0, %v1256
      %v1258 = vpop.f32.mrb[0].mxu0
      %1259 = vdwg.mxu0
      %vm1260 = vsmask.f32 4352
      %v1262 = vshrl.u32 %v922, 16
      %v1264 = vrot.slane %v1262, 3
      %v1265 = vshll.u32 %v922, 16
      %v1267 = vrot.slane %v1265, 4
      %v1268 = vor.u32 %v1264, %v1267
      %v1270 = vshrl.u32 %v923, 16
      %v1272 = vrot.slane %v1270, 3
      %v1273 = vshll.u32 %v923, 16
      %v1275 = vrot.slane %v1273, 4
      %v1276 = vor.u32 %v1272, %v1275
      %v1277 = vsel %vm1260, %v1268, %v1276
      %v1279 = vshrl.u32 %v924, 16
      %v1281 = vrot.slane %v1279, 3
      %v1282 = vshll.u32 %v924, 16
      %v1284 = vrot.slane %v1282, 4
      %v1285 = vor.u32 %v1281, %v1284
      %v1286 = vsel %vm1260, %v1276, %v1285
      %v1288 = vshrl.u32 %v925, 16
      %v1290 = vrot.slane %v1288, 3
      %v1291 = vshll.u32 %v925, 16
      %v1293 = vrot.slane %v1291, 4
      %v1294 = vor.u32 %v1290, %v1293
      %v1295 = vsel %vm1260, %v1285, %v1294
      %v1297 = vshrl.u32 %v926, 16
      %v1299 = vrot.slane %v1297, 3
      %v1300 = vshll.u32 %v926, 16
      %v1302 = vrot.slane %v1300, 4
      %v1303 = vor.u32 %v1299, %v1302
      %v1304 = vsel %vm1260, %v1294, %v1303
      %v1306 = vshrl.u32 %v927, 16
      %v1308 = vrot.slane %v1306, 3
      %v1309 = vshll.u32 %v927, 16
      %v1311 = vrot.slane %v1309, 4
      %v1312 = vor.u32 %v1308, %v1311
      %v1313 = vsel %vm1260, %v1303, %v1312
      %v1315 = vsel %vm1167, %v1277, 0
      %v1318 = vsel %vm1167, %v1286, 0
      %v1321 = vsel %vm1167, %v1295, 0
      %v1324 = vsel %vm1167, %v1304, 0
      %v1327 = vsel %vm1167, %v1313, 0
      %v1330 = vsel %vm1183, %v1146, 0
      %1332 = vmatprep.subr.bf16.mxu0 0
      %1333 = vmatpush1.bf16.msra.mxu0 %v1330
      %1334 = vmatprep.subr.bf16.mxu0 0
      %1335 = vmatpush1.bf16.msra.mxu0 0
      %1336 = vmatprep.subr.bf16.mxu0 0
      %1337 = vmatpush1.bf16.msra.mxu0 0
      %1338 = vmatprep.subr.bf16.mxu0 0
      %1339 = vmatpush1.bf16.msra.mxu0 0
      %1340 = vmatprep.subr.bf16.mxu0 0
      %1341 = vmatpush1.bf16.msra.mxu0 0
      %1342 = vmatprep.subr.bf16.mxu0 0
      %1343 = vmatpush1.bf16.msra.mxu0 0
      %1344 = vmatprep.subr.bf16.mxu0 0
      %1345 = vmatpush1.bf16.msra.mxu0 0
      %1346 = vmatprep.subr.bf16.mxu0 0
      %1347 = vmatpush1.bf16.msra.mxu0 0
      %1348 = vmatprep.subr.bf16.mxu0 0
      %1349 = vmatpush1.bf16.msra.mxu0 0
      %1350 = vmatprep.subr.bf16.mxu0 0
      %1351 = vmatpush1.bf16.msra.mxu0 0
      %1352 = vmatprep.subr.bf16.mxu0 0
      %1353 = vmatpush1.bf16.msra.mxu0 0
      %1354 = vmatprep.subr.bf16.mxu0 0
      %1355 = vmatpush1.bf16.msra.mxu0 0
      %1356 = vmatprep.subr.bf16.mxu0 0
      %1357 = vmatpush1.bf16.msra.mxu0 0
      %1358 = vmatprep.subr.bf16.mxu0 0
      %1359 = vmatpush1.bf16.msra.mxu0 0
      %1360 = vmatprep.subr.bf16.mxu0 0
      %1361 = vmatpush1.bf16.msra.mxu0 0
      %1362 = vmatprep.subr.bf16.mxu0 0
      %1363 = vmatpush1.bf16.msra.mxu0 0
      %1364 = vmatprep.mubr.bf16.mxu0 0
      %1365 = vmatmul.mubr.bf16.gmra.mrb[0].mxu0 %v1315
      %v1366 = vpop.f32.mrb[0].mxu0
      %v1367 = vadd.f32 %v1222, %v1366
      %v1368 = vpop.f32.mrb[0].mxu0
      %v1369 = vpop.f32.mrb[0].mxu0
      %v1370 = vadd.f32 %v1225, %v1369
      %v1371 = vpop.f32.mrb[0].mxu0
      %1372 = vmatprep.mubr.bf16.mxu0 0
      %1373 = vmatmul.mubr.bf16.gmra.mrb[0].mxu0 %v1318
      %v1374 = vpop.f32.mrb[0].mxu0
      %v1375 = vadd.f32 %v1230, %v1374
      %v1376 = vpop.f32.mrb[0].mxu0
      %v1377 = vpop.f32.mrb[0].mxu0
      %v1378 = vadd.f32 %v1233, %v1377
      %v1379 = vpop.f32.mrb[0].mxu0
      %1380 = vmatprep.mubr.bf16.mxu0 0
      %1381 = vmatmul.mubr.bf16.gmra.mrb[0].mxu0 %v1321
      %v1382 = vpop.f32.mrb[0].mxu0
      %v1383 = vadd.f32 %v1238, %v1382
      %v1384 = vpop.f32.mrb[0].mxu0
      %v1385 = vpop.f32.mrb[0].mxu0
      %v1386 = vadd.f32 %v1241, %v1385
      %v1387 = vpop.f32.mrb[0].mxu0
      %1388 = vmatprep.mubr.bf16.mxu0 0
      %1389 = vmatmul.mubr.bf16.gmra.mrb[0].mxu0 %v1324
      %v1390 = vpop.f32.mrb[0].mxu0
      %v1391 = vadd.f32 %v1246, %v1390
      %v1392 = vpop.f32.mrb[0].mxu0
      %v1393 = vpop.f32.mrb[0].mxu0
      %v1394 = vadd.f32 %v1249, %v1393
      %v1395 = vpop.f32.mrb[0].mxu0
      %1396 = vmatprep.mubr.bf16.mxu0 0
      %1397 = vmatmul.mubr.bf16.gmra.mrb[0].mxu0 %v1327
      %v1398 = vpop.f32.mrb[0].mxu0
      %v1399 = vadd.f32 %v1254, %v1398
      %v1400 = vpop.f32.mrb[0].mxu0
      %v1401 = vpop.f32.mrb[0].mxu0
      %v1402 = vadd.f32 %v1257, %v1401
      %v1403 = vpop.f32.mrb[0].mxu0
      %1404 = vdwg.mxu0
      %s1405 = scalar_lea.vmem %s7, 8
      %v1406 = vld [vmem:[%s1405] sm:$0xf]
      %vm1407 = vsmask.f32 3328
      %v1409 = vshrl.u32 %v1139, 16
      %v1411 = vrot.slane %v1409, 4
      %v1412 = vshll.u32 %v1139, 16
      %v1414 = vrot.slane %v1412, 5
      %v1415 = vor.u32 %v1411, %v1414
      %v1417 = vshrl.u32 %v1140, 16
      %v1419 = vrot.slane %v1417, 4
      %v1420 = vshll.u32 %v1140, 16
      %v1422 = vrot.slane %v1420, 5
      %v1423 = vor.u32 %v1419, %v1422
      %v1424 = vsel %vm1407, %v1415, %v1423
      %v1426 = vshrl.u32 %v1141, 16
      %v1428 = vrot.slane %v1426, 4
      %v1429 = vshll.u32 %v1141, 16
      %v1431 = vrot.slane %v1429, 5
      %v1432 = vor.u32 %v1428, %v1431
      %v1433 = vsel %vm1407, %v1423, %v1432
      %v1435 = vshrl.u32 %v1142, 16
      %v1437 = vrot.slane %v1435, 4
      %v1438 = vshll.u32 %v1142, 16
      %v1440 = vrot.slane %v1438, 5
      %v1441 = vor.u32 %v1437, %v1440
      %v1442 = vsel %vm1407, %v1432, %v1441
      %v1444 = vshrl.u32 %v1143, 16
      %v1446 = vrot.slane %v1444, 4
      %v1447 = vshll.u32 %v1143, 16
      %v1449 = vrot.slane %v1447, 5
      %v1450 = vor.u32 %v1446, %v1449
      %v1451 = vsel %vm1407, %v1441, %v1450
      %v1453 = vshrl.u32 %v1144, 16
      %v1455 = vrot.slane %v1453, 4
      %v1456 = vshll.u32 %v1144, 16
      %v1458 = vrot.slane %v1456, 5
      %v1459 = vor.u32 %v1455, %v1458
      %v1460 = vsel %vm1407, %v1450, %v1459
      %v1462 = vsel %vm1167, %v1424, 0
      %v1465 = vsel %vm1167, %v1433, 0
      %v1468 = vsel %vm1167, %v1442, 0
      %v1471 = vsel %vm1167, %v1451, 0
      %v1474 = vsel %vm1167, %v1460, 0
      %v1477 = vsel %vm1183, %v1406, 0
      %1479 = vmatprep.subr.bf16.mxu0 0
      %1480 = vmatpush1.bf16.msra.mxu0 %v1477
      %1481 = vmatprep.subr.bf16.mxu0 0
      %1482 = vmatpush1.bf16.msra.mxu0 0
      %1483 = vmatprep.subr.bf16.mxu0 0
      %1484 = vmatpush1.bf16.msra.mxu0 0
      %1485 = vmatprep.subr.bf16.mxu0 0
      %1486 = vmatpush1.bf16.msra.mxu0 0
      %1487 = vmatprep.subr.bf16.mxu0 0
      %1488 = vmatpush1.bf16.msra.mxu0 0
      %1489 = vmatprep.subr.bf16.mxu0 0
      %1490 = vmatpush1.bf16.msra.mxu0 0
      %1491 = vmatprep.subr.bf16.mxu0 0
      %1492 = vmatpush1.bf16.msra.mxu0 0
      %1493 = vmatprep.subr.bf16.mxu0 0
      %1494 = vmatpush1.bf16.msra.mxu0 0
      %1495 = vmatprep.subr.bf16.mxu0 0
      %1496 = vmatpush1.bf16.msra.mxu0 0
      %1497 = vmatprep.subr.bf16.mxu0 0
      %1498 = vmatpush1.bf16.msra.mxu0 0
      %1499 = vmatprep.subr.bf16.mxu0 0
      %1500 = vmatpush1.bf16.msra.mxu0 0
      %1501 = vmatprep.subr.bf16.mxu0 0
      %1502 = vmatpush1.bf16.msra.mxu0 0
      %1503 = vmatprep.subr.bf16.mxu0 0
      %1504 = vmatpush1.bf16.msra.mxu0 0
      %1505 = vmatprep.subr.bf16.mxu0 0
      %1506 = vmatpush1.bf16.msra.mxu0 0
      %1507 = vmatprep.subr.bf16.mxu0 0
      %1508 = vmatpush1.bf16.msra.mxu0 0
      %1509 = vmatprep.subr.bf16.mxu0 0
      %1510 = vmatpush1.bf16.msra.mxu0 0
      %1511 = vmatprep.mubr.bf16.mxu0 0
      %1512 = vmatmul.mubr.bf16.gmra.mrb[0].mxu0 %v1462
      %v1513 = vpop.f32.mrb[0].mxu0
      %v1514 = vadd.f32 0.0, %v1513
      %v1515 = vpop.f32.mrb[0].mxu0
      %v1516 = vpop.f32.mrb[0].mxu0
      %v1517 = vadd.f32 0.0, %v1516
      %v1518 = vpop.f32.mrb[0].mxu0
      %1519 = vmatprep.mubr.bf16.mxu0 0
      %1520 = vmatmul.mubr.bf16.gmra.mrb[0].mxu0 %v1465
      %v1521 = vpop.f32.mrb[0].mxu0
      %v1522 = vadd.f32 0.0, %v1521
      %v1523 = vpop.f32.mrb[0].mxu0
      %v1524 = vpop.f32.mrb[0].mxu0
      %v1525 = vadd.f32 0.0, %v1524
      %v1526 = vpop.f32.mrb[0].mxu0
      %1527 = vmatprep.mubr.bf16.mxu0 0
      %1528 = vmatmul.mubr.bf16.gmra.mrb[0].mxu0 %v1468
      %v1529 = vpop.f32.mrb[0].mxu0
      %v1530 = vadd.f32 0.0, %v1529
      %v1531 = vpop.f32.mrb[0].mxu0
      %v1532 = vpop.f32.mrb[0].mxu0
      %v1533 = vadd.f32 0.0, %v1532
      %v1534 = vpop.f32.mrb[0].mxu0
      %1535 = vmatprep.mubr.bf16.mxu0 0
      %1536 = vmatmul.mubr.bf16.gmra.mrb[0].mxu0 %v1471
      %v1537 = vpop.f32.mrb[0].mxu0
      %v1538 = vadd.f32 0.0, %v1537
      %v1539 = vpop.f32.mrb[0].mxu0
      %v1540 = vpop.f32.mrb[0].mxu0
      %v1541 = vadd.f32 0.0, %v1540
      %v1542 = vpop.f32.mrb[0].mxu0
      %1543 = vmatprep.mubr.bf16.mxu0 0
      %1544 = vmatmul.mubr.bf16.gmra.mrb[0].mxu0 %v1474
      %v1545 = vpop.f32.mrb[0].mxu0
      %v1546 = vadd.f32 0.0, %v1545
      %v1547 = vpop.f32.mrb[0].mxu0
      %v1548 = vpop.f32.mrb[0].mxu0
      %v1549 = vadd.f32 0.0, %v1548
      %v1550 = vpop.f32.mrb[0].mxu0
      %1551 = vdwg.mxu0
      %v1552 = vadd.f32 %v1367, %v1514
      %v1553 = vadd.f32 %v1370, %v1517
      %v1554 = vadd.f32 %v1375, %v1522
      %v1555 = vadd.f32 %v1378, %v1525
      %v1556 = vadd.f32 %v1383, %v1530
      %v1557 = vadd.f32 %v1386, %v1533
      %v1558 = vadd.f32 %v1391, %v1538
      %v1559 = vadd.f32 %v1394, %v1541
      %v1560 = vadd.f32 %v1399, %v1546
      %v1561 = vadd.f32 %v1402, %v1549
      %s1562 = scalar_lea.vmem %s7, 12
      %v1563 = vld [vmem:[%s1562] sm:$0xf]
      %vm1564 = vsmask.f32 256
      %v1565 = vrot.slane %v1262, 7
      %v1566 = vrot.slane %v1270, 7
      %v1567 = vor.u32 %v1566, %v1273
      %v1568 = vsel %vm1564, %v1565, %v1567
      %v1569 = vrot.slane %v1279, 7
      %v1570 = vor.u32 %v1569, %v1282
      %v1571 = vsel %vm1564, %v1566, %v1570
      %v1572 = vrot.slane %v1288, 7
      %v1573 = vor.u32 %v1572, %v1291
      %v1574 = vsel %vm1564, %v1569, %v1573
      %v1575 = vrot.slane %v1297, 7
      %v1576 = vor.u32 %v1575, %v1300
      %v1577 = vsel %vm1564, %v1572, %v1576
      %v1578 = vrot.slane %v1306, 7
      %v1579 = vor.u32 %v1578, %v1309
      %v1580 = vsel %vm1564, %v1575, %v1579
      %v1582 = vsel %vm1167, %v1568, 0
      %v1585 = vsel %vm1167, %v1571, 0
      %v1588 = vsel %vm1167, %v1574, 0
      %v1591 = vsel %vm1167, %v1577, 0
      %v1594 = vsel %vm1167, %v1580, 0
      %v1597 = vsel %vm1183, %v1563, 0
      %1599 = vmatprep.subr.bf16.mxu0 0
      %1600 = vmatpush1.bf16.msra.mxu0 %v1597
      %1601 = vmatprep.subr.bf16.mxu0 0
      %1602 = vmatpush1.bf16.msra.mxu0 0
      %1603 = vmatprep.subr.bf16.mxu0 0
      %1604 = vmatpush1.bf16.msra.mxu0 0
      %1605 = vmatprep.subr.bf16.mxu0 0
      %1606 = vmatpush1.bf16.msra.mxu0 0
      %1607 = vmatprep.subr.bf16.mxu0 0
      %1608 = vmatpush1.bf16.msra.mxu0 0
      %1609 = vmatprep.subr.bf16.mxu0 0
      %1610 = vmatpush1.bf16.msra.mxu0 0
      %1611 = vmatprep.subr.bf16.mxu0 0
      %1612 = vmatpush1.bf16.msra.mxu0 0
      %1613 = vmatprep.subr.bf16.mxu0 0
      %1614 = vmatpush1.bf16.msra.mxu0 0
      %1615 = vmatprep.subr.bf16.mxu0 0
      %1616 = vmatpush1.bf16.msra.mxu0 0
      %1617 = vmatprep.subr.bf16.mxu0 0
      %1618 = vmatpush1.bf16.msra.mxu0 0
      %1619 = vmatprep.subr.bf16.mxu0 0
      %1620 = vmatpush1.bf16.msra.mxu0 0
      %1621 = vmatprep.subr.bf16.mxu0 0
      %1622 = vmatpush1.bf16.msra.mxu0 0
      %1623 = vmatprep.subr.bf16.mxu0 0
      %1624 = vmatpush1.bf16.msra.mxu0 0
      %1625 = vmatprep.subr.bf16.mxu0 0
      %1626 = vmatpush1.bf16.msra.mxu0 0
      %1627 = vmatprep.subr.bf16.mxu0 0
      %1628 = vmatpush1.bf16.msra.mxu0 0
      %1629 = vmatprep.subr.bf16.mxu0 0
      %1630 = vmatpush1.bf16.msra.mxu0 0
      %1631 = vmatprep.mubr.bf16.mxu0 0
      %1632 = vmatmul.mubr.bf16.gmra.mrb[0].mxu0 %v1582
      %v1633 = vpop.f32.mrb[0].mxu0
      %v1634 = vadd.f32 0.0, %v1633
      %v1635 = vpop.f32.mrb[0].mxu0
      %v1636 = vpop.f32.mrb[0].mxu0
      %v1637 = vadd.f32 0.0, %v1636
      %v1638 = vpop.f32.mrb[0].mxu0
      %1639 = vmatprep.mubr.bf16.mxu0 0
      %1640 = vmatmul.mubr.bf16.gmra.mrb[0].mxu0 %v1585
      %v1641 = vpop.f32.mrb[0].mxu0
      %v1642 = vadd.f32 0.0, %v1641
      %v1643 = vpop.f32.mrb[0].mxu0
      %v1644 = vpop.f32.mrb[0].mxu0
      %v1645 = vadd.f32 0.0, %v1644
      %v1646 = vpop.f32.mrb[0].mxu0
      %1647 = vmatprep.mubr.bf16.mxu0 0
      %1648 = vmatmul.mubr.bf16.gmra.mrb[0].mxu0 %v1588
      %v1649 = vpop.f32.mrb[0].mxu0
      %v1650 = vadd.f32 0.0, %v1649
      %v1651 = vpop.f32.mrb[0].mxu0
      %v1652 = vpop.f32.mrb[0].mxu0
      %v1653 = vadd.f32 0.0, %v1652
      %v1654 = vpop.f32.mrb[0].mxu0
      %1655 = vmatprep.mubr.bf16.mxu0 0
      %1656 = vmatmul.mubr.bf16.gmra.mrb[0].mxu0 %v1591
      %v1657 = vpop.f32.mrb[0].mxu0
      %v1658 = vadd.f32 0.0, %v1657
      %v1659 = vpop.f32.mrb[0].mxu0
      %v1660 = vpop.f32.mrb[0].mxu0
      %v1661 = vadd.f32 0.0, %v1660
      %v1662 = vpop.f32.mrb[0].mxu0
      %1663 = vmatprep.mubr.bf16.mxu0 0
      %1664 = vmatmul.mubr.bf16.gmra.mrb[0].mxu0 %v1594
      %v1665 = vpop.f32.mrb[0].mxu0
      %v1666 = vadd.f32 0.0, %v1665
      %v1667 = vpop.f32.mrb[0].mxu0
      %v1668 = vpop.f32.mrb[0].mxu0
      %v1669 = vadd.f32 0.0, %v1668
      %v1670 = vpop.f32.mrb[0].mxu0
      %1671 = vdwg.mxu0
      %v1672 = vadd.f32 %v1552, %v1634
      %v1673 = vadd.f32 %v1553, %v1637
      %v1674 = vadd.f32 %v1554, %v1642
      %v1675 = vadd.f32 %v1555, %v1645
      %v1676 = vadd.f32 %v1556, %v1650
      %v1677 = vadd.f32 %v1557, %v1653
      %v1678 = vadd.f32 %v1558, %v1658
      %v1679 = vadd.f32 %v1559, %v1661
      %v1680 = vadd.f32 %v1560, %v1666
      %v1681 = vadd.f32 %v1561, %v1669
      %s1682 = scalar_lea.vmem %s7, 16
      %v1683 = vld [vmem:[%s1682] sm:$0xf]
      %v1685 = vsel %vm1167, %v679, 0
      %v1688 = vsel %vm1167, %v680, 0
      %v1691 = vsel %vm1167, %v681, 0
      %v1694 = vsel %vm1167, %v682, 0
      %v1697 = vsel %vm1167, %v683, 0
      %v1700 = vsel %vm1183, %v1683, 0
      %1702 = vmatprep.subr.bf16.mxu0 0
      %1703 = vmatpush1.bf16.msra.mxu0 %v1700
      %1704 = vmatprep.subr.bf16.mxu0 0
      %1705 = vmatpush1.bf16.msra.mxu0 0
      %1706 = vmatprep.subr.bf16.mxu0 0
      %1707 = vmatpush1.bf16.msra.mxu0 0
      %1708 = vmatprep.subr.bf16.mxu0 0
      %1709 = vmatpush1.bf16.msra.mxu0 0
      %1710 = vmatprep.subr.bf16.mxu0 0
      %1711 = vmatpush1.bf16.msra.mxu0 0
      %1712 = vmatprep.subr.bf16.mxu0 0
      %1713 = vmatpush1.bf16.msra.mxu0 0
      %1714 = vmatprep.subr.bf16.mxu0 0
      %1715 = vmatpush1.bf16.msra.mxu0 0
      %1716 = vmatprep.subr.bf16.mxu0 0
      %1717 = vmatpush1.bf16.msra.mxu0 0
      %1718 = vmatprep.subr.bf16.mxu0 0
      %1719 = vmatpush1.bf16.msra.mxu0 0
      %1720 = vmatprep.subr.bf16.mxu0 0
      %1721 = vmatpush1.bf16.msra.mxu0 0
      %1722 = vmatprep.subr.bf16.mxu0 0
      %1723 = vmatpush1.bf16.msra.mxu0 0
      %1724 = vmatprep.subr.bf16.mxu0 0
      %1725 = vmatpush1.bf16.msra.mxu0 0
      %1726 = vmatprep.subr.bf16.mxu0 0
      %1727 = vmatpush1.bf16.msra.mxu0 0
      %1728 = vmatprep.subr.bf16.mxu0 0
      %1729 = vmatpush1.bf16.msra.mxu0 0
      %1730 = vmatprep.subr.bf16.mxu0 0
      %1731 = vmatpush1.bf16.msra.mxu0 0
      %1732 = vmatprep.subr.bf16.mxu0 0
      %1733 = vmatpush1.bf16.msra.mxu0 0
      %1734 = vmatprep.mubr.bf16.mxu0 0
      %1735 = vmatmul.mubr.bf16.gmra.mrb[0].mxu0 %v1685
      %v1736 = vpop.f32.mrb[0].mxu0
      %v1737 = vadd.f32 0.0, %v1736
      %v1738 = vpop.f32.mrb[0].mxu0
      %v1739 = vpop.f32.mrb[0].mxu0
      %v1740 = vadd.f32 0.0, %v1739
      %v1741 = vpop.f32.mrb[0].mxu0
      %1742 = vmatprep.mubr.bf16.mxu0 0
      %1743 = vmatmul.mubr.bf16.gmra.mrb[0].mxu0 %v1688
      %v1744 = vpop.f32.mrb[0].mxu0
      %v1745 = vadd.f32 0.0, %v1744
      %v1746 = vpop.f32.mrb[0].mxu0
      %v1747 = vpop.f32.mrb[0].mxu0
      %v1748 = vadd.f32 0.0, %v1747
      %v1749 = vpop.f32.mrb[0].mxu0
      %1750 = vmatprep.mubr.bf16.mxu0 0
      %1751 = vmatmul.mubr.bf16.gmra.mrb[0].mxu0 %v1691
      %v1752 = vpop.f32.mrb[0].mxu0
      %v1753 = vadd.f32 0.0, %v1752
      %v1754 = vpop.f32.mrb[0].mxu0
      %v1755 = vpop.f32.mrb[0].mxu0
      %v1756 = vadd.f32 0.0, %v1755
      %v1757 = vpop.f32.mrb[0].mxu0
      %1758 = vmatprep.mubr.bf16.mxu0 0
      %1759 = vmatmul.mubr.bf16.gmra.mrb[0].mxu0 %v1694
      %v1760 = vpop.f32.mrb[0].mxu0
      %v1761 = vadd.f32 0.0, %v1760
      %v1762 = vpop.f32.mrb[0].mxu0
      %v1763 = vpop.f32.mrb[0].mxu0
      %v1764 = vadd.f32 0.0, %v1763
      %v1765 = vpop.f32.mrb[0].mxu0
      %1766 = vmatprep.mubr.bf16.mxu0 0
      %1767 = vmatmul.mubr.bf16.gmra.mrb[0].mxu0 %v1697
      %v1768 = vpop.f32.mrb[0].mxu0
      %v1769 = vadd.f32 0.0, %v1768
      %v1770 = vpop.f32.mrb[0].mxu0
      %v1771 = vpop.f32.mrb[0].mxu0
      %v1772 = vadd.f32 0.0, %v1771
      %v1773 = vpop.f32.mrb[0].mxu0
      %1774 = vdwg.mxu0
      %v1775 = vadd.f32 %v1672, %v1737
      %v1776 = vadd.f32 %v1673, %v1740
      %v1777 = vadd.f32 %v1674, %v1745
      %v1778 = vadd.f32 %v1675, %v1748
      %v1779 = vadd.f32 %v1676, %v1753
      %v1780 = vadd.f32 %v1677, %v1756
      %v1781 = vadd.f32 %v1678, %v1761
      %v1782 = vadd.f32 %v1679, %v1764
      %v1783 = vadd.f32 %v1680, %v1769
      %v1784 = vadd.f32 %v1681, %v1772
      %s1785 = scalar_lea.vmem %s7, 20
      %v1786 = vld [vmem:[%s1785] sm:$0xf]
      %vm1787 = vsmask.f32 7424
      %v1788 = vrot.slane %v1420, 1
      %v1789 = vor.u32 %v1417, %v1788
      %v1790 = vrot.slane %v1429, 1
      %v1791 = vsel %vm1787, %v1789, %v1790
      %v1792 = vor.u32 %v1426, %v1790
      %v1793 = vrot.slane %v1438, 1
      %v1794 = vsel %vm1787, %v1792, %v1793
      %v1795 = vor.u32 %v1435, %v1793
      %v1796 = vrot.slane %v1447, 1
      %v1797 = vsel %vm1787, %v1795, %v1796
      %v1798 = vor.u32 %v1444, %v1796
      %v1799 = vrot.slane %v1456, 1
      %v1800 = vsel %vm1787, %v1798, %v1799
      %v1801 = vor.u32 %v1453, %v1799
      %v1803 = vshll.u32 %v1145, 16
      %v1805 = vrot.slane %v1803, 1
      %v1806 = vsel %vm1787, %v1801, %v1805
      %v1808 = vsel %vm1167, %v1791, 0
      %v1811 = vsel %vm1167, %v1794, 0
      %v1814 = vsel %vm1167, %v1797, 0
      %v1817 = vsel %vm1167, %v1800, 0
      %v1820 = vsel %vm1167, %v1806, 0
      %v1823 = vsel %vm1183, %v1786, 0
      %1825 = vmatprep.subr.bf16.mxu0 0
      %1826 = vmatpush1.bf16.msra.mxu0 %v1823
      %1827 = vmatprep.subr.bf16.mxu0 0
      %1828 = vmatpush1.bf16.msra.mxu0 0
      %1829 = vmatprep.subr.bf16.mxu0 0
      %1830 = vmatpush1.bf16.msra.mxu0 0
      %1831 = vmatprep.subr.bf16.mxu0 0
      %1832 = vmatpush1.bf16.msra.mxu0 0
      %1833 = vmatprep.subr.bf16.mxu0 0
      %1834 = vmatpush1.bf16.msra.mxu0 0
      %1835 = vmatprep.subr.bf16.mxu0 0
      %1836 = vmatpush1.bf16.msra.mxu0 0
      %1837 = vmatprep.subr.bf16.mxu0 0
      %1838 = vmatpush1.bf16.msra.mxu0 0
      %1839 = vmatprep.subr.bf16.mxu0 0
      %1840 = vmatpush1.bf16.msra.mxu0 0
      %1841 = vmatprep.subr.bf16.mxu0 0
      %1842 = vmatpush1.bf16.msra.mxu0 0
      %1843 = vmatprep.subr.bf16.mxu0 0
      %1844 = vmatpush1.bf16.msra.mxu0 0
      %1845 = vmatprep.subr.bf16.mxu0 0
      %1846 = vmatpush1.bf16.msra.mxu0 0
      %1847 = vmatprep.subr.bf16.mxu0 0
      %1848 = vmatpush1.bf16.msra.mxu0 0
      %1849 = vmatprep.subr.bf16.mxu0 0
      %1850 = vmatpush1.bf16.msra.mxu0 0
      %1851 = vmatprep.subr.bf16.mxu0 0
      %1852 = vmatpush1.bf16.msra.mxu0 0
      %1853 = vmatprep.subr.bf16.mxu0 0
      %1854 = vmatpush1.bf16.msra.mxu0 0
      %1855 = vmatprep.subr.bf16.mxu0 0
      %1856 = vmatpush1.bf16.msra.mxu0 0
      %1857 = vmatprep.mubr.bf16.mxu0 0
      %1858 = vmatmul.mubr.bf16.gmra.mrb[0].mxu0 %v1808
      %v1859 = vpop.f32.mrb[0].mxu0
      %v1860 = vadd.f32 0.0, %v1859
      %v1861 = vpop.f32.mrb[0].mxu0
      %v1862 = vpop.f32.mrb[0].mxu0
      %v1863 = vadd.f32 0.0, %v1862
      %v1864 = vpop.f32.mrb[0].mxu0
      %1865 = vmatprep.mubr.bf16.mxu0 0
      %1866 = vmatmul.mubr.bf16.gmra.mrb[0].mxu0 %v1811
      %v1867 = vpop.f32.mrb[0].mxu0
      %v1868 = vadd.f32 0.0, %v1867
      %v1869 = vpop.f32.mrb[0].mxu0
      %v1870 = vpop.f32.mrb[0].mxu0
      %v1871 = vadd.f32 0.0, %v1870
      %v1872 = vpop.f32.mrb[0].mxu0
      %1873 = vmatprep.mubr.bf16.mxu0 0
      %1874 = vmatmul.mubr.bf16.gmra.mrb[0].mxu0 %v1814
      %v1875 = vpop.f32.mrb[0].mxu0
      %v1876 = vadd.f32 0.0, %v1875
      %v1877 = vpop.f32.mrb[0].mxu0
      %v1878 = vpop.f32.mrb[0].mxu0
      %v1879 = vadd.f32 0.0, %v1878
      %v1880 = vpop.f32.mrb[0].mxu0
      %1881 = vmatprep.mubr.bf16.mxu0 0
      %1882 = vmatmul.mubr.bf16.gmra.mrb[0].mxu0 %v1817
      %v1883 = vpop.f32.mrb[0].mxu0
      %v1884 = vadd.f32 0.0, %v1883
      %v1885 = vpop.f32.mrb[0].mxu0
      %v1886 = vpop.f32.mrb[0].mxu0
      %v1887 = vadd.f32 0.0, %v1886
      %v1888 = vpop.f32.mrb[0].mxu0
      %1889 = vmatprep.mubr.bf16.mxu0 0
      %1890 = vmatmul.mubr.bf16.gmra.mrb[0].mxu0 %v1820
      %v1891 = vpop.f32.mrb[0].mxu0
      %v1892 = vadd.f32 0.0, %v1891
      %v1893 = vpop.f32.mrb[0].mxu0
      %v1894 = vpop.f32.mrb[0].mxu0
      %v1895 = vadd.f32 0.0, %v1894
      %v1896 = vpop.f32.mrb[0].mxu0
      %1897 = vdwg.mxu0
      %v1898 = vadd.f32 %v1775, %v1860
      %v1899 = vadd.f32 %v1776, %v1863
      %v1900 = vadd.f32 %v1777, %v1868
      %v1901 = vadd.f32 %v1778, %v1871
      %v1902 = vadd.f32 %v1779, %v1876
      %v1903 = vadd.f32 %v1780, %v1879
      %v1904 = vadd.f32 %v1781, %v1884
      %v1905 = vadd.f32 %v1782, %v1887
      %v1906 = vadd.f32 %v1783, %v1892
      %v1907 = vadd.f32 %v1784, %v1895
      %s1908 = scalar_lea.vmem %s7, 24
      %v1909 = vld [vmem:[%s1908] sm:$0xf]
      %v1911 = vshrl.u32 %v928, 16
      %v1913 = vrot.slane %v1911, 3
      %v1914 = vshll.u32 %v928, 16
      %v1916 = vrot.slane %v1914, 4
      %v1917 = vor.u32 %v1913, %v1916
      %v1918 = vsel %vm1260, %v1312, %v1917
      %v1920 = vsel %vm1167, %v1918, 0
      %v1923 = vsel %vm1183, %v1909, 0
      %1925 = vmatprep.subr.bf16.mxu0 0
      %1926 = vmatpush1.bf16.msra.mxu0 %v1923
      %1927 = vmatprep.subr.bf16.mxu0 0
      %1928 = vmatpush1.bf16.msra.mxu0 0
      %1929 = vmatprep.subr.bf16.mxu0 0
      %1930 = vmatpush1.bf16.msra.mxu0 0
      %1931 = vmatprep.subr.bf16.mxu0 0
      %1932 = vmatpush1.bf16.msra.mxu0 0
      %1933 = vmatprep.subr.bf16.mxu0 0
      %1934 = vmatpush1.bf16.msra.mxu0 0
      %1935 = vmatprep.subr.bf16.mxu0 0
      %1936 = vmatpush1.bf16.msra.mxu0 0
      %1937 = vmatprep.subr.bf16.mxu0 0
      %1938 = vmatpush1.bf16.msra.mxu0 0
      %1939 = vmatprep.subr.bf16.mxu0 0
      %1940 = vmatpush1.bf16.msra.mxu0 0
      %1941 = vmatprep.subr.bf16.mxu0 0
      %1942 = vmatpush1.bf16.msra.mxu0 0
      %1943 = vmatprep.subr.bf16.mxu0 0
      %1944 = vmatpush1.bf16.msra.mxu0 0
      %1945 = vmatprep.subr.bf16.mxu0 0
      %1946 = vmatpush1.bf16.msra.mxu0 0
      %1947 = vmatprep.subr.bf16.mxu0 0
      %1948 = vmatpush1.bf16.msra.mxu0 0
      %1949 = vmatprep.subr.bf16.mxu0 0
      %1950 = vmatpush1.bf16.msra.mxu0 0
      %1951 = vmatprep.subr.bf16.mxu0 0
      %1952 = vmatpush1.bf16.msra.mxu0 0
      %1953 = vmatprep.subr.bf16.mxu0 0
      %1954 = vmatpush1.bf16.msra.mxu0 0
      %1955 = vmatprep.subr.bf16.mxu0 0
      %1956 = vmatpush1.bf16.msra.mxu0 0
      %1957 = vmatprep.mubr.bf16.mxu0 0
      %1958 = vmatmul.mubr.bf16.gmra.mrb[0].mxu0 %v1318
      %v1959 = vpop.f32.mrb[0].mxu0
      %v1960 = vadd.f32 0.0, %v1959
      %v1961 = vpop.f32.mrb[0].mxu0
      %v1962 = vpop.f32.mrb[0].mxu0
      %v1963 = vadd.f32 0.0, %v1962
      %v1964 = vpop.f32.mrb[0].mxu0
      %1965 = vmatprep.mubr.bf16.mxu0 0
      %1966 = vmatmul.mubr.bf16.gmra.mrb[0].mxu0 %v1321
      %v1967 = vpop.f32.mrb[0].mxu0
      %v1968 = vadd.f32 0.0, %v1967
      %v1969 = vpop.f32.mrb[0].mxu0
      %v1970 = vpop.f32.mrb[0].mxu0
      %v1971 = vadd.f32 0.0, %v1970
      %v1972 = vpop.f32.mrb[0].mxu0
      %1973 = vmatprep.mubr.bf16.mxu0 0
      %1974 = vmatmul.mubr.bf16.gmra.mrb[0].mxu0 %v1324
      %v1975 = vpop.f32.mrb[0].mxu0
      %v1976 = vadd.f32 0.0, %v1975
      %v1977 = vpop.f32.mrb[0].mxu0
      %v1978 = vpop.f32.mrb[0].mxu0
      %v1979 = vadd.f32 0.0, %v1978
      %v1980 = vpop.f32.mrb[0].mxu0
      %1981 = vmatprep.mubr.bf16.mxu0 0
      %1982 = vmatmul.mubr.bf16.gmra.mrb[0].mxu0 %v1327
      %v1983 = vpop.f32.mrb[0].mxu0
      %v1984 = vadd.f32 0.0, %v1983
      %v1985 = vpop.f32.mrb[0].mxu0
      %v1986 = vpop.f32.mrb[0].mxu0
      %v1987 = vadd.f32 0.0, %v1986
      %v1988 = vpop.f32.mrb[0].mxu0
      %1989 = vmatprep.mubr.bf16.mxu0 0
      %1990 = vmatmul.mubr.bf16.gmra.mrb[0].mxu0 %v1920
      %v1991 = vpop.f32.mrb[0].mxu0
      %v1992 = vadd.f32 0.0, %v1991
      %v1993 = vpop.f32.mrb[0].mxu0
      %v1994 = vpop.f32.mrb[0].mxu0
      %v1995 = vadd.f32 0.0, %v1994
      %v1996 = vpop.f32.mrb[0].mxu0
      %1997 = vdwg.mxu0
      %v1998 = vadd.f32 %v1898, %v1960
      %v1999 = vadd.f32 %v1899, %v1963
      %v2000 = vadd.f32 %v1900, %v1968
      %v2001 = vadd.f32 %v1901, %v1971
      %v2002 = vadd.f32 %v1902, %v1976
      %v2003 = vadd.f32 %v1903, %v1979
      %v2004 = vadd.f32 %v1904, %v1984
      %v2005 = vadd.f32 %v1905, %v1987
      %v2006 = vadd.f32 %v1906, %v1992
      %v2007 = vadd.f32 %v1907, %v1995
      %s2008 = scalar_lea.vmem %s7, 28
      %v2009 = vld [vmem:[%s2008] sm:$0xf]
      %v2010 = vsel %vm1155, %v1165, %v1156
      %v2012 = vsel %vm1167, %v2010, 0
      %v2015 = vsel %vm1183, %v2009, 0
      %2017 = vmatprep.subr.bf16.mxu0 0
      %2018 = vmatpush1.bf16.msra.mxu0 %v2015
      %2019 = vmatprep.subr.bf16.mxu0 0
      %2020 = vmatpush1.bf16.msra.mxu0 0
      %2021 = vmatprep.subr.bf16.mxu0 0
      %2022 = vmatpush1.bf16.msra.mxu0 0
      %2023 = vmatprep.subr.bf16.mxu0 0
      %2024 = vmatpush1.bf16.msra.mxu0 0
      %2025 = vmatprep.subr.bf16.mxu0 0
      %2026 = vmatpush1.bf16.msra.mxu0 0
      %2027 = vmatprep.subr.bf16.mxu0 0
      %2028 = vmatpush1.bf16.msra.mxu0 0
      %2029 = vmatprep.subr.bf16.mxu0 0
      %2030 = vmatpush1.bf16.msra.mxu0 0
      %2031 = vmatprep.subr.bf16.mxu0 0
      %2032 = vmatpush1.bf16.msra.mxu0 0
      %2033 = vmatprep.subr.bf16.mxu0 0
      %2034 = vmatpush1.bf16.msra.mxu0 0
      %2035 = vmatprep.subr.bf16.mxu0 0
      %2036 = vmatpush1.bf16.msra.mxu0 0
      %2037 = vmatprep.subr.bf16.mxu0 0
      %2038 = vmatpush1.bf16.msra.mxu0 0
      %2039 = vmatprep.subr.bf16.mxu0 0
      %2040 = vmatpush1.bf16.msra.mxu0 0
      %2041 = vmatprep.subr.bf16.mxu0 0
      %2042 = vmatpush1.bf16.msra.mxu0 0
      %2043 = vmatprep.subr.bf16.mxu0 0
      %2044 = vmatpush1.bf16.msra.mxu0 0
      %2045 = vmatprep.subr.bf16.mxu0 0
      %2046 = vmatpush1.bf16.msra.mxu0 0
      %2047 = vmatprep.subr.bf16.mxu0 0
      %2048 = vmatpush1.bf16.msra.mxu0 0
      %2049 = vmatprep.mubr.bf16.mxu0 0
      %2050 = vmatmul.mubr.bf16.gmra.mrb[0].mxu0 %v1172
      %v2051 = vpop.f32.mrb[0].mxu0
      %v2052 = vadd.f32 0.0, %v2051
      %v2053 = vpop.f32.mrb[0].mxu0
      %v2054 = vpop.f32.mrb[0].mxu0
      %v2055 = vadd.f32 0.0, %v2054
      %v2056 = vpop.f32.mrb[0].mxu0
      %2057 = vmatprep.mubr.bf16.mxu0 0
      %2058 = vmatmul.mubr.bf16.gmra.mrb[0].mxu0 %v1175
      %v2059 = vpop.f32.mrb[0].mxu0
      %v2060 = vadd.f32 0.0, %v2059
      %v2061 = vpop.f32.mrb[0].mxu0
      %v2062 = vpop.f32.mrb[0].mxu0
      %v2063 = vadd.f32 0.0, %v2062
      %v2064 = vpop.f32.mrb[0].mxu0
      %2065 = vmatprep.mubr.bf16.mxu0 0
      %2066 = vmatmul.mubr.bf16.gmra.mrb[0].mxu0 %v1178
      %v2067 = vpop.f32.mrb[0].mxu0
      %v2068 = vadd.f32 0.0, %v2067
      %v2069 = vpop.f32.mrb[0].mxu0
      %v2070 = vpop.f32.mrb[0].mxu0
      %v2071 = vadd.f32 0.0, %v2070
      %v2072 = vpop.f32.mrb[0].mxu0
      %2073 = vmatprep.mubr.bf16.mxu0 0
      %2074 = vmatmul.mubr.bf16.gmra.mrb[0].mxu0 %v1181
      %v2075 = vpop.f32.mrb[0].mxu0
      %v2076 = vadd.f32 0.0, %v2075
      %v2077 = vpop.f32.mrb[0].mxu0
      %v2078 = vpop.f32.mrb[0].mxu0
      %v2079 = vadd.f32 0.0, %v2078
      %v2080 = vpop.f32.mrb[0].mxu0
      %2081 = vmatprep.mubr.bf16.mxu0 0
      %2082 = vmatmul.mubr.bf16.gmra.mrb[0].mxu0 %v2012
      %v2083 = vpop.f32.mrb[0].mxu0
      %v2084 = vadd.f32 0.0, %v2083
      %v2085 = vpop.f32.mrb[0].mxu0
      %v2086 = vpop.f32.mrb[0].mxu0
      %v2087 = vadd.f32 0.0, %v2086
      %v2088 = vpop.f32.mrb[0].mxu0
      %2089 = vdwg.mxu0
      %v2090 = vadd.f32 %v1998, %v2052
      %v2091 = vadd.f32 %v1999, %v2055
      %v2092 = vadd.f32 %v2000, %v2060
      %v2093 = vadd.f32 %v2001, %v2063
      %v2094 = vadd.f32 %v2002, %v2068
      %v2095 = vadd.f32 %v2003, %v2071
      %v2096 = vadd.f32 %v2004, %v2076
      %v2097 = vadd.f32 %v2005, %v2079
      %v2098 = vadd.f32 %v2006, %v2084
      %v2099 = vadd.f32 %v2007, %v2087
      %s2100 = scalar_lea.vmem %s7, 32
      %v2101 = vld [vmem:[%s2100] sm:$0xf]
      %v2102 = vshrl.u32 %v1145, 16
      %v2104 = vrot.slane %v2102, 4
      %v2105 = vrot.slane %v1803, 5
      %v2106 = vor.u32 %v2104, %v2105
      %v2107 = vsel %vm1407, %v1459, %v2106
      %v2109 = vsel %vm1167, %v2107, 0
      %v2112 = vsel %vm1183, %v2101, 0
      %2114 = vmatprep.subr.bf16.mxu0 0
      %2115 = vmatpush1.bf16.msra.mxu0 %v2112
      %2116 = vmatprep.subr.bf16.mxu0 0
      %2117 = vmatpush1.bf16.msra.mxu0 0
      %2118 = vmatprep.subr.bf16.mxu0 0
      %2119 = vmatpush1.bf16.msra.mxu0 0
      %2120 = vmatprep.subr.bf16.mxu0 0
      %2121 = vmatpush1.bf16.msra.mxu0 0
      %2122 = vmatprep.subr.bf16.mxu0 0
      %2123 = vmatpush1.bf16.msra.mxu0 0
      %2124 = vmatprep.subr.bf16.mxu0 0
      %2125 = vmatpush1.bf16.msra.mxu0 0
      %2126 = vmatprep.subr.bf16.mxu0 0
      %2127 = vmatpush1.bf16.msra.mxu0 0
      %2128 = vmatprep.subr.bf16.mxu0 0
      %2129 = vmatpush1.bf16.msra.mxu0 0
      %2130 = vmatprep.subr.bf16.mxu0 0
      %2131 = vmatpush1.bf16.msra.mxu0 0
      %2132 = vmatprep.subr.bf16.mxu0 0
      %2133 = vmatpush1.bf16.msra.mxu0 0
      %2134 = vmatprep.subr.bf16.mxu0 0
      %2135 = vmatpush1.bf16.msra.mxu0 0
      %2136 = vmatprep.subr.bf16.mxu0 0
      %2137 = vmatpush1.bf16.msra.mxu0 0
      %2138 = vmatprep.subr.bf16.mxu0 0
      %2139 = vmatpush1.bf16.msra.mxu0 0
      %2140 = vmatprep.subr.bf16.mxu0 0
      %2141 = vmatpush1.bf16.msra.mxu0 0
      %2142 = vmatprep.subr.bf16.mxu0 0
      %2143 = vmatpush1.bf16.msra.mxu0 0
      %2144 = vmatprep.subr.bf16.mxu0 0
      %2145 = vmatpush1.bf16.msra.mxu0 0
      %2146 = vmatprep.mubr.bf16.mxu0 0
      %2147 = vmatmul.mubr.bf16.gmra.mrb[0].mxu0 %v1465
      %v2148 = vpop.f32.mrb[0].mxu0
      %v2149 = vadd.f32 0.0, %v2148
      %v2150 = vpop.f32.mrb[0].mxu0
      %v2151 = vpop.f32.mrb[0].mxu0
      %v2152 = vadd.f32 0.0, %v2151
      %v2153 = vpop.f32.mrb[0].mxu0
      %2154 = vmatprep.mubr.bf16.mxu0 0
      %2155 = vmatmul.mubr.bf16.gmra.mrb[0].mxu0 %v1468
      %v2156 = vpop.f32.mrb[0].mxu0
      %v2157 = vadd.f32 0.0, %v2156
      %v2158 = vpop.f32.mrb[0].mxu0
      %v2159 = vpop.f32.mrb[0].mxu0
      %v2160 = vadd.f32 0.0, %v2159
      %v2161 = vpop.f32.mrb[0].mxu0
      %2162 = vmatprep.mubr.bf16.mxu0 0
      %2163 = vmatmul.mubr.bf16.gmra.mrb[0].mxu0 %v1471
      %v2164 = vpop.f32.mrb[0].mxu0
      %v2165 = vadd.f32 0.0, %v2164
      %v2166 = vpop.f32.mrb[0].mxu0
      %v2167 = vpop.f32.mrb[0].mxu0
      %v2168 = vadd.f32 0.0, %v2167
      %v2169 = vpop.f32.mrb[0].mxu0
      %2170 = vmatprep.mubr.bf16.mxu0 0
      %2171 = vmatmul.mubr.bf16.gmra.mrb[0].mxu0 %v1474
      %v2172 = vpop.f32.mrb[0].mxu0
      %v2173 = vadd.f32 0.0, %v2172
      %v2174 = vpop.f32.mrb[0].mxu0
      %v2175 = vpop.f32.mrb[0].mxu0
      %v2176 = vadd.f32 0.0, %v2175
      %v2177 = vpop.f32.mrb[0].mxu0
      %2178 = vmatprep.mubr.bf16.mxu0 0
      %2179 = vmatmul.mubr.bf16.gmra.mrb[0].mxu0 %v2109
      %v2180 = vpop.f32.mrb[0].mxu0
      %v2181 = vadd.f32 0.0, %v2180
      %v2182 = vpop.f32.mrb[0].mxu0
      %v2183 = vpop.f32.mrb[0].mxu0
      %v2184 = vadd.f32 0.0, %v2183
      %v2185 = vpop.f32.mrb[0].mxu0
      %2186 = vdwg.mxu0
      %v2187 = vadd.f32 %v2090, %v2149
      %v2188 = vadd.f32 %v2091, %v2152
      %v2189 = vadd.f32 %v2092, %v2157
      %v2190 = vadd.f32 %v2093, %v2160
      %v2191 = vadd.f32 %v2094, %v2165
      %v2192 = vadd.f32 %v2095, %v2168
      %v2193 = vadd.f32 %v2096, %v2173
      %v2194 = vadd.f32 %v2097, %v2176
      %v2195 = vadd.f32 %v2098, %v2181
      %v2196 = vadd.f32 %v2099, %v2184
      %v2197 = vld [vmem:[%s8] sm:$0x1]
      %v2199 = vlaneseq
      %v2200 = vshrl.u32 %v2199, 7
      %v2201 = vsub.s32 0, %v2200
      %v2202 = vrot.slane %v2197, %v2201
      %v2204 = vadd.f32 %v2187, %v2202
      %v2205 = vadd.f32 %v2188, %v2202
      %v2206 = vadd.f32 %v2189, %v2202
      %v2207 = vadd.f32 %v2190, %v2202
      %v2208 = vadd.f32 %v2191, %v2202
      %v2209 = vadd.f32 %v2192, %v2202
      %v2210 = vadd.f32 %v2193, %v2202
      %v2211 = vadd.f32 %v2194, %v2202
      %v2212 = vadd.f32 %v2195, %v2202
      %v2213 = vadd.f32 %v2196, %v2202
      %v2214 = vmax.f32 %v2204, 0.0
      %v2215 = vmax.f32 %v2205, 0.0
      %v2216 = vmax.f32 %v2206, 0.0
      %v2217 = vmax.f32 %v2207, 0.0
      %v2218 = vmax.f32 %v2208, 0.0
      %v2219 = vmax.f32 %v2209, 0.0
      %v2220 = vmax.f32 %v2210, 0.0
      %v2221 = vmax.f32 %v2211, 0.0
      %v2222 = vmax.f32 %v2212, 0.0
      %v2223 = vmax.f32 %v2213, 0.0
      %v2224 = vpack.c.bf16 %v2215, %v2214
      %v2225 = vpack.c.bf16 %v2217, %v2216
      %v2226 = vpack.c.bf16 %v2219, %v2218
      %v2227 = vpack.c.bf16 %v2221, %v2220
      %v2228 = vpack.c.bf16 %v2223, %v2222
      %v2229 = vld [vmem:[%s9] sm:$0xf]
      %v2230 = vld [vmem:[%s9 + $0x4] sm:$0xf]
      %v2231 = vld [vmem:[%s9 + $0x8] sm:$0xf]
      %v2232 = vld [vmem:[%s9 + $0xc] sm:$0xf]
      %v2233 = vld [vmem:[%s10] sm:$0x1]
      %v2235 = vlaneseq
      %v2236 = vshrl.u32 %v2235, 7
      %v2237 = vsub.s32 0, %v2236
      %v2238 = vrot.slane %v2233, %v2237
      %v2244 = vunpack.c.l.b16 %v2229
      %v2245 = vunpack.c.l.b16 %v2230
      %v2246 = vunpack.c.l.b16 %v2231
      %v2247 = vunpack.c.l.b16 %v2232
      %v2248 = vpack.c.b16 %v2245, %v2244
      %v2249 = vpack.c.b16 %v2247, %v2246
      %vm2252 = vcmask 261120
      %v2254 = vsel %vm2252, %v2224, 0
      %v2257 = vsel %vm2252, %v2225, 0
      %v2260 = vsel %vm2252, %v2226, 0
      %v2263 = vsel %vm2252, %v2227, 0
      %v2266 = vsel %vm2252, %v2228, 0
      %2268 = vmatprep.subr.bf16.mxu0 0
      %2269 = vmatpush1.bf16.msra.mxu0 %v2248
      %2270 = vmatprep.subr.bf16.mxu0 0
      %2271 = vmatpush1.bf16.msra.mxu0 %v2249
      %2272 = vmatprep.subr.bf16.mxu0 0
      %2273 = vmatpush1.bf16.msra.mxu0 0
      %2274 = vmatprep.subr.bf16.mxu0 0
      %2275 = vmatpush1.bf16.msra.mxu0 0
      %2276 = vmatprep.subr.bf16.mxu0 0
      %2277 = vmatpush1.bf16.msra.mxu0 0
      %2278 = vmatprep.subr.bf16.mxu0 0
      %2279 = vmatpush1.bf16.msra.mxu0 0
      %2280 = vmatprep.subr.bf16.mxu0 0
      %2281 = vmatpush1.bf16.msra.mxu0 0
      %2282 = vmatprep.subr.bf16.mxu0 0
      %2283 = vmatpush1.bf16.msra.mxu0 0
      %2284 = vmatprep.subr.bf16.mxu0 0
      %2285 = vmatpush1.bf16.msra.mxu0 0
      %2286 = vmatprep.subr.bf16.mxu0 0
      %2287 = vmatpush1.bf16.msra.mxu0 0
      %2288 = vmatprep.subr.bf16.mxu0 0
      %2289 = vmatpush1.bf16.msra.mxu0 0
      %2290 = vmatprep.subr.bf16.mxu0 0
      %2291 = vmatpush1.bf16.msra.mxu0 0
      %2292 = vmatprep.subr.bf16.mxu0 0
      %2293 = vmatpush1.bf16.msra.mxu0 0
      %2294 = vmatprep.subr.bf16.mxu0 0
      %2295 = vmatpush1.bf16.msra.mxu0 0
      %2296 = vmatprep.subr.bf16.mxu0 0
      %2297 = vmatpush1.bf16.msra.mxu0 0
      %2298 = vmatprep.subr.bf16.mxu0 0
      %2299 = vmatpush1.bf16.msra.mxu0 0
      %2300 = vmatprep.mubr.bf16.mxu0 0
      %2301 = vmatmul.mubr.bf16.gmra.mrb[0].mxu0 %v2254
      %v2302 = vpop.f32.mrb[0].mxu0
      %v2303 = vadd.f32 %v2238, %v2302
      %v2304 = vpop.f32.mrb[0].mxu0
      %v2305 = vpop.f32.mrb[0].mxu0
      %v2306 = vadd.f32 %v2238, %v2305
      %v2307 = vpop.f32.mrb[0].mxu0
      %2308 = vmatprep.mubr.bf16.mxu0 0
      %2309 = vmatmul.mubr.bf16.gmra.mrb[0].mxu0 %v2257
      %v2310 = vpop.f32.mrb[0].mxu0
      %v2311 = vadd.f32 %v2238, %v2310
      %v2312 = vpop.f32.mrb[0].mxu0
      %v2313 = vpop.f32.mrb[0].mxu0
      %v2314 = vadd.f32 %v2238, %v2313
      %v2315 = vpop.f32.mrb[0].mxu0
      %2316 = vmatprep.mubr.bf16.mxu0 0
      %2317 = vmatmul.mubr.bf16.gmra.mrb[0].mxu0 %v2260
      %v2318 = vpop.f32.mrb[0].mxu0
      %v2319 = vadd.f32 %v2238, %v2318
      %v2320 = vpop.f32.mrb[0].mxu0
      %v2321 = vpop.f32.mrb[0].mxu0
      %v2322 = vadd.f32 %v2238, %v2321
      %v2323 = vpop.f32.mrb[0].mxu0
      %2324 = vmatprep.mubr.bf16.mxu0 0
      %2325 = vmatmul.mubr.bf16.gmra.mrb[0].mxu0 %v2263
      %v2326 = vpop.f32.mrb[0].mxu0
      %v2327 = vadd.f32 %v2238, %v2326
      %v2328 = vpop.f32.mrb[0].mxu0
      %v2329 = vpop.f32.mrb[0].mxu0
      %v2330 = vadd.f32 %v2238, %v2329
      %v2331 = vpop.f32.mrb[0].mxu0
      %2332 = vmatprep.mubr.bf16.mxu0 0
      %2333 = vmatmul.mubr.bf16.gmra.mrb[0].mxu0 %v2266
      %v2334 = vpop.f32.mrb[0].mxu0
      %v2335 = vadd.f32 %v2238, %v2334
      %v2336 = vpop.f32.mrb[0].mxu0
      %v2337 = vpop.f32.mrb[0].mxu0
      %v2338 = vadd.f32 %v2238, %v2337
      %v2339 = vpop.f32.mrb[0].mxu0
      %2340 = vdwg.mxu0
      %v2341 = vmax.f32 %v2303, 0.0
      %v2342 = vmax.f32 %v2306, 0.0
      %v2343 = vmax.f32 %v2311, 0.0
      %v2344 = vmax.f32 %v2314, 0.0
      %v2345 = vmax.f32 %v2319, 0.0
      %v2346 = vmax.f32 %v2322, 0.0
      %v2347 = vmax.f32 %v2327, 0.0
      %v2348 = vmax.f32 %v2330, 0.0
      %v2349 = vmax.f32 %v2335, 0.0
      %v2350 = vmax.f32 %v2338, 0.0
      %v2351 = vld [vmem:[%s5] sm:$0xff]
      %v2352 = vld [vmem:[%s5 + $0x8] sm:$0xff]
      %v2353 = vld [vmem:[%s5 + $0x10] sm:$0xff]
      %v2354 = vld [vmem:[%s5 + $0x18] sm:$0xff]
      %v2355 = vld [vmem:[%s5 + $0x20] sm:$0xff]
      %v2356 = vld [vmem:[%s5 + $0x28] sm:$0xff]
      %v2357 = vld [vmem:[%s5 + $0x30] sm:$0xff]
      %v2358 = vld [vmem:[%s5 + $0x38] sm:$0xff]
      %v2359 = vld [vmem:[%s5 + $0x40] sm:$0xff]
      %v2360 = vld [vmem:[%s5 + $0x48] sm:$0xff]
      %2362 = vset.pattern.permute.xlu0 0
      %2363 = vperm.xlu0 %2362, %v2351
      %v2364 = vpop.permute.xlu0 %2363
      %2367 = vset.pattern.permute.xlu0 0
      %2368 = vperm.xlu0 %2367, %v2352
      %v2369 = vpop.permute.xlu0 %2368
      %2372 = vset.pattern.permute.xlu0 0
      %2373 = vperm.xlu0 %2372, %v2353
      %v2374 = vpop.permute.xlu0 %2373
      %2377 = vset.pattern.permute.xlu0 0
      %2378 = vperm.xlu0 %2377, %v2354
      %v2379 = vpop.permute.xlu0 %2378
      %2382 = vset.pattern.permute.xlu0 0
      %2383 = vperm.xlu0 %2382, %v2355
      %v2384 = vpop.permute.xlu0 %2383
      %2387 = vset.pattern.permute.xlu0 0
      %2388 = vperm.xlu0 %2387, %v2356
      %v2389 = vpop.permute.xlu0 %2388
      %2392 = vset.pattern.permute.xlu0 0
      %2393 = vperm.xlu0 %2392, %v2357
      %v2394 = vpop.permute.xlu0 %2393
      %2397 = vset.pattern.permute.xlu0 0
      %2398 = vperm.xlu0 %2397, %v2358
      %v2399 = vpop.permute.xlu0 %2398
      %2402 = vset.pattern.permute.xlu0 0
      %2403 = vperm.xlu0 %2402, %v2359
      %v2404 = vpop.permute.xlu0 %2403
      %2407 = vset.pattern.permute.xlu0 0
      %2408 = vperm.xlu0 %2407, %v2360
      %v2409 = vpop.permute.xlu0 %2408
      %v2411 = vmul.f32 %v2341, %v2364
      %v2412 = vmul.f32 %v2342, %v2369
      %v2413 = vmul.f32 %v2343, %v2374
      %v2414 = vmul.f32 %v2344, %v2379
      %v2415 = vmul.f32 %v2345, %v2384
      %v2416 = vmul.f32 %v2346, %v2389
      %v2417 = vmul.f32 %v2347, %v2394
      %v2418 = vmul.f32 %v2348, %v2399
      %v2419 = vmul.f32 %v2349, %v2404
      %v2420 = vmul.f32 %v2350, %v2409
      %v2421 = vpack.c.bf16 %v2412, %v2411
      %v2422 = vpack.c.bf16 %v2414, %v2413
      %v2423 = vpack.c.bf16 %v2416, %v2415
      %v2424 = vpack.c.bf16 %v2418, %v2417
      %v2425 = vpack.c.bf16 %v2420, %v2419
      %v2426 = vmul.bf16 %v2421, %v909
      %v2427 = vmul.bf16 %v2422, %v910
      %v2428 = vmul.bf16 %v2423, %v911
      %v2429 = vmul.bf16 %v2424, %v912
      %v2430 = vmul.bf16 %v2425, %v913
      %v2431 = vmul.bf16 %v2421, %v1126
      %v2432 = vmul.bf16 %v2422, %v1127
      %v2433 = vmul.bf16 %v2423, %v1128
      %v2434 = vmul.bf16 %v2424, %v1129
      %v2435 = vmul.bf16 %v2425, %v1130
      %v2436 = vld [vmem:[%s11] sm:$0xf]
      %v2437 = vld [vmem:[%s11 + $0x4] sm:$0xf]
      %v2438 = vld [vmem:[%s11 + $0x8] sm:$0xf]
      %v2439 = vld [vmem:[%s11 + $0xc] sm:$0xf]
      %s2440 = scalar_lea.vmem %s11, 16
      %v2441 = vld [vmem:[%s2440] sm:$0xf]
      %v2442 = vld [vmem:[%s2440 + $0x4] sm:$0xf]
      %v2443 = vld [vmem:[%s2440 + $0x8] sm:$0xf]
      %v2444 = vld [vmem:[%s2440 + $0xc] sm:$0xf]
      %v2450 = vrot.slane %v2421, 4
      %v2451 = vsel %vm1155, %v1156, %v2450
      %v2452 = vrot.slane %v2422, 4
      %v2453 = vsel %vm1155, %v2450, %v2452
      %v2454 = vrot.slane %v2423, 4
      %v2455 = vsel %vm1155, %v2452, %v2454
      %v2456 = vrot.slane %v2424, 4
      %v2457 = vsel %vm1155, %v2454, %v2456
      %v2458 = vrot.slane %v2425, 4
      %v2459 = vsel %vm1155, %v2456, %v2458
      %v2464 = vunpack.c.l.b16 %v2441
      %v2465 = vunpack.c.l.b16 %v2442
      %v2466 = vunpack.c.l.b16 %v2443
      %v2467 = vunpack.c.l.b16 %v2444
      %v2468 = vpack.c.b16 %v2465, %v2464
      %v2469 = vpack.c.b16 %v2467, %v2466
      %v2473 = vsel %vm2252, %v2451, 0
      %v2476 = vsel %vm2252, %v2453, 0
      %v2479 = vsel %vm2252, %v2455, 0
      %v2482 = vsel %vm2252, %v2457, 0
      %v2485 = vsel %vm2252, %v2459, 0
      %2487 = vmatprep.subr.bf16.mxu0 0
      %2488 = vmatpush1.bf16.msra.mxu0 %v2468
      %2489 = vmatprep.subr.bf16.mxu0 0
      %2490 = vmatpush1.bf16.msra.mxu0 %v2469
      %2491 = vmatprep.subr.bf16.mxu0 0
      %2492 = vmatpush1.bf16.msra.mxu0 0
      %2493 = vmatprep.subr.bf16.mxu0 0
      %2494 = vmatpush1.bf16.msra.mxu0 0
      %2495 = vmatprep.subr.bf16.mxu0 0
      %2496 = vmatpush1.bf16.msra.mxu0 0
      %2497 = vmatprep.subr.bf16.mxu0 0
      %2498 = vmatpush1.bf16.msra.mxu0 0
      %2499 = vmatprep.subr.bf16.mxu0 0
      %2500 = vmatpush1.bf16.msra.mxu0 0
      %2501 = vmatprep.subr.bf16.mxu0 0
      %2502 = vmatpush1.bf16.msra.mxu0 0
      %2503 = vmatprep.subr.bf16.mxu0 0
      %2504 = vmatpush1.bf16.msra.mxu0 0
      %2505 = vmatprep.subr.bf16.mxu0 0
      %2506 = vmatpush1.bf16.msra.mxu0 0
      %2507 = vmatprep.subr.bf16.mxu0 0
      %2508 = vmatpush1.bf16.msra.mxu0 0
      %2509 = vmatprep.subr.bf16.mxu0 0
      %2510 = vmatpush1.bf16.msra.mxu0 0
      %2511 = vmatprep.subr.bf16.mxu0 0
      %2512 = vmatpush1.bf16.msra.mxu0 0
      %2513 = vmatprep.subr.bf16.mxu0 0
      %2514 = vmatpush1.bf16.msra.mxu0 0
      %2515 = vmatprep.subr.bf16.mxu0 0
      %2516 = vmatpush1.bf16.msra.mxu0 0
      %2517 = vmatprep.subr.bf16.mxu0 0
      %2518 = vmatpush1.bf16.msra.mxu0 0
      %2519 = vmatprep.mubr.bf16.mxu0 0
      %2520 = vmatmul.mubr.bf16.gmra.mrb[0].mxu0 %v2473
      %v2521 = vpop.f32.mrb[0].mxu0
      %v2522 = vadd.f32 0.0, %v2521
      %v2523 = vpop.f32.mrb[0].mxu0
      %v2524 = vpop.f32.mrb[0].mxu0
      %v2525 = vadd.f32 0.0, %v2524
      %v2526 = vpop.f32.mrb[0].mxu0
      %2527 = vmatprep.mubr.bf16.mxu0 0
      %2528 = vmatmul.mubr.bf16.gmra.mrb[0].mxu0 %v2476
      %v2529 = vpop.f32.mrb[0].mxu0
      %v2530 = vadd.f32 0.0, %v2529
      %v2531 = vpop.f32.mrb[0].mxu0
      %v2532 = vpop.f32.mrb[0].mxu0
      %v2533 = vadd.f32 0.0, %v2532
      %v2534 = vpop.f32.mrb[0].mxu0
      %2535 = vmatprep.mubr.bf16.mxu0 0
      %2536 = vmatmul.mubr.bf16.gmra.mrb[0].mxu0 %v2479
      %v2537 = vpop.f32.mrb[0].mxu0
      %v2538 = vadd.f32 0.0, %v2537
      %v2539 = vpop.f32.mrb[0].mxu0
      %v2540 = vpop.f32.mrb[0].mxu0
      %v2541 = vadd.f32 0.0, %v2540
      %v2542 = vpop.f32.mrb[0].mxu0
      %2543 = vmatprep.mubr.bf16.mxu0 0
      %2544 = vmatmul.mubr.bf16.gmra.mrb[0].mxu0 %v2482
      %v2545 = vpop.f32.mrb[0].mxu0
      %v2546 = vadd.f32 0.0, %v2545
      %v2547 = vpop.f32.mrb[0].mxu0
      %v2548 = vpop.f32.mrb[0].mxu0
      %v2549 = vadd.f32 0.0, %v2548
      %v2550 = vpop.f32.mrb[0].mxu0
      %2551 = vmatprep.mubr.bf16.mxu0 0
      %2552 = vmatmul.mubr.bf16.gmra.mrb[0].mxu0 %v2485
      %v2553 = vpop.f32.mrb[0].mxu0
      %v2554 = vadd.f32 0.0, %v2553
      %v2555 = vpop.f32.mrb[0].mxu0
      %v2556 = vpop.f32.mrb[0].mxu0
      %v2557 = vadd.f32 0.0, %v2556
      %v2558 = vpop.f32.mrb[0].mxu0
      %2559 = vdwg.mxu0
      %v2561 = vshrl.u32 %v2426, 16
      %v2563 = vrot.slane %v2561, 3
      %v2564 = vshll.u32 %v2426, 16
      %v2566 = vrot.slane %v2564, 4
      %v2567 = vor.u32 %v2563, %v2566
      %v2568 = vsel %vm1260, %v1268, %v2567
      %v2570 = vshrl.u32 %v2427, 16
      %v2572 = vrot.slane %v2570, 3
      %v2573 = vshll.u32 %v2427, 16
      %v2575 = vrot.slane %v2573, 4
      %v2576 = vor.u32 %v2572, %v2575
      %v2577 = vsel %vm1260, %v2567, %v2576
      %v2579 = vshrl.u32 %v2428, 16
      %v2581 = vrot.slane %v2579, 3
      %v2582 = vshll.u32 %v2428, 16
      %v2584 = vrot.slane %v2582, 4
      %v2585 = vor.u32 %v2581, %v2584
      %v2586 = vsel %vm1260, %v2576, %v2585
      %v2588 = vshrl.u32 %v2429, 16
      %v2590 = vrot.slane %v2588, 3
      %v2591 = vshll.u32 %v2429, 16
      %v2593 = vrot.slane %v2591, 4
      %v2594 = vor.u32 %v2590, %v2593
      %v2595 = vsel %vm1260, %v2585, %v2594
      %v2597 = vshrl.u32 %v2430, 16
      %v2599 = vrot.slane %v2597, 3
      %v2600 = vshll.u32 %v2430, 16
      %v2602 = vrot.slane %v2600, 4
      %v2603 = vor.u32 %v2599, %v2602
      %v2604 = vsel %vm1260, %v2594, %v2603
      %v2609 = vunpack.c.l.b16 %v2436
      %v2610 = vunpack.c.l.b16 %v2437
      %v2611 = vunpack.c.l.b16 %v2438
      %v2612 = vunpack.c.l.b16 %v2439
      %v2613 = vpack.c.b16 %v2610, %v2609
      %v2614 = vpack.c.b16 %v2612, %v2611
      %v2618 = vsel %vm2252, %v2568, 0
      %v2621 = vsel %vm2252, %v2577, 0
      %v2624 = vsel %vm2252, %v2586, 0
      %v2627 = vsel %vm2252, %v2595, 0
      %v2630 = vsel %vm2252, %v2604, 0
      %2632 = vmatprep.subr.bf16.mxu0 0
      %2633 = vmatpush1.bf16.msra.mxu0 %v2613
      %2634 = vmatprep.subr.bf16.mxu0 0
      %2635 = vmatpush1.bf16.msra.mxu0 %v2614
      %2636 = vmatprep.subr.bf16.mxu0 0
      %2637 = vmatpush1.bf16.msra.mxu0 0
      %2638 = vmatprep.subr.bf16.mxu0 0
      %2639 = vmatpush1.bf16.msra.mxu0 0
      %2640 = vmatprep.subr.bf16.mxu0 0
      %2641 = vmatpush1.bf16.msra.mxu0 0
      %2642 = vmatprep.subr.bf16.mxu0 0
      %2643 = vmatpush1.bf16.msra.mxu0 0
      %2644 = vmatprep.subr.bf16.mxu0 0
      %2645 = vmatpush1.bf16.msra.mxu0 0
      %2646 = vmatprep.subr.bf16.mxu0 0
      %2647 = vmatpush1.bf16.msra.mxu0 0
      %2648 = vmatprep.subr.bf16.mxu0 0
      %2649 = vmatpush1.bf16.msra.mxu0 0
      %2650 = vmatprep.subr.bf16.mxu0 0
      %2651 = vmatpush1.bf16.msra.mxu0 0
      %2652 = vmatprep.subr.bf16.mxu0 0
      %2653 = vmatpush1.bf16.msra.mxu0 0
      %2654 = vmatprep.subr.bf16.mxu0 0
      %2655 = vmatpush1.bf16.msra.mxu0 0
      %2656 = vmatprep.subr.bf16.mxu0 0
      %2657 = vmatpush1.bf16.msra.mxu0 0
      %2658 = vmatprep.subr.bf16.mxu0 0
      %2659 = vmatpush1.bf16.msra.mxu0 0
      %2660 = vmatprep.subr.bf16.mxu0 0
      %2661 = vmatpush1.bf16.msra.mxu0 0
      %2662 = vmatprep.subr.bf16.mxu0 0
      %2663 = vmatpush1.bf16.msra.mxu0 0
      %2664 = vmatprep.mubr.bf16.mxu0 0
      %2665 = vmatmul.mubr.bf16.gmra.mrb[0].mxu0 %v2618
      %v2666 = vpop.f32.mrb[0].mxu0
      %v2667 = vadd.f32 %v2522, %v2666
      %v2668 = vpop.f32.mrb[0].mxu0
      %v2669 = vpop.f32.mrb[0].mxu0
      %v2670 = vadd.f32 %v2525, %v2669
      %v2671 = vpop.f32.mrb[0].mxu0
      %2672 = vmatprep.mubr.bf16.mxu0 0
      %2673 = vmatmul.mubr.bf16.gmra.mrb[0].mxu0 %v2621
      %v2674 = vpop.f32.mrb[0].mxu0
      %v2675 = vadd.f32 %v2530, %v2674
      %v2676 = vpop.f32.mrb[0].mxu0
      %v2677 = vpop.f32.mrb[0].mxu0
      %v2678 = vadd.f32 %v2533, %v2677
      %v2679 = vpop.f32.mrb[0].mxu0
      %2680 = vmatprep.mubr.bf16.mxu0 0
      %2681 = vmatmul.mubr.bf16.gmra.mrb[0].mxu0 %v2624
      %v2682 = vpop.f32.mrb[0].mxu0
      %v2683 = vadd.f32 %v2538, %v2682
      %v2684 = vpop.f32.mrb[0].mxu0
      %v2685 = vpop.f32.mrb[0].mxu0
      %v2686 = vadd.f32 %v2541, %v2685
      %v2687 = vpop.f32.mrb[0].mxu0
      %2688 = vmatprep.mubr.bf16.mxu0 0
      %2689 = vmatmul.mubr.bf16.gmra.mrb[0].mxu0 %v2627
      %v2690 = vpop.f32.mrb[0].mxu0
      %v2691 = vadd.f32 %v2546, %v2690
      %v2692 = vpop.f32.mrb[0].mxu0
      %v2693 = vpop.f32.mrb[0].mxu0
      %v2694 = vadd.f32 %v2549, %v2693
      %v2695 = vpop.f32.mrb[0].mxu0
      %2696 = vmatprep.mubr.bf16.mxu0 0
      %2697 = vmatmul.mubr.bf16.gmra.mrb[0].mxu0 %v2630
      %v2698 = vpop.f32.mrb[0].mxu0
      %v2699 = vadd.f32 %v2554, %v2698
      %v2700 = vpop.f32.mrb[0].mxu0
      %v2701 = vpop.f32.mrb[0].mxu0
      %v2702 = vadd.f32 %v2557, %v2701
      %v2703 = vpop.f32.mrb[0].mxu0
      %2704 = vdwg.mxu0
      %s2705 = scalar_lea.vmem %s11, 32
      %v2706 = vld [vmem:[%s2705] sm:$0xf]
      %v2707 = vld [vmem:[%s2705 + $0x4] sm:$0xf]
      %v2708 = vld [vmem:[%s2705 + $0x8] sm:$0xf]
      %v2709 = vld [vmem:[%s2705 + $0xc] sm:$0xf]
      %v2711 = vshrl.u32 %v2431, 16
      %v2713 = vrot.slane %v2711, 4
      %v2714 = vshll.u32 %v2431, 16
      %v2716 = vrot.slane %v2714, 5
      %v2717 = vor.u32 %v2713, %v2716
      %v2718 = vsel %vm1407, %v1415, %v2717
      %v2720 = vshrl.u32 %v2432, 16
      %v2722 = vrot.slane %v2720, 4
      %v2723 = vshll.u32 %v2432, 16
      %v2725 = vrot.slane %v2723, 5
      %v2726 = vor.u32 %v2722, %v2725
      %v2727 = vsel %vm1407, %v2717, %v2726
      %v2729 = vshrl.u32 %v2433, 16
      %v2731 = vrot.slane %v2729, 4
      %v2732 = vshll.u32 %v2433, 16
      %v2734 = vrot.slane %v2732, 5
      %v2735 = vor.u32 %v2731, %v2734
      %v2736 = vsel %vm1407, %v2726, %v2735
      %v2738 = vshrl.u32 %v2434, 16
      %v2740 = vrot.slane %v2738, 4
      %v2741 = vshll.u32 %v2434, 16
      %v2743 = vrot.slane %v2741, 5
      %v2744 = vor.u32 %v2740, %v2743
      %v2745 = vsel %vm1407, %v2735, %v2744
      %v2747 = vshrl.u32 %v2435, 16
      %v2749 = vrot.slane %v2747, 4
      %v2750 = vshll.u32 %v2435, 16
      %v2752 = vrot.slane %v2750, 5
      %v2753 = vor.u32 %v2749, %v2752
      %v2754 = vsel %vm1407, %v2744, %v2753
      %v2759 = vunpack.c.l.b16 %v2706
      %v2760 = vunpack.c.l.b16 %v2707
      %v2761 = vunpack.c.l.b16 %v2708
      %v2762 = vunpack.c.l.b16 %v2709
      %v2763 = vpack.c.b16 %v2760, %v2759
      %v2764 = vpack.c.b16 %v2762, %v2761
      %v2768 = vsel %vm2252, %v2718, 0
      %v2771 = vsel %vm2252, %v2727, 0
      %v2774 = vsel %vm2252, %v2736, 0
      %v2777 = vsel %vm2252, %v2745, 0
      %v2780 = vsel %vm2252, %v2754, 0
      %2782 = vmatprep.subr.bf16.mxu0 0
      %2783 = vmatpush1.bf16.msra.mxu0 %v2763
      %2784 = vmatprep.subr.bf16.mxu0 0
      %2785 = vmatpush1.bf16.msra.mxu0 %v2764
      %2786 = vmatprep.subr.bf16.mxu0 0
      %2787 = vmatpush1.bf16.msra.mxu0 0
      %2788 = vmatprep.subr.bf16.mxu0 0
      %2789 = vmatpush1.bf16.msra.mxu0 0
      %2790 = vmatprep.subr.bf16.mxu0 0
      %2791 = vmatpush1.bf16.msra.mxu0 0
      %2792 = vmatprep.subr.bf16.mxu0 0
      %2793 = vmatpush1.bf16.msra.mxu0 0
      %2794 = vmatprep.subr.bf16.mxu0 0
      %2795 = vmatpush1.bf16.msra.mxu0 0
      %2796 = vmatprep.subr.bf16.mxu0 0
      %2797 = vmatpush1.bf16.msra.mxu0 0
      %2798 = vmatprep.subr.bf16.mxu0 0
      %2799 = vmatpush1.bf16.msra.mxu0 0
      %2800 = vmatprep.subr.bf16.mxu0 0
      %2801 = vmatpush1.bf16.msra.mxu0 0
      %2802 = vmatprep.subr.bf16.mxu0 0
      %2803 = vmatpush1.bf16.msra.mxu0 0
      %2804 = vmatprep.subr.bf16.mxu0 0
      %2805 = vmatpush1.bf16.msra.mxu0 0
      %2806 = vmatprep.subr.bf16.mxu0 0
      %2807 = vmatpush1.bf16.msra.mxu0 0
      %2808 = vmatprep.subr.bf16.mxu0 0
      %2809 = vmatpush1.bf16.msra.mxu0 0
      %2810 = vmatprep.subr.bf16.mxu0 0
      %2811 = vmatpush1.bf16.msra.mxu0 0
      %2812 = vmatprep.subr.bf16.mxu0 0
      %2813 = vmatpush1.bf16.msra.mxu0 0
      %2814 = vmatprep.mubr.bf16.mxu0 0
      %2815 = vmatmul.mubr.bf16.gmra.mrb[0].mxu0 %v2768
      %v2816 = vpop.f32.mrb[0].mxu0
      %v2817 = vadd.f32 0.0, %v2816
      %v2818 = vpop.f32.mrb[0].mxu0
      %v2819 = vpop.f32.mrb[0].mxu0
      %v2820 = vadd.f32 0.0, %v2819
      %v2821 = vpop.f32.mrb[0].mxu0
      %2822 = vmatprep.mubr.bf16.mxu0 0
      %2823 = vmatmul.mubr.bf16.gmra.mrb[0].mxu0 %v2771
      %v2824 = vpop.f32.mrb[0].mxu0
      %v2825 = vadd.f32 0.0, %v2824
      %v2826 = vpop.f32.mrb[0].mxu0
      %v2827 = vpop.f32.mrb[0].mxu0
      %v2828 = vadd.f32 0.0, %v2827
      %v2829 = vpop.f32.mrb[0].mxu0
      %2830 = vmatprep.mubr.bf16.mxu0 0
      %2831 = vmatmul.mubr.bf16.gmra.mrb[0].mxu0 %v2774
      %v2832 = vpop.f32.mrb[0].mxu0
      %v2833 = vadd.f32 0.0, %v2832
      %v2834 = vpop.f32.mrb[0].mxu0
      %v2835 = vpop.f32.mrb[0].mxu0
      %v2836 = vadd.f32 0.0, %v2835
      %v2837 = vpop.f32.mrb[0].mxu0
      %2838 = vmatprep.mubr.bf16.mxu0 0
      %2839 = vmatmul.mubr.bf16.gmra.mrb[0].mxu0 %v2777
      %v2840 = vpop.f32.mrb[0].mxu0
      %v2841 = vadd.f32 0.0, %v2840
      %v2842 = vpop.f32.mrb[0].mxu0
      %v2843 = vpop.f32.mrb[0].mxu0
      %v2844 = vadd.f32 0.0, %v2843
      %v2845 = vpop.f32.mrb[0].mxu0
      %2846 = vmatprep.mubr.bf16.mxu0 0
      %2847 = vmatmul.mubr.bf16.gmra.mrb[0].mxu0 %v2780
      %v2848 = vpop.f32.mrb[0].mxu0
      %v2849 = vadd.f32 0.0, %v2848
      %v2850 = vpop.f32.mrb[0].mxu0
      %v2851 = vpop.f32.mrb[0].mxu0
      %v2852 = vadd.f32 0.0, %v2851
      %v2853 = vpop.f32.mrb[0].mxu0
      %2854 = vdwg.mxu0
      %v2855 = vadd.f32 %v2667, %v2817
      %v2856 = vadd.f32 %v2670, %v2820
      %v2857 = vadd.f32 %v2675, %v2825
      %v2858 = vadd.f32 %v2678, %v2828
      %v2859 = vadd.f32 %v2683, %v2833
      %v2860 = vadd.f32 %v2686, %v2836
      %v2861 = vadd.f32 %v2691, %v2841
      %v2862 = vadd.f32 %v2694, %v2844
      %v2863 = vadd.f32 %v2699, %v2849
      %v2864 = vadd.f32 %v2702, %v2852
      %s2865 = scalar_lea.vmem %s11, 48
      %v2866 = vld [vmem:[%s2865] sm:$0xf]
      %v2867 = vld [vmem:[%s2865 + $0x4] sm:$0xf]
      %v2868 = vld [vmem:[%s2865 + $0x8] sm:$0xf]
      %v2869 = vld [vmem:[%s2865 + $0xc] sm:$0xf]
      %v2870 = vrot.slane %v2561, 7
      %v2871 = vor.u32 %v2870, %v2564
      %v2872 = vsel %vm1564, %v1565, %v2871
      %v2873 = vrot.slane %v2570, 7
      %v2874 = vor.u32 %v2873, %v2573
      %v2875 = vsel %vm1564, %v2870, %v2874
      %v2876 = vrot.slane %v2579, 7
      %v2877 = vor.u32 %v2876, %v2582
      %v2878 = vsel %vm1564, %v2873, %v2877
      %v2879 = vrot.slane %v2588, 7
      %v2880 = vor.u32 %v2879, %v2591
      %v2881 = vsel %vm1564, %v2876, %v2880
      %v2882 = vrot.slane %v2597, 7
      %v2883 = vor.u32 %v2882, %v2600
      %v2884 = vsel %vm1564, %v2879, %v2883
      %v2889 = vunpack.c.l.b16 %v2866
      %v2890 = vunpack.c.l.b16 %v2867
      %v2891 = vunpack.c.l.b16 %v2868
      %v2892 = vunpack.c.l.b16 %v2869
      %v2893 = vpack.c.b16 %v2890, %v2889
      %v2894 = vpack.c.b16 %v2892, %v2891
      %v2898 = vsel %vm2252, %v2872, 0
      %v2901 = vsel %vm2252, %v2875, 0
      %v2904 = vsel %vm2252, %v2878, 0
      %v2907 = vsel %vm2252, %v2881, 0
      %v2910 = vsel %vm2252, %v2884, 0
      %2912 = vmatprep.subr.bf16.mxu0 0
      %2913 = vmatpush1.bf16.msra.mxu0 %v2893
      %2914 = vmatprep.subr.bf16.mxu0 0
      %2915 = vmatpush1.bf16.msra.mxu0 %v2894
      %2916 = vmatprep.subr.bf16.mxu0 0
      %2917 = vmatpush1.bf16.msra.mxu0 0
      %2918 = vmatprep.subr.bf16.mxu0 0
      %2919 = vmatpush1.bf16.msra.mxu0 0
      %2920 = vmatprep.subr.bf16.mxu0 0
      %2921 = vmatpush1.bf16.msra.mxu0 0
      %2922 = vmatprep.subr.bf16.mxu0 0
      %2923 = vmatpush1.bf16.msra.mxu0 0
      %2924 = vmatprep.subr.bf16.mxu0 0
      %2925 = vmatpush1.bf16.msra.mxu0 0
      %2926 = vmatprep.subr.bf16.mxu0 0
      %2927 = vmatpush1.bf16.msra.mxu0 0
      %2928 = vmatprep.subr.bf16.mxu0 0
      %2929 = vmatpush1.bf16.msra.mxu0 0
      %2930 = vmatprep.subr.bf16.mxu0 0
      %2931 = vmatpush1.bf16.msra.mxu0 0
      %2932 = vmatprep.subr.bf16.mxu0 0
      %2933 = vmatpush1.bf16.msra.mxu0 0
      %2934 = vmatprep.subr.bf16.mxu0 0
      %2935 = vmatpush1.bf16.msra.mxu0 0
      %2936 = vmatprep.subr.bf16.mxu0 0
      %2937 = vmatpush1.bf16.msra.mxu0 0
      %2938 = vmatprep.subr.bf16.mxu0 0
      %2939 = vmatpush1.bf16.msra.mxu0 0
      %2940 = vmatprep.subr.bf16.mxu0 0
      %2941 = vmatpush1.bf16.msra.mxu0 0
      %2942 = vmatprep.subr.bf16.mxu0 0
      %2943 = vmatpush1.bf16.msra.mxu0 0
      %2944 = vmatprep.mubr.bf16.mxu0 0
      %2945 = vmatmul.mubr.bf16.gmra.mrb[0].mxu0 %v2898
      %v2946 = vpop.f32.mrb[0].mxu0
      %v2947 = vadd.f32 0.0, %v2946
      %v2948 = vpop.f32.mrb[0].mxu0
      %v2949 = vpop.f32.mrb[0].mxu0
      %v2950 = vadd.f32 0.0, %v2949
      %v2951 = vpop.f32.mrb[0].mxu0
      %2952 = vmatprep.mubr.bf16.mxu0 0
      %2953 = vmatmul.mubr.bf16.gmra.mrb[0].mxu0 %v2901
      %v2954 = vpop.f32.mrb[0].mxu0
      %v2955 = vadd.f32 0.0, %v2954
      %v2956 = vpop.f32.mrb[0].mxu0
      %v2957 = vpop.f32.mrb[0].mxu0
      %v2958 = vadd.f32 0.0, %v2957
      %v2959 = vpop.f32.mrb[0].mxu0
      %2960 = vmatprep.mubr.bf16.mxu0 0
      %2961 = vmatmul.mubr.bf16.gmra.mrb[0].mxu0 %v2904
      %v2962 = vpop.f32.mrb[0].mxu0
      %v2963 = vadd.f32 0.0, %v2962
      %v2964 = vpop.f32.mrb[0].mxu0
      %v2965 = vpop.f32.mrb[0].mxu0
      %v2966 = vadd.f32 0.0, %v2965
      %v2967 = vpop.f32.mrb[0].mxu0
      %2968 = vmatprep.mubr.bf16.mxu0 0
      %2969 = vmatmul.mubr.bf16.gmra.mrb[0].mxu0 %v2907
      %v2970 = vpop.f32.mrb[0].mxu0
      %v2971 = vadd.f32 0.0, %v2970
      %v2972 = vpop.f32.mrb[0].mxu0
      %v2973 = vpop.f32.mrb[0].mxu0
      %v2974 = vadd.f32 0.0, %v2973
      %v2975 = vpop.f32.mrb[0].mxu0
      %2976 = vmatprep.mubr.bf16.mxu0 0
      %2977 = vmatmul.mubr.bf16.gmra.mrb[0].mxu0 %v2910
      %v2978 = vpop.f32.mrb[0].mxu0
      %v2979 = vadd.f32 0.0, %v2978
      %v2980 = vpop.f32.mrb[0].mxu0
      %v2981 = vpop.f32.mrb[0].mxu0
      %v2982 = vadd.f32 0.0, %v2981
      %v2983 = vpop.f32.mrb[0].mxu0
      %2984 = vdwg.mxu0
      %v2985 = vadd.f32 %v2855, %v2947
      %v2986 = vadd.f32 %v2856, %v2950
      %v2987 = vadd.f32 %v2857, %v2955
      %v2988 = vadd.f32 %v2858, %v2958
      %v2989 = vadd.f32 %v2859, %v2963
      %v2990 = vadd.f32 %v2860, %v2966
      %v2991 = vadd.f32 %v2861, %v2971
      %v2992 = vadd.f32 %v2862, %v2974
      %v2993 = vadd.f32 %v2863, %v2979
      %v2994 = vadd.f32 %v2864, %v2982
      %s2995 = scalar_lea.vmem %s11, 64
      %v2996 = vld [vmem:[%s2995] sm:$0xf]
      %v2997 = vld [vmem:[%s2995 + $0x4] sm:$0xf]
      %v2998 = vld [vmem:[%s2995 + $0x8] sm:$0xf]
      %v2999 = vld [vmem:[%s2995 + $0xc] sm:$0xf]
      %v3004 = vunpack.c.l.b16 %v2996
      %v3005 = vunpack.c.l.b16 %v2997
      %v3006 = vunpack.c.l.b16 %v2998
      %v3007 = vunpack.c.l.b16 %v2999
      %v3008 = vpack.c.b16 %v3005, %v3004
      %v3009 = vpack.c.b16 %v3007, %v3006
      %v3013 = vsel %vm2252, %v2421, 0
      %v3016 = vsel %vm2252, %v2422, 0
      %v3019 = vsel %vm2252, %v2423, 0
      %v3022 = vsel %vm2252, %v2424, 0
      %v3025 = vsel %vm2252, %v2425, 0
      %3027 = vmatprep.subr.bf16.mxu0 0
      %3028 = vmatpush1.bf16.msra.mxu0 %v3008
      %3029 = vmatprep.subr.bf16.mxu0 0
      %3030 = vmatpush1.bf16.msra.mxu0 %v3009
      %3031 = vmatprep.subr.bf16.mxu0 0
      %3032 = vmatpush1.bf16.msra.mxu0 0
      %3033 = vmatprep.subr.bf16.mxu0 0
      %3034 = vmatpush1.bf16.msra.mxu0 0
      %3035 = vmatprep.subr.bf16.mxu0 0
      %3036 = vmatpush1.bf16.msra.mxu0 0
      %3037 = vmatprep.subr.bf16.mxu0 0
      %3038 = vmatpush1.bf16.msra.mxu0 0
      %3039 = vmatprep.subr.bf16.mxu0 0
      %3040 = vmatpush1.bf16.msra.mxu0 0
      %3041 = vmatprep.subr.bf16.mxu0 0
      %3042 = vmatpush1.bf16.msra.mxu0 0
      %3043 = vmatprep.subr.bf16.mxu0 0
      %3044 = vmatpush1.bf16.msra.mxu0 0
      %3045 = vmatprep.subr.bf16.mxu0 0
      %3046 = vmatpush1.bf16.msra.mxu0 0
      %3047 = vmatprep.subr.bf16.mxu0 0
      %3048 = vmatpush1.bf16.msra.mxu0 0
      %3049 = vmatprep.subr.bf16.mxu0 0
      %3050 = vmatpush1.bf16.msra.mxu0 0
      %3051 = vmatprep.subr.bf16.mxu0 0
      %3052 = vmatpush1.bf16.msra.mxu0 0
      %3053 = vmatprep.subr.bf16.mxu0 0
      %3054 = vmatpush1.bf16.msra.mxu0 0
      %3055 = vmatprep.subr.bf16.mxu0 0
      %3056 = vmatpush1.bf16.msra.mxu0 0
      %3057 = vmatprep.subr.bf16.mxu0 0
      %3058 = vmatpush1.bf16.msra.mxu0 0
      %3059 = vmatprep.mubr.bf16.mxu0 0
      %3060 = vmatmul.mubr.bf16.gmra.mrb[0].mxu0 %v3013
      %v3061 = vpop.f32.mrb[0].mxu0
      %v3062 = vadd.f32 0.0, %v3061
      %v3063 = vpop.f32.mrb[0].mxu0
      %v3064 = vpop.f32.mrb[0].mxu0
      %v3065 = vadd.f32 0.0, %v3064
      %v3066 = vpop.f32.mrb[0].mxu0
      %3067 = vmatprep.mubr.bf16.mxu0 0
      %3068 = vmatmul.mubr.bf16.gmra.mrb[0].mxu0 %v3016
      %v3069 = vpop.f32.mrb[0].mxu0
      %v3070 = vadd.f32 0.0, %v3069
      %v3071 = vpop.f32.mrb[0].mxu0
      %v3072 = vpop.f32.mrb[0].mxu0
      %v3073 = vadd.f32 0.0, %v3072
      %v3074 = vpop.f32.mrb[0].mxu0
      %3075 = vmatprep.mubr.bf16.mxu0 0
      %3076 = vmatmul.mubr.bf16.gmra.mrb[0].mxu0 %v3019
      %v3077 = vpop.f32.mrb[0].mxu0
      %v3078 = vadd.f32 0.0, %v3077
      %v3079 = vpop.f32.mrb[0].mxu0
      %v3080 = vpop.f32.mrb[0].mxu0
      %v3081 = vadd.f32 0.0, %v3080
      %v3082 = vpop.f32.mrb[0].mxu0
      %3083 = vmatprep.mubr.bf16.mxu0 0
      %3084 = vmatmul.mubr.bf16.gmra.mrb[0].mxu0 %v3022
      %v3085 = vpop.f32.mrb[0].mxu0
      %v3086 = vadd.f32 0.0, %v3085
      %v3087 = vpop.f32.mrb[0].mxu0
      %v3088 = vpop.f32.mrb[0].mxu0
      %v3089 = vadd.f32 0.0, %v3088
      %v3090 = vpop.f32.mrb[0].mxu0
      %3091 = vmatprep.mubr.bf16.mxu0 0
      %3092 = vmatmul.mubr.bf16.gmra.mrb[0].mxu0 %v3025
      %v3093 = vpop.f32.mrb[0].mxu0
      %v3094 = vadd.f32 0.0, %v3093
      %v3095 = vpop.f32.mrb[0].mxu0
      %v3096 = vpop.f32.mrb[0].mxu0
      %v3097 = vadd.f32 0.0, %v3096
      %v3098 = vpop.f32.mrb[0].mxu0
      %3099 = vdwg.mxu0
      %v3100 = vadd.f32 %v2985, %v3062
      %v3101 = vadd.f32 %v2986, %v3065
      %v3102 = vadd.f32 %v2987, %v3070
      %v3103 = vadd.f32 %v2988, %v3073
      %v3104 = vadd.f32 %v2989, %v3078
      %v3105 = vadd.f32 %v2990, %v3081
      %v3106 = vadd.f32 %v2991, %v3086
      %v3107 = vadd.f32 %v2992, %v3089
      %v3108 = vadd.f32 %v2993, %v3094
      %v3109 = vadd.f32 %v2994, %v3097
      %s3110 = scalar_lea.vmem %s11, 80
      %v3111 = vld [vmem:[%s3110] sm:$0xf]
      %v3112 = vld [vmem:[%s3110 + $0x4] sm:$0xf]
      %v3113 = vld [vmem:[%s3110 + $0x8] sm:$0xf]
      %v3114 = vld [vmem:[%s3110 + $0xc] sm:$0xf]
      %v3115 = vrot.slane %v2714, 1
      %v3116 = vor.u32 %v2711, %v3115
      %v3117 = vrot.slane %v2723, 1
      %v3118 = vsel %vm1787, %v3116, %v3117
      %v3119 = vor.u32 %v2720, %v3117
      %v3120 = vrot.slane %v2732, 1
      %v3121 = vsel %vm1787, %v3119, %v3120
      %v3122 = vor.u32 %v2729, %v3120
      %v3123 = vrot.slane %v2741, 1
      %v3124 = vsel %vm1787, %v3122, %v3123
      %v3125 = vor.u32 %v2738, %v3123
      %v3126 = vrot.slane %v2750, 1
      %v3127 = vsel %vm1787, %v3125, %v3126
      %v3128 = vor.u32 %v2747, %v3126
      %v3129 = vsel %vm1787, %v3128, %v1805
      %v3134 = vunpack.c.l.b16 %v3111
      %v3135 = vunpack.c.l.b16 %v3112
      %v3136 = vunpack.c.l.b16 %v3113
      %v3137 = vunpack.c.l.b16 %v3114
      %v3138 = vpack.c.b16 %v3135, %v3134
      %v3139 = vpack.c.b16 %v3137, %v3136
      %v3143 = vsel %vm2252, %v3118, 0
      %v3146 = vsel %vm2252, %v3121, 0
      %v3149 = vsel %vm2252, %v3124, 0
      %v3152 = vsel %vm2252, %v3127, 0
      %v3155 = vsel %vm2252, %v3129, 0
      %3157 = vmatprep.subr.bf16.mxu0 0
      %3158 = vmatpush1.bf16.msra.mxu0 %v3138
      %3159 = vmatprep.subr.bf16.mxu0 0
      %3160 = vmatpush1.bf16.msra.mxu0 %v3139
      %3161 = vmatprep.subr.bf16.mxu0 0
      %3162 = vmatpush1.bf16.msra.mxu0 0
      %3163 = vmatprep.subr.bf16.mxu0 0
      %3164 = vmatpush1.bf16.msra.mxu0 0
      %3165 = vmatprep.subr.bf16.mxu0 0
      %3166 = vmatpush1.bf16.msra.mxu0 0
      %3167 = vmatprep.subr.bf16.mxu0 0
      %3168 = vmatpush1.bf16.msra.mxu0 0
      %3169 = vmatprep.subr.bf16.mxu0 0
      %3170 = vmatpush1.bf16.msra.mxu0 0
      %3171 = vmatprep.subr.bf16.mxu0 0
      %3172 = vmatpush1.bf16.msra.mxu0 0
      %3173 = vmatprep.subr.bf16.mxu0 0
      %3174 = vmatpush1.bf16.msra.mxu0 0
      %3175 = vmatprep.subr.bf16.mxu0 0
      %3176 = vmatpush1.bf16.msra.mxu0 0
      %3177 = vmatprep.subr.bf16.mxu0 0
      %3178 = vmatpush1.bf16.msra.mxu0 0
      %3179 = vmatprep.subr.bf16.mxu0 0
      %3180 = vmatpush1.bf16.msra.mxu0 0
      %3181 = vmatprep.subr.bf16.mxu0 0
      %3182 = vmatpush1.bf16.msra.mxu0 0
      %3183 = vmatprep.subr.bf16.mxu0 0
      %3184 = vmatpush1.bf16.msra.mxu0 0
      %3185 = vmatprep.subr.bf16.mxu0 0
      %3186 = vmatpush1.bf16.msra.mxu0 0
      %3187 = vmatprep.subr.bf16.mxu0 0
      %3188 = vmatpush1.bf16.msra.mxu0 0
      %3189 = vmatprep.mubr.bf16.mxu0 0
      %3190 = vmatmul.mubr.bf16.gmra.mrb[0].mxu0 %v3143
      %v3191 = vpop.f32.mrb[0].mxu0
      %v3192 = vadd.f32 0.0, %v3191
      %v3193 = vpop.f32.mrb[0].mxu0
      %v3194 = vpop.f32.mrb[0].mxu0
      %v3195 = vadd.f32 0.0, %v3194
      %v3196 = vpop.f32.mrb[0].mxu0
      %3197 = vmatprep.mubr.bf16.mxu0 0
      %3198 = vmatmul.mubr.bf16.gmra.mrb[0].mxu0 %v3146
      %v3199 = vpop.f32.mrb[0].mxu0
      %v3200 = vadd.f32 0.0, %v3199
      %v3201 = vpop.f32.mrb[0].mxu0
      %v3202 = vpop.f32.mrb[0].mxu0
      %v3203 = vadd.f32 0.0, %v3202
      %v3204 = vpop.f32.mrb[0].mxu0
      %3205 = vmatprep.mubr.bf16.mxu0 0
      %3206 = vmatmul.mubr.bf16.gmra.mrb[0].mxu0 %v3149
      %v3207 = vpop.f32.mrb[0].mxu0
      %v3208 = vadd.f32 0.0, %v3207
      %v3209 = vpop.f32.mrb[0].mxu0
      %v3210 = vpop.f32.mrb[0].mxu0
      %v3211 = vadd.f32 0.0, %v3210
      %v3212 = vpop.f32.mrb[0].mxu0
      %3213 = vmatprep.mubr.bf16.mxu0 0
      %3214 = vmatmul.mubr.bf16.gmra.mrb[0].mxu0 %v3152
      %v3215 = vpop.f32.mrb[0].mxu0
      %v3216 = vadd.f32 0.0, %v3215
      %v3217 = vpop.f32.mrb[0].mxu0
      %v3218 = vpop.f32.mrb[0].mxu0
      %v3219 = vadd.f32 0.0, %v3218
      %v3220 = vpop.f32.mrb[0].mxu0
      %3221 = vmatprep.mubr.bf16.mxu0 0
      %3222 = vmatmul.mubr.bf16.gmra.mrb[0].mxu0 %v3155
      %v3223 = vpop.f32.mrb[0].mxu0
      %v3224 = vadd.f32 0.0, %v3223
      %v3225 = vpop.f32.mrb[0].mxu0
      %v3226 = vpop.f32.mrb[0].mxu0
      %v3227 = vadd.f32 0.0, %v3226
      %v3228 = vpop.f32.mrb[0].mxu0
      %3229 = vdwg.mxu0
      %v3230 = vadd.f32 %v3100, %v3192
      %v3231 = vadd.f32 %v3101, %v3195
      %v3232 = vadd.f32 %v3102, %v3200
      %v3233 = vadd.f32 %v3103, %v3203
      %v3234 = vadd.f32 %v3104, %v3208
      %v3235 = vadd.f32 %v3105, %v3211
      %v3236 = vadd.f32 %v3106, %v3216
      %v3237 = vadd.f32 %v3107, %v3219
      %v3238 = vadd.f32 %v3108, %v3224
      %v3239 = vadd.f32 %v3109, %v3227
      %s3240 = scalar_lea.vmem %s11, 96
      %v3241 = vld [vmem:[%s3240] sm:$0xf]
      %v3242 = vld [vmem:[%s3240 + $0x4] sm:$0xf]
      %v3243 = vld [vmem:[%s3240 + $0x8] sm:$0xf]
      %v3244 = vld [vmem:[%s3240 + $0xc] sm:$0xf]
      %v3245 = vsel %vm1260, %v2603, %v1917
      %v3250 = vunpack.c.l.b16 %v3241
      %v3251 = vunpack.c.l.b16 %v3242
      %v3252 = vunpack.c.l.b16 %v3243
      %v3253 = vunpack.c.l.b16 %v3244
      %v3254 = vpack.c.b16 %v3251, %v3250
      %v3255 = vpack.c.b16 %v3253, %v3252
      %v3259 = vsel %vm2252, %v3245, 0
      %3261 = vmatprep.subr.bf16.mxu0 0
      %3262 = vmatpush1.bf16.msra.mxu0 %v3254
      %3263 = vmatprep.subr.bf16.mxu0 0
      %3264 = vmatpush1.bf16.msra.mxu0 %v3255
      %3265 = vmatprep.subr.bf16.mxu0 0
      %3266 = vmatpush1.bf16.msra.mxu0 0
      %3267 = vmatprep.subr.bf16.mxu0 0
      %3268 = vmatpush1.bf16.msra.mxu0 0
      %3269 = vmatprep.subr.bf16.mxu0 0
      %3270 = vmatpush1.bf16.msra.mxu0 0
      %3271 = vmatprep.subr.bf16.mxu0 0
      %3272 = vmatpush1.bf16.msra.mxu0 0
      %3273 = vmatprep.subr.bf16.mxu0 0
      %3274 = vmatpush1.bf16.msra.mxu0 0
      %3275 = vmatprep.subr.bf16.mxu0 0
      %3276 = vmatpush1.bf16.msra.mxu0 0
      %3277 = vmatprep.subr.bf16.mxu0 0
      %3278 = vmatpush1.bf16.msra.mxu0 0
      %3279 = vmatprep.subr.bf16.mxu0 0
      %3280 = vmatpush1.bf16.msra.mxu0 0
      %3281 = vmatprep.subr.bf16.mxu0 0
      %3282 = vmatpush1.bf16.msra.mxu0 0
      %3283 = vmatprep.subr.bf16.mxu0 0
      %3284 = vmatpush1.bf16.msra.mxu0 0
      %3285 = vmatprep.subr.bf16.mxu0 0
      %3286 = vmatpush1.bf16.msra.mxu0 0
      %3287 = vmatprep.subr.bf16.mxu0 0
      %3288 = vmatpush1.bf16.msra.mxu0 0
      %3289 = vmatprep.subr.bf16.mxu0 0
      %3290 = vmatpush1.bf16.msra.mxu0 0
      %3291 = vmatprep.subr.bf16.mxu0 0
      %3292 = vmatpush1.bf16.msra.mxu0 0
      %3293 = vmatprep.mubr.bf16.mxu0 0
      %3294 = vmatmul.mubr.bf16.gmra.mrb[0].mxu0 %v2621
      %v3295 = vpop.f32.mrb[0].mxu0
      %v3296 = vadd.f32 0.0, %v3295
      %v3297 = vpop.f32.mrb[0].mxu0
      %v3298 = vpop.f32.mrb[0].mxu0
      %v3299 = vadd.f32 0.0, %v3298
      %v3300 = vpop.f32.mrb[0].mxu0
      %3301 = vmatprep.mubr.bf16.mxu0 0
      %3302 = vmatmul.mubr.bf16.gmra.mrb[0].mxu0 %v2624
      %v3303 = vpop.f32.mrb[0].mxu0
      %v3304 = vadd.f32 0.0, %v3303
      %v3305 = vpop.f32.mrb[0].mxu0
      %v3306 = vpop.f32.mrb[0].mxu0
      %v3307 = vadd.f32 0.0, %v3306
      %v3308 = vpop.f32.mrb[0].mxu0
      %3309 = vmatprep.mubr.bf16.mxu0 0
      %3310 = vmatmul.mubr.bf16.gmra.mrb[0].mxu0 %v2627
      %v3311 = vpop.f32.mrb[0].mxu0
      %v3312 = vadd.f32 0.0, %v3311
      %v3313 = vpop.f32.mrb[0].mxu0
      %v3314 = vpop.f32.mrb[0].mxu0
      %v3315 = vadd.f32 0.0, %v3314
      %v3316 = vpop.f32.mrb[0].mxu0
      %3317 = vmatprep.mubr.bf16.mxu0 0
      %3318 = vmatmul.mubr.bf16.gmra.mrb[0].mxu0 %v2630
      %v3319 = vpop.f32.mrb[0].mxu0
      %v3320 = vadd.f32 0.0, %v3319
      %v3321 = vpop.f32.mrb[0].mxu0
      %v3322 = vpop.f32.mrb[0].mxu0
      %v3323 = vadd.f32 0.0, %v3322
      %v3324 = vpop.f32.mrb[0].mxu0
      %3325 = vmatprep.mubr.bf16.mxu0 0
      %3326 = vmatmul.mubr.bf16.gmra.mrb[0].mxu0 %v3259
      %v3327 = vpop.f32.mrb[0].mxu0
      %v3328 = vadd.f32 0.0, %v3327
      %v3329 = vpop.f32.mrb[0].mxu0
      %v3330 = vpop.f32.mrb[0].mxu0
      %v3331 = vadd.f32 0.0, %v3330
      %v3332 = vpop.f32.mrb[0].mxu0
      %3333 = vdwg.mxu0
      %v3334 = vadd.f32 %v3230, %v3296
      %v3335 = vadd.f32 %v3231, %v3299
      %v3336 = vadd.f32 %v3232, %v3304
      %v3337 = vadd.f32 %v3233, %v3307
      %v3338 = vadd.f32 %v3234, %v3312
      %v3339 = vadd.f32 %v3235, %v3315
      %v3340 = vadd.f32 %v3236, %v3320
      %v3341 = vadd.f32 %v3237, %v3323
      %v3342 = vadd.f32 %v3238, %v3328
      %v3343 = vadd.f32 %v3239, %v3331
      %s3344 = scalar_lea.vmem %s11, 112
      %v3345 = vld [vmem:[%s3344] sm:$0xf]
      %v3346 = vld [vmem:[%s3344 + $0x4] sm:$0xf]
      %v3347 = vld [vmem:[%s3344 + $0x8] sm:$0xf]
      %v3348 = vld [vmem:[%s3344 + $0xc] sm:$0xf]
      %v3349 = vsel %vm1155, %v2458, %v1156
      %v3354 = vunpack.c.l.b16 %v3345
      %v3355 = vunpack.c.l.b16 %v3346
      %v3356 = vunpack.c.l.b16 %v3347
      %v3357 = vunpack.c.l.b16 %v3348
      %v3358 = vpack.c.b16 %v3355, %v3354
      %v3359 = vpack.c.b16 %v3357, %v3356
      %v3363 = vsel %vm2252, %v3349, 0
      %3365 = vmatprep.subr.bf16.mxu0 0
      %3366 = vmatpush1.bf16.msra.mxu0 %v3358
      %3367 = vmatprep.subr.bf16.mxu0 0
      %3368 = vmatpush1.bf16.msra.mxu0 %v3359
      %3369 = vmatprep.subr.bf16.mxu0 0
      %3370 = vmatpush1.bf16.msra.mxu0 0
      %3371 = vmatprep.subr.bf16.mxu0 0
      %3372 = vmatpush1.bf16.msra.mxu0 0
      %3373 = vmatprep.subr.bf16.mxu0 0
      %3374 = vmatpush1.bf16.msra.mxu0 0
      %3375 = vmatprep.subr.bf16.mxu0 0
      %3376 = vmatpush1.bf16.msra.mxu0 0
      %3377 = vmatprep.subr.bf16.mxu0 0
      %3378 = vmatpush1.bf16.msra.mxu0 0
      %3379 = vmatprep.subr.bf16.mxu0 0
      %3380 = vmatpush1.bf16.msra.mxu0 0
      %3381 = vmatprep.subr.bf16.mxu0 0
      %3382 = vmatpush1.bf16.msra.mxu0 0
      %3383 = vmatprep.subr.bf16.mxu0 0
      %3384 = vmatpush1.bf16.msra.mxu0 0
      %3385 = vmatprep.subr.bf16.mxu0 0
      %3386 = vmatpush1.bf16.msra.mxu0 0
      %3387 = vmatprep.subr.bf16.mxu0 0
      %3388 = vmatpush1.bf16.msra.mxu0 0
      %3389 = vmatprep.subr.bf16.mxu0 0
      %3390 = vmatpush1.bf16.msra.mxu0 0
      %3391 = vmatprep.subr.bf16.mxu0 0
      %3392 = vmatpush1.bf16.msra.mxu0 0
      %3393 = vmatprep.subr.bf16.mxu0 0
      %3394 = vmatpush1.bf16.msra.mxu0 0
      %3395 = vmatprep.subr.bf16.mxu0 0
      %3396 = vmatpush1.bf16.msra.mxu0 0
      %3397 = vmatprep.mubr.bf16.mxu0 0
      %3398 = vmatmul.mubr.bf16.gmra.mrb[0].mxu0 %v2476
      %v3399 = vpop.f32.mrb[0].mxu0
      %v3400 = vadd.f32 0.0, %v3399
      %v3401 = vpop.f32.mrb[0].mxu0
      %v3402 = vpop.f32.mrb[0].mxu0
      %v3403 = vadd.f32 0.0, %v3402
      %v3404 = vpop.f32.mrb[0].mxu0
      %3405 = vmatprep.mubr.bf16.mxu0 0
      %3406 = vmatmul.mubr.bf16.gmra.mrb[0].mxu0 %v2479
      %v3407 = vpop.f32.mrb[0].mxu0
      %v3408 = vadd.f32 0.0, %v3407
      %v3409 = vpop.f32.mrb[0].mxu0
      %v3410 = vpop.f32.mrb[0].mxu0
      %v3411 = vadd.f32 0.0, %v3410
      %v3412 = vpop.f32.mrb[0].mxu0
      %3413 = vmatprep.mubr.bf16.mxu0 0
      %3414 = vmatmul.mubr.bf16.gmra.mrb[0].mxu0 %v2482
      %v3415 = vpop.f32.mrb[0].mxu0
      %v3416 = vadd.f32 0.0, %v3415
      %v3417 = vpop.f32.mrb[0].mxu0
      %v3418 = vpop.f32.mrb[0].mxu0
      %v3419 = vadd.f32 0.0, %v3418
      %v3420 = vpop.f32.mrb[0].mxu0
      %3421 = vmatprep.mubr.bf16.mxu0 0
      %3422 = vmatmul.mubr.bf16.gmra.mrb[0].mxu0 %v2485
      %v3423 = vpop.f32.mrb[0].mxu0
      %v3424 = vadd.f32 0.0, %v3423
      %v3425 = vpop.f32.mrb[0].mxu0
      %v3426 = vpop.f32.mrb[0].mxu0
      %v3427 = vadd.f32 0.0, %v3426
      %v3428 = vpop.f32.mrb[0].mxu0
      %3429 = vmatprep.mubr.bf16.mxu0 0
      %3430 = vmatmul.mubr.bf16.gmra.mrb[0].mxu0 %v3363
      %v3431 = vpop.f32.mrb[0].mxu0
      %v3432 = vadd.f32 0.0, %v3431
      %v3433 = vpop.f32.mrb[0].mxu0
      %v3434 = vpop.f32.mrb[0].mxu0
      %v3435 = vadd.f32 0.0, %v3434
      %v3436 = vpop.f32.mrb[0].mxu0
      %3437 = vdwg.mxu0
      %v3438 = vadd.f32 %v3334, %v3400
      %v3439 = vadd.f32 %v3335, %v3403
      %v3440 = vadd.f32 %v3336, %v3408
      %v3441 = vadd.f32 %v3337, %v3411
      %v3442 = vadd.f32 %v3338, %v3416
      %v3443 = vadd.f32 %v3339, %v3419
      %v3444 = vadd.f32 %v3340, %v3424
      %v3445 = vadd.f32 %v3341, %v3427
      %v3446 = vadd.f32 %v3342, %v3432
      %v3447 = vadd.f32 %v3343, %v3435
      %s3448 = scalar_lea.vmem %s11, 128
      %v3449 = vld [vmem:[%s3448] sm:$0xf]
      %v3450 = vld [vmem:[%s3448 + $0x4] sm:$0xf]
      %v3451 = vld [vmem:[%s3448 + $0x8] sm:$0xf]
      %v3452 = vld [vmem:[%s3448 + $0xc] sm:$0xf]
      %v3453 = vsel %vm1407, %v2753, %v2106
      %v3458 = vunpack.c.l.b16 %v3449
      %v3459 = vunpack.c.l.b16 %v3450
      %v3460 = vunpack.c.l.b16 %v3451
      %v3461 = vunpack.c.l.b16 %v3452
      %v3462 = vpack.c.b16 %v3459, %v3458
      %v3463 = vpack.c.b16 %v3461, %v3460
      %v3467 = vsel %vm2252, %v3453, 0
      %3469 = vmatprep.subr.bf16.mxu0 0
      %3470 = vmatpush1.bf16.msra.mxu0 %v3462
      %3471 = vmatprep.subr.bf16.mxu0 0
      %3472 = vmatpush1.bf16.msra.mxu0 %v3463
      %3473 = vmatprep.subr.bf16.mxu0 0
      %3474 = vmatpush1.bf16.msra.mxu0 0
      %3475 = vmatprep.subr.bf16.mxu0 0
      %3476 = vmatpush1.bf16.msra.mxu0 0
      %3477 = vmatprep.subr.bf16.mxu0 0
      %3478 = vmatpush1.bf16.msra.mxu0 0
      %3479 = vmatprep.subr.bf16.mxu0 0
      %3480 = vmatpush1.bf16.msra.mxu0 0
      %3481 = vmatprep.subr.bf16.mxu0 0
      %3482 = vmatpush1.bf16.msra.mxu0 0
      %3483 = vmatprep.subr.bf16.mxu0 0
      %3484 = vmatpush1.bf16.msra.mxu0 0
      %3485 = vmatprep.subr.bf16.mxu0 0
      %3486 = vmatpush1.bf16.msra.mxu0 0
      %3487 = vmatprep.subr.bf16.mxu0 0
      %3488 = vmatpush1.bf16.msra.mxu0 0
      %3489 = vmatprep.subr.bf16.mxu0 0
      %3490 = vmatpush1.bf16.msra.mxu0 0
      %3491 = vmatprep.subr.bf16.mxu0 0
      %3492 = vmatpush1.bf16.msra.mxu0 0
      %3493 = vmatprep.subr.bf16.mxu0 0
      %3494 = vmatpush1.bf16.msra.mxu0 0
      %3495 = vmatprep.subr.bf16.mxu0 0
      %3496 = vmatpush1.bf16.msra.mxu0 0
      %3497 = vmatprep.subr.bf16.mxu0 0
      %3498 = vmatpush1.bf16.msra.mxu0 0
      %3499 = vmatprep.subr.bf16.mxu0 0
      %3500 = vmatpush1.bf16.msra.mxu0 0
      %3501 = vmatprep.mubr.bf16.mxu0 0
      %3502 = vmatmul.mubr.bf16.gmra.mrb[0].mxu0 %v2771
      %v3503 = vpop.f32.mrb[0].mxu0
      %v3504 = vadd.f32 0.0, %v3503
      %v3505 = vpop.f32.mrb[0].mxu0
      %v3506 = vpop.f32.mrb[0].mxu0
      %v3507 = vadd.f32 0.0, %v3506
      %v3508 = vpop.f32.mrb[0].mxu0
      %3509 = vmatprep.mubr.bf16.mxu0 0
      %3510 = vmatmul.mubr.bf16.gmra.mrb[0].mxu0 %v2774
      %v3511 = vpop.f32.mrb[0].mxu0
      %v3512 = vadd.f32 0.0, %v3511
      %v3513 = vpop.f32.mrb[0].mxu0
      %v3514 = vpop.f32.mrb[0].mxu0
      %v3515 = vadd.f32 0.0, %v3514
      %v3516 = vpop.f32.mrb[0].mxu0
      %3517 = vmatprep.mubr.bf16.mxu0 0
      %3518 = vmatmul.mubr.bf16.gmra.mrb[0].mxu0 %v2777
      %v3519 = vpop.f32.mrb[0].mxu0
      %v3520 = vadd.f32 0.0, %v3519
      %v3521 = vpop.f32.mrb[0].mxu0
      %v3522 = vpop.f32.mrb[0].mxu0
      %v3523 = vadd.f32 0.0, %v3522
      %v3524 = vpop.f32.mrb[0].mxu0
      %3525 = vmatprep.mubr.bf16.mxu0 0
      %3526 = vmatmul.mubr.bf16.gmra.mrb[0].mxu0 %v2780
      %v3527 = vpop.f32.mrb[0].mxu0
      %v3528 = vadd.f32 0.0, %v3527
      %v3529 = vpop.f32.mrb[0].mxu0
      %v3530 = vpop.f32.mrb[0].mxu0
      %v3531 = vadd.f32 0.0, %v3530
      %v3532 = vpop.f32.mrb[0].mxu0
      %3533 = vmatprep.mubr.bf16.mxu0 0
      %3534 = vmatmul.mubr.bf16.gmra.mrb[0].mxu0 %v3467
      %v3535 = vpop.f32.mrb[0].mxu0
      %v3536 = vadd.f32 0.0, %v3535
      %v3537 = vpop.f32.mrb[0].mxu0
      %v3538 = vpop.f32.mrb[0].mxu0
      %v3539 = vadd.f32 0.0, %v3538
      %v3540 = vpop.f32.mrb[0].mxu0
      %3541 = vdwg.mxu0
      %v3542 = vadd.f32 %v3438, %v3504
      %v3543 = vadd.f32 %v3439, %v3507
      %v3544 = vadd.f32 %v3440, %v3512
      %v3545 = vadd.f32 %v3441, %v3515
      %v3546 = vadd.f32 %v3442, %v3520
      %v3547 = vadd.f32 %v3443, %v3523
      %v3548 = vadd.f32 %v3444, %v3528
      %v3549 = vadd.f32 %v3445, %v3531
      %v3550 = vadd.f32 %v3446, %v3536
      %v3551 = vadd.f32 %v3447, %v3539
      %v3552 = vld [vmem:[%s12] sm:$0x1]
      %v3554 = vlaneseq
      %v3555 = vshrl.u32 %v3554, 7
      %v3556 = vsub.s32 0, %v3555
      %v3557 = vrot.slane %v3552, %v3556
      %v3559 = vadd.f32 %v3542, %v3557
      %v3560 = vadd.f32 %v3543, %v3557
      %v3561 = vadd.f32 %v3544, %v3557
      %v3562 = vadd.f32 %v3545, %v3557
      %v3563 = vadd.f32 %v3546, %v3557
      %v3564 = vadd.f32 %v3547, %v3557
      %v3565 = vadd.f32 %v3548, %v3557
      %v3566 = vadd.f32 %v3549, %v3557
      %v3567 = vadd.f32 %v3550, %v3557
      %v3568 = vadd.f32 %v3551, %v3557
      %v3569 = vadd.f32 %v3559, 2.0
      %v3570 = vadd.f32 %v3560, 2.0
      %v3571 = vadd.f32 %v3561, 2.0
      %v3572 = vadd.f32 %v3562, 2.0
      %v3573 = vadd.f32 %v3563, 2.0
      %v3574 = vadd.f32 %v3564, 2.0
      %v3575 = vadd.f32 %v3565, 2.0
      %v3576 = vadd.f32 %v3566, 2.0
      %v3577 = vadd.f32 %v3567, 2.0
      %v3578 = vadd.f32 %v3568, 2.0
      %v3579 = vmin.f32 %v3569, 0.0
      %v3580 = vmin.f32 %v3570, 0.0
      %v3581 = vmin.f32 %v3571, 0.0
      %v3582 = vmin.f32 %v3572, 0.0
      %v3583 = vmin.f32 %v3573, 0.0
      %v3584 = vmin.f32 %v3574, 0.0
      %v3585 = vmin.f32 %v3575, 0.0
      %v3586 = vmin.f32 %v3576, 0.0
      %v3587 = vmin.f32 %v3577, 0.0
      %v3588 = vmin.f32 %v3578, 0.0
      %v3589 = vand.u32 2147483647, %v3569
      %v3590 = vand.u32 2147483647, %v3570
      %v3591 = vand.u32 2147483647, %v3571
      %v3592 = vand.u32 2147483647, %v3572
      %v3593 = vand.u32 2147483647, %v3573
      %v3594 = vand.u32 2147483647, %v3574
      %v3595 = vand.u32 2147483647, %v3575
      %v3596 = vand.u32 2147483647, %v3576
      %v3597 = vand.u32 2147483647, %v3577
      %v3598 = vand.u32 2147483647, %v3578
      %v3599 = vsub.f32 0.0, %v3589
      %v3600 = vsub.f32 0.0, %v3590
      %v3601 = vsub.f32 0.0, %v3591
      %v3602 = vsub.f32 0.0, %v3592
      %v3603 = vsub.f32 0.0, %v3593
      %v3604 = vsub.f32 0.0, %v3594
      %v3605 = vsub.f32 0.0, %v3595
      %v3606 = vsub.f32 0.0, %v3596
      %v3607 = vsub.f32 0.0, %v3597
      %v3608 = vsub.f32 0.0, %v3598
      %v3609 = vmul.f32 %v3599, 1.442695
      %v3610 = vpow.pop %v3609
      %v3611 = vmul.f32 %v3600, 1.442695
      %v3612 = vpow.pop %v3611
      %v3613 = vmul.f32 %v3601, 1.442695
      %v3614 = vpow.pop %v3613
      %v3615 = vmul.f32 %v3602, 1.442695
      %v3616 = vpow.pop %v3615
      %v3617 = vmul.f32 %v3603, 1.442695
      %v3618 = vpow.pop %v3617
      %v3619 = vmul.f32 %v3604, 1.442695
      %v3620 = vpow.pop %v3619
      %v3621 = vmul.f32 %v3605, 1.442695
      %v3622 = vpow.pop %v3621
      %v3623 = vmul.f32 %v3606, 1.442695
      %v3624 = vpow.pop %v3623
      %v3625 = vmul.f32 %v3607, 1.442695
      %v3626 = vpow.pop %v3625
      %v3627 = vmul.f32 %v3608, 1.442695
      %v3628 = vpow.pop %v3627
      %v3629 = vadd.f32 %v3610, 1.0
      %v3630 = vadd.f32 %v3612, 1.0
      %v3631 = vadd.f32 %v3614, 1.0
      %v3632 = vadd.f32 %v3616, 1.0
      %v3633 = vadd.f32 %v3618, 1.0
      %v3634 = vadd.f32 %v3620, 1.0
      %v3635 = vadd.f32 %v3622, 1.0
      %v3636 = vadd.f32 %v3624, 1.0
      %v3637 = vadd.f32 %v3626, 1.0
      %v3638 = vadd.f32 %v3628, 1.0
      %v3639 = vlog2.pop %v3629
      %v3640 = vmul.f32 %v3639, 0.6931472
      %v3641 = vlog2.pop %v3630
      %v3642 = vmul.f32 %v3641, 0.6931472
      %v3643 = vlog2.pop %v3631
      %v3644 = vmul.f32 %v3643, 0.6931472
      %v3645 = vlog2.pop %v3632
      %v3646 = vmul.f32 %v3645, 0.6931472
      %v3647 = vlog2.pop %v3633
      %v3648 = vmul.f32 %v3647, 0.6931472
      %v3649 = vlog2.pop %v3634
      %v3650 = vmul.f32 %v3649, 0.6931472
      %v3651 = vlog2.pop %v3635
      %v3652 = vmul.f32 %v3651, 0.6931472
      %v3653 = vlog2.pop %v3636
      %v3654 = vmul.f32 %v3653, 0.6931472
      %v3655 = vlog2.pop %v3637
      %v3656 = vmul.f32 %v3655, 0.6931472
      %v3657 = vlog2.pop %v3638
      %v3658 = vmul.f32 %v3657, 0.6931472
      %v3659 = vsub.f32 %v3579, %v3640
      %v3660 = vsub.f32 %v3580, %v3642
      %v3661 = vsub.f32 %v3581, %v3644
      %v3662 = vsub.f32 %v3582, %v3646
      %v3663 = vsub.f32 %v3583, %v3648
      %v3664 = vsub.f32 %v3584, %v3650
      %v3665 = vsub.f32 %v3585, %v3652
      %v3666 = vsub.f32 %v3586, %v3654
      %v3667 = vsub.f32 %v3587, %v3656
      %v3668 = vsub.f32 %v3588, %v3658
      %v3669 = vmul.f32 %v3659, 1.442695
      %v3670 = vpow.pop %v3669
      %v3671 = vmul.f32 %v3660, 1.442695
      %v3672 = vpow.pop %v3671
      %v3673 = vmul.f32 %v3661, 1.442695
      %v3674 = vpow.pop %v3673
      %v3675 = vmul.f32 %v3662, 1.442695
      %v3676 = vpow.pop %v3675
      %v3677 = vmul.f32 %v3663, 1.442695
      %v3678 = vpow.pop %v3677
      %v3679 = vmul.f32 %v3664, 1.442695
      %v3680 = vpow.pop %v3679
      %v3681 = vmul.f32 %v3665, 1.442695
      %v3682 = vpow.pop %v3681
      %v3683 = vmul.f32 %v3666, 1.442695
      %v3684 = vpow.pop %v3683
      %v3685 = vld [vmem:[%s13] sm:$0x1]
      %v3686 = vld [vmem:[%s14] sm:$0x1]
      %v3688 = vlaneseq
      %v3689 = vshrl.u32 %v3688, 7
      %v3690 = vsub.s32 0, %v3689
      %v3691 = vrot.slane %v3685, %v3690
      %v3693 = vsub.f32 %v641, %v3691
      %v3694 = vsub.f32 %v646, %v3691
      %v3695 = vsub.f32 %v651, %v3691
      %v3696 = vsub.f32 %v656, %v3691
      %v3697 = vsub.f32 %v661, %v3691
      %v3698 = vsub.f32 %v666, %v3691
      %v3699 = vsub.f32 %v671, %v3691
      %v3700 = vsub.f32 %v676, %v3691
      %v3702 = vlaneseq
      %v3703 = vshrl.u32 %v3702, 7
      %v3704 = vsub.s32 0, %v3703
      %v3705 = vrot.slane %v3686, %v3704
      %v3707 = vmul.f32 %v3693, %v3705
      %v3708 = vmul.f32 %v3694, %v3705
      %v3709 = vmul.f32 %v3695, %v3705
      %v3710 = vmul.f32 %v3696, %v3705
      %v3711 = vmul.f32 %v3697, %v3705
      %v3712 = vmul.f32 %v3698, %v3705
      %v3713 = vmul.f32 %v3699, %v3705
      %v3714 = vmul.f32 %v3700, %v3705
      %v3715 = vadd.f32 %v641, %v3559
      %v3716 = vadd.f32 %v646, %v3560
      %v3717 = vadd.f32 %v651, %v3561
      %v3718 = vadd.f32 %v656, %v3562
      %v3719 = vadd.f32 %v661, %v3563
      %v3720 = vadd.f32 %v666, %v3564
      %v3721 = vadd.f32 %v671, %v3565
      %v3722 = vadd.f32 %v676, %v3566
      %3731 = vrot.lane.b32.xlu0 %v3670, 8
      %v3732 = vpop.permute.xlu0 %3731
      %3733 = vrot.lane.b32.xlu0 %v3672, 8
      %v3734 = vpop.permute.xlu0 %3733
      %3735 = vrot.lane.b32.xlu0 %v3674, 8
      %v3736 = vpop.permute.xlu0 %3735
      %3737 = vrot.lane.b32.xlu0 %v3676, 8
      %v3738 = vpop.permute.xlu0 %3737
      %3739 = vrot.lane.b32.xlu0 %v3678, 8
      %v3740 = vpop.permute.xlu0 %3739
      %3741 = vrot.lane.b32.xlu0 %v3680, 8
      %v3742 = vpop.permute.xlu0 %3741
      %3743 = vrot.lane.b32.xlu0 %v3682, 8
      %v3744 = vpop.permute.xlu0 %3743
      %3745 = vrot.lane.b32.xlu0 %v3684, 8
      %v3746 = vpop.permute.xlu0 %3745
      %v3755 = vmul.f32 %v3715, %v3732
      %v3756 = vmul.f32 %v3716, %v3734
      %v3757 = vmul.f32 %v3717, %v3736
      %v3758 = vmul.f32 %v3718, %v3738
      %v3759 = vmul.f32 %v3719, %v3740
      %v3760 = vmul.f32 %v3720, %v3742
      %v3761 = vmul.f32 %v3721, %v3744
      %v3762 = vmul.f32 %v3722, %v3746
      %v3763 = vsub.f32 %v3755, %v3691
      %v3764 = vsub.f32 %v3756, %v3691
      %v3765 = vsub.f32 %v3757, %v3691
      %v3766 = vsub.f32 %v3758, %v3691
      %v3767 = vsub.f32 %v3759, %v3691
      %v3768 = vsub.f32 %v3760, %v3691
      %v3769 = vsub.f32 %v3761, %v3691
      %v3770 = vsub.f32 %v3762, %v3691
      %v3771 = vmul.f32 %v3763, %v3705
      %v3772 = vmul.f32 %v3764, %v3705
      %v3773 = vmul.f32 %v3765, %v3705
      %v3774 = vmul.f32 %v3766, %v3705
      %v3775 = vmul.f32 %v3767, %v3705
      %v3776 = vmul.f32 %v3768, %v3705
      %v3777 = vmul.f32 %v3769, %v3705
      %v3778 = vmul.f32 %v3770, %v3705
      %3779 = vst.msk [vmem:[%s527] sm:$0xff] %vm1167, %v3707
      %3780 = vst.msk [vmem:[%s527 + $0x8] sm:$0xff] %vm1167, %v3708
      %3781 = vst.msk [vmem:[%s527 + $0x10] sm:$0xff] %vm1167, %v3709
      %3782 = vst.msk [vmem:[%s527 + $0x18] sm:$0xff] %vm1167, %v3710
      %3783 = vst.msk [vmem:[%s527 + $0x20] sm:$0xff] %vm1167, %v3711
      %3784 = vst.msk [vmem:[%s527 + $0x28] sm:$0xff] %vm1167, %v3712
      %3785 = vst.msk [vmem:[%s527 + $0x30] sm:$0xff] %vm1167, %v3713
      %3786 = vst.msk [vmem:[%s527 + $0x38] sm:$0xff] %vm1167, %v3714
      %vm3787 = vcmask 130112
      %3788 = vst.msk [vmem:[%s527] sm:$0xff] %vm3787, %v3771
      %3789 = vst.msk [vmem:[%s527 + $0x8] sm:$0xff] %vm3787, %v3772
      %3790 = vst.msk [vmem:[%s527 + $0x10] sm:$0xff] %vm3787, %v3773
      %3791 = vst.msk [vmem:[%s527 + $0x18] sm:$0xff] %vm3787, %v3774
      %3792 = vst.msk [vmem:[%s527 + $0x20] sm:$0xff] %vm3787, %v3775
      %3793 = vst.msk [vmem:[%s527 + $0x28] sm:$0xff] %vm3787, %v3776
      %3794 = vst.msk [vmem:[%s527 + $0x30] sm:$0xff] %vm3787, %v3777
      %3795 = vst.msk [vmem:[%s527 + $0x38] sm:$0xff] %vm3787, %v3778
      %v3796 = vsel %vm1167, %v3659, 0.0
      %3797 = vadd.xlane.f32.xlu0 %v3796
      %v3798 = vpop.xlane.xlu0 %3797
      %v3799 = vsel %vm1167, %v3660, 0.0
      %3800 = vadd.xlane.f32.xlu0 %v3799
      %v3801 = vpop.xlane.xlu0 %3800
      %v3802 = vsel %vm1167, %v3661, 0.0
      %3803 = vadd.xlane.f32.xlu0 %v3802
      %v3804 = vpop.xlane.xlu0 %3803
      %v3805 = vsel %vm1167, %v3662, 0.0
      %3806 = vadd.xlane.f32.xlu0 %v3805
      %v3807 = vpop.xlane.xlu0 %3806
      %v3808 = vsel %vm1167, %v3663, 0.0
      %3809 = vadd.xlane.f32.xlu0 %v3808
      %v3810 = vpop.xlane.xlu0 %3809
      %v3811 = vsel %vm1167, %v3664, 0.0
      %3812 = vadd.xlane.f32.xlu0 %v3811
      %v3813 = vpop.xlane.xlu0 %3812
      %v3814 = vsel %vm1167, %v3665, 0.0
      %3815 = vadd.xlane.f32.xlu0 %v3814
      %v3816 = vpop.xlane.xlu0 %3815
      %v3817 = vsel %vm1167, %v3666, 0.0
      %3818 = vadd.xlane.f32.xlu0 %v3817
      %v3819 = vpop.xlane.xlu0 %3818
      %v3820 = vsel %vm1167, %v3667, 0.0
      %3821 = vadd.xlane.f32.xlu0 %v3820
      %v3822 = vpop.xlane.xlu0 %3821
      %v3823 = vsel %vm1167, %v3668, 0.0
      %3824 = vadd.xlane.f32.xlu0 %v3823
      %v3825 = vpop.xlane.xlu0 %3824
      %v3826 = vld [vmem:[%s6] sm:$0x1]
      %vm3827 = vcmask 654336
      %v3829 = vsel %vm3827, %v3826, 0
      %3831 = vmatprep.subr.mxu0 0.0
      %3832 = vmatpush1.msra.mxu0 %v3798
      %3833 = vmatprep.subr.mxu0 0.0
      %3834 = vmatpush1.msra.mxu0 %v3801
      %3835 = vmatprep.subr.mxu0 0.0
      %3836 = vmatpush1.msra.mxu0 %v3804
      %3837 = vmatprep.subr.mxu0 0.0
      %3838 = vmatpush1.msra.mxu0 %v3807
      %3839 = vmatprep.subr.mxu0 0.0
      %3840 = vmatpush1.msra.mxu0 %v3810
      %3841 = vmatprep.subr.mxu0 0.0
      %3842 = vmatpush1.msra.mxu0 %v3813
      %3843 = vmatprep.subr.mxu0 0.0
      %3844 = vmatpush1.msra.mxu0 %v3816
      %3845 = vmatprep.subr.mxu0 0.0
      %3846 = vmatpush1.msra.mxu0 %v3819
      %3847 = vmatprep.subr.mxu0 0.0
      %3848 = vmatpush1.msra.mxu0 %v3822
      %3849 = vmatprep.subr.mxu0 0.0
      %3850 = vmatpush1.msra.mxu0 %v3825
      %3851 = vmatprep.subr.mxu0 0.0
      %3852 = vmatpush1.msra.mxu0 0.0
      %3853 = vmatprep.subr.mxu0 0.0
      %3854 = vmatpush1.msra.mxu0 0.0
      %3855 = vmatprep.subr.mxu0 0.0
      %3856 = vmatpush1.msra.mxu0 0.0
      %3857 = vmatprep.subr.mxu0 0.0
      %3858 = vmatpush1.msra.mxu0 0.0
      %3859 = vmatprep.subr.mxu0 0.0
      %3860 = vmatpush1.msra.mxu0 0.0
      %3861 = vmatprep.subr.mxu0 0.0
      %3862 = vmatpush1.msra.mxu0 0.0
      %3863 = vmatprep.subr.mxu0 0.0
      %3864 = vmatpush1.msra.mxu0 0.0
      %3865 = vmatprep.subr.mxu0 0.0
      %3866 = vmatpush1.msra.mxu0 0.0
      %3867 = vmatprep.subr.mxu0 0.0
      %3868 = vmatpush1.msra.mxu0 0.0
      %3869 = vmatprep.subr.mxu0 0.0
      %3870 = vmatpush1.msra.mxu0 0.0
      %3871 = vmatprep.subr.mxu0 0.0
      %3872 = vmatpush1.msra.mxu0 0.0
      %3873 = vmatprep.subr.mxu0 0.0
      %3874 = vmatpush1.msra.mxu0 0.0
      %3875 = vmatprep.subr.mxu0 0.0
      %3876 = vmatpush1.msra.mxu0 0.0
      %3877 = vmatprep.subr.mxu0 0.0
      %3878 = vmatpush1.msra.mxu0 0.0
      %3879 = vmatprep.subr.mxu0 0.0
      %3880 = vmatpush1.msra.mxu0 0.0
      %3881 = vmatprep.subr.mxu0 0.0
      %3882 = vmatpush1.msra.mxu0 0.0
      %3883 = vmatprep.subr.mxu0 0.0
      %3884 = vmatpush1.msra.mxu0 0.0
      %3885 = vmatprep.subr.mxu0 0.0
      %3886 = vmatpush1.msra.mxu0 0.0
      %3887 = vmatprep.subr.mxu0 0.0
      %3888 = vmatpush1.msra.mxu0 0.0
      %3889 = vmatprep.subr.mxu0 0.0
      %3890 = vmatpush1.msra.mxu0 0.0
      %3891 = vmatprep.subr.mxu0 0.0
      %3892 = vmatpush1.msra.mxu0 0.0
      %3893 = vmatprep.subr.mxu0 0.0
      %3894 = vmatpush1.msra.mxu0 0.0
      %3895 = vmatprep.mubr.f32.mxu0 0.0
      %3896 = vmatmul.mubr.f32.gmra.mrb[0].mxu0 %v3829
      %v3897 = vpop.f32.mrb[0].mxu0
      %v3898 = vadd.f32 0.0, %v3897
      %v3899 = vpop.f32.mrb[0].mxu0
      %3900 = vdwg.mxu0
      %vm3901 = vcmask 0
      %3902 = vst.msk [vmem:[%s530] sm:$0x1] %vm3901, %v3898
      %p3903 = scmp.lt.s32.totalorder %s28, 1
      %s3904 = scalar_select %p3903, %s28, 1
      %s3905 = smul.addr %s3904, 8
      %s3906 = smul.addr %s3905, 8
      %s3907 = scalar_lea.vmem %s15, %s3906
      %p3908 = scmp.lt.s32.totalorder %s28, 1
      %s3909 = scalar_select %p3908, %s28, 1
      %s3910 = scalar_lea.vmem %s16, %s3909
      // Predicated region
      $region81: #{tpu_custom_call.1} parent=79 // pred_check
        %p3911 = pneg %p366
      $region82: #{tpu_custom_call.1} parent=79 // pred_check_branch
        %3913 = sbr.rel (%p3911) target = $region84
      $region83: #{tpu_custom_call.1} parent=79 // pred_region
        _
      $region84: #{tpu_custom_call.1} parent=79 // pred_fallthru
        _
      // Predicated region
      $region85: #{tpu_custom_call.1} parent=79 // pred_check
        %p3914 = pneg %p392
      $region86: #{tpu_custom_call.1} parent=79 // pred_check_branch
        %3916 = sbr.rel (%p3914) target = $region88
      $region87: #{tpu_custom_call.1} parent=79 // pred_region
        _
      $region88: #{tpu_custom_call.1} parent=79 // pred_fallthru
        _
    $region80: #{tpu_custom_call.1} parent=5 // pred_fallthru
      _
    %p3917 = scmp.le.s32.totalorder 2, %s23
    // Predicated region
    $region89: #{tpu_custom_call.1} parent=5 // pred_check
      %p3918 = pneg %p3917
    $region90: #{tpu_custom_call.1} parent=5 // pred_check_branch
      %3920 = sbr.rel (%p3918) target = $region92
    $region91: #{tpu_custom_call.1} parent=5 // pred_region
      %s3921 = ssub.s32 %s23, 2
      // Predicated region
      $region93: #{tpu_custom_call.1} parent=91 // pred_check
        %p3922 = pneg %p372
      $region94: #{tpu_custom_call.1} parent=91 // pred_check_branch
        %3924 = sbr.rel (%p3922) target = $region96
      $region95: #{tpu_custom_call.1} parent=91 // pred_region
        %p3925 = scmp.lt.s32.totalorder %s29, 1
        %s3926 = scalar_select %p3925, %s29, 1
        %s3927 = smul.addr %s3926, 8
        %s3928 = smul.addr %s3927, 8
        %s3929 = scalar_lea.vmem %s15, %s3928
      $region96: #{tpu_custom_call.1} parent=91 // pred_fallthru
        _
      // Predicated region
      $region97: #{tpu_custom_call.1} parent=91 // pred_check
        %p3930 = pneg %p398
      $region98: #{tpu_custom_call.1} parent=91 // pred_check_branch
        %3932 = sbr.rel (%p3930) target = $region100
      $region99: #{tpu_custom_call.1} parent=91 // pred_region
        %p3933 = scmp.lt.s32.totalorder %s29, 1
        %s3934 = scalar_select %p3933, %s29, 1
        %s3935 = scalar_lea.vmem %s16, %s3934
      $region100: #{tpu_custom_call.1} parent=91 // pred_fallthru
        _
    $region92: #{tpu_custom_call.1} parent=5 // pred_fallthru
      _
  $region6: #{tpu_custom_call.1} parent=0 // loop_footer
    %s27 = sadd.s32 1, %s23
  $region7: #{tpu_custom_call.1} parent=0 // loop_footer_branch
    %22 = sbr.rel target = $region3
  $region8: #{tpu_custom_call.1} parent=0 // loop_exit
    _

</llo_original>
